<compile_context>
chip_gen: v7x
topology: tpu7x:2x2x1
jax: 0.10.0
libtpu: 0.0.40
codegen_flags: <defaults>
</compile_context>

<pallas_src>
import functools
import math

import jax
import jax.numpy as jnp
import numpy as np
from jax import lax
from jax.experimental import pallas as pl
from jax.experimental.pallas import tpu as pltpu


# ----------------------------------------------------------------------------
# small in-kernel helpers (bf16 operands -> f32 accumulation on the MXU)
# ----------------------------------------------------------------------------
def _dot(a, b):
    """(M,K)@(K,N) with bf16 operands, f32 accumulate."""
    return jnp.dot(a.astype(jnp.bfloat16), b.astype(jnp.bfloat16),
                   preferred_element_type=jnp.float32)


def _dot_nt(a, b):
    """a:(M,K), b:(N,K) contracted on K (MXU takes the transposed operand natively)."""
    return lax.dot_general(a.astype(jnp.bfloat16), b.astype(jnp.bfloat16),
                           (((1,), (1,)), ((), ())),
                           preferred_element_type=jnp.float32)


def _layernorm(y, g, b, eps):
    mu = jnp.mean(y, axis=-1, keepdims=True)
    var = jnp.mean((y - mu) ** 2, axis=-1, keepdims=True)
    return (y - mu) / jnp.sqrt(var + eps) * g + b


def _attention(xq, xkv, mask, wq, wkv, wo, bo, heads, scale):
    """Block-diag Q proj + fused K/V proj + per-head masked softmax + Wo + bo."""
    E = xq.shape[-1]
    hd = E // heads

    q = _dot(xq, wq)                     # (Lq, E)
    kv = _dot(xkv, wkv)                  # (Lk, 2E)
    k = kv[:, :E]
    v = kv[:, E:]

    is_masked = (mask == 0.0)            # hoisted out of the head loop
    outs = []
    for h in range(heads):               # static unroll: heads is tiny
        sl = slice(h * hd, (h + 1) * hd)
        energy = _dot_nt(q[:, sl], k[:, sl])                    # (Lq, Lk)
        energy = jnp.where(is_masked, jnp.float32(-1e20), energy)
        logits = energy * scale                                 # / sqrt(embed_size)
        m = jnp.max(logits, axis=-1, keepdims=True)
        p = jnp.exp(logits - m)
        p = p / jnp.sum(p, axis=-1, keepdims=True)              # f32 softmax
        outs.append(_dot(p, v[:, sl]))                          # (Lq, hd)

    ctx = jnp.concatenate(outs, axis=-1)                        # (Lq, E)
    return _dot(ctx, wo) + bo                                   # (Lq, E)


# ----------------------------------------------------------------------------
# The fused decoder-stack kernel: grid = (batch, num_layers)
# ----------------------------------------------------------------------------
def _decoder_stack_kernel(pos_ref, enc_ref, trg_ref, src_ref,
                          wq_s, wkv_s, wo_s, bo_s, g0, be0,
                          wq_c, wkv_c, wo_c, bo_c, g1, be1,
                          w1, bf1, w2, bf2, g2, be2,
                          fcw, fcb,
                          out_ref, x_ref, *, heads, scale, eps):
    layer = pl.program_id(1)

    # x = dropout(pos_embedding(arange(L)))  (dropout is identity in eval)
    @pl.when(layer == 0)
    def _():
        x_ref[...] = pos_ref[...]

    x = x_ref[...]                                              # (L, E) f32

    # DecoderBlock: masked self-attention + residual + LayerNorm
    sa = _attention(x, x, trg_ref[0, 0],
                    wq_s[0], wkv_s[0], wo_s[0], bo_s[0], heads, scale)
    q = _layernorm(sa + x, g0[0], be0[0], eps)

    # TransformerBlock: cross-attention + residual + LayerNorm1
    ca = _attention(q, enc_ref[0], src_ref[0, 0],
                    wq_c[0], wkv_c[0], wo_c[0], bo_c[0], heads, scale)
    a = _layernorm(ca + q, g1[0], be1[0], eps)

    # Feed-forward + residual + LayerNorm2
    h = jnp.maximum(_dot(a, w1[0]) + bf1[0], 0.0)               # (L, F)
    y = _layernorm(_dot(h, w2[0]) + bf2[0] + a, g2[0], be2[0], eps)

    x_ref[...] = y                                              # carry to next layer

    # final fc_out projection, fused into the last layer iteration
    @pl.when(layer == pl.num_programs(1) - 1)
    def _():
        out_ref[0] = _dot(y, fcw[...]) + fcb[...]


# ----------------------------------------------------------------------------
# pallas_call wrapper
# ----------------------------------------------------------------------------
def decoder_forward(prepared, x_tokens, enc_out, src_mask, trg_mask,
                    heads, embed_size):
    N, L = x_tokens.shape
    E = embed_size
    Lk = enc_out.shape[1]
    num_layers = prepared["Wq_self"].shape[0]
    F = prepared["W1"].shape[2]
    V = prepared["fc_W"].shape[1]
    Tq, Tk = trg_mask.shape[2], trg_mask.shape[3]
    Sq, Sk = src_mask.shape[2], src_mask.shape[3]

    # positions are always arange(L) -> embedding lookup == table slice
    pos = prepared["pos_emb"][:L]                               # (L, E)

    kernel = functools.partial(_decoder_stack_kernel, heads=heads,
                               scale=1.0 / math.sqrt(embed_size), eps=1e-5)

    per_layer = lambda b, l: (l, 0, 0)
    shared2d = lambda b, l: (0, 0)
    per_batch3 = lambda b, l: (b, 0, 0)
    per_batch4 = lambda b, l: (b, 0, 0, 0)

    in_specs = [
        pl.BlockSpec((L, E), shared2d),                         # pos
        pl.BlockSpec((1, Lk, E), per_batch3),                   # enc_out
        pl.BlockSpec((1, 1, Tq, Tk), per_batch4),               # trg_mask
        pl.BlockSpec((1, 1, Sq, Sk), per_batch4),               # src_mask
        pl.BlockSpec((1, E, E), per_layer),                     # Wq_self (block-diag, bf16)
        pl.BlockSpec((1, E, 2 * E), per_layer),                 # Wkv_self (fused, bf16)
        pl.BlockSpec((1, E, E), per_layer),                     # Wo_self^T (bf16)
        pl.BlockSpec((1, 1, E), per_layer),                     # bo_self
        pl.BlockSpec((1, 1, E), per_layer),                     # norm gamma
        pl.BlockSpec((1, 1, E), per_layer),                     # norm beta
        pl.BlockSpec((1, E, E), per_layer),                     # Wq_cross
        pl.BlockSpec((1, E, 2 * E), per_layer),                 # Wkv_cross
        pl.BlockSpec((1, E, E), per_layer),                     # Wo_cross^T
        pl.BlockSpec((1, 1, E), per_layer),                     # bo_cross
        pl.BlockSpec((1, 1, E), per_layer),                     # norm1 gamma
        pl.BlockSpec((1, 1, E), per_layer),                     # norm1 beta
        pl.BlockSpec((1, E, F), per_layer),                     # W1^T (bf16)
        pl.BlockSpec((1, 1, F), per_layer),                     # b1
        pl.BlockSpec((1, F, E), per_layer),                     # W2^T (bf16)
        pl.BlockSpec((1, 1, E), per_layer),                     # b2
        pl.BlockSpec((1, 1, E), per_layer),                     # norm2 gamma
        pl.BlockSpec((1, 1, E), per_layer),                     # norm2 beta
        pl.BlockSpec((E, V), shared2d),                         # fc_out W^T (bf16)
        pl.BlockSpec((1, V), shared2d),                         # fc_out b
    ]

    return pl.pallas_call(
        kernel,
        out_shape=jax.ShapeDtypeStruct((N, L, V), jnp.float32),
        grid=(N, num_layers),
        in_specs=in_specs,
        out_specs=pl.BlockSpec((1, L, V), per_batch3),
        scratch_shapes=[pltpu.VMEM((L, E), jnp.float32)],       # x carried across layers
        compiler_params=pltpu.CompilerParams(
            dimension_semantics=("parallel", "arbitrary")),
    )(pos, enc_out, trg_mask, src_mask,
      prepared["Wq_self"], prepared["Wkv_self"], prepared["Wo_self"],
      prepared["bo_self"], prepared["g0"], prepared["be0"],
      prepared["Wq_cross"], prepared["Wkv_cross"], prepared["Wo_cross"],
      prepared["bo_cross"], prepared["g1"], prepared["be1"],
      prepared["W1"], prepared["bf1"], prepared["W2"], prepared["bf2"],
      prepared["g2"], prepared["be2"],
      prepared["fc_W"], prepared["fc_b"])


# ----------------------------------------------------------------------------
# parameter preparation (done once, outside the forward pass)
# ----------------------------------------------------------------------------
def prepare_params(params, heads):
    """Pre-transpose / block-diagonalise weights, stack per-layer params along a
    leading layer axis, and pre-cast the matmul weights to bf16 (MXU operand
    dtype).  Biases / LayerNorm params / pos table stay f32."""
    eye = jnp.eye(heads, dtype=jnp.float32)

    def bd(w):                           # nn.Linear(hd,hd): y = x @ W^T per head
        return jnp.kron(eye, w.T)        # (E, E) block-diagonal

    def attn(ap):
        wq = bd(ap["Wq"]).astype(jnp.bfloat16)
        wkv = jnp.concatenate([bd(ap["Wk"]), bd(ap["Wv"])],
                              axis=1).astype(jnp.bfloat16)      # (E, 2E)
        wo = ap["Wo"].T.astype(jnp.bfloat16)                    # (E, E)
        bo = ap["bo"].reshape(1, -1)                            # (1, E) f32
        return wq, wkv, wo, bo

    stack = lambda xs: jnp.stack(list(xs), axis=0)
    L = params["layers"]

    wq_s, wkv_s, wo_s, bo_s = zip(*[attn(lp["self_attn"]) for lp in L])
    wq_c, wkv_c, wo_c, bo_c = zip(*[attn(lp["tb"]["attn"]) for lp in L])

    return {
        "pos_emb": params["pos_emb"],
        "Wq_self": stack(wq_s), "Wkv_self": stack(wkv_s),
        "Wo_self": stack(wo_s), "bo_self": stack(bo_s),
        "g0": stack(lp["norm"]["g"].reshape(1, -1) for lp in L),
        "be0": stack(lp["norm"]["b"].reshape(1, -1) for lp in L),
        "Wq_cross": stack(wq_c), "Wkv_cross": stack(wkv_c),
        "Wo_cross": stack(wo_c), "bo_cross": stack(bo_c),
        "g1": stack(lp["tb"]["norm1"]["g"].reshape(1, -1) for lp in L),
        "be1": stack(lp["tb"]["norm1"]["b"].reshape(1, -1) for lp in L),
        "W1": stack(lp["tb"]["ff"]["W1"].T.astype(jnp.bfloat16) for lp in L),
        "bf1": stack(lp["tb"]["ff"]["b1"].reshape(1, -1) for lp in L),
        "W2": stack(lp["tb"]["ff"]["W2"].T.astype(jnp.bfloat16) for lp in L),
        "bf2": stack(lp["tb"]["ff"]["b2"].reshape(1, -1) for lp in L),
        "g2": stack(lp["tb"]["norm2"]["g"].reshape(1, -1) for lp in L),
        "be2": stack(lp["tb"]["norm2"]["b"].reshape(1, -1) for lp in L),
        "fc_W": params["fc_out"]["W"].T.astype(jnp.bfloat16),   # (E, V)
        "fc_b": params["fc_out"]["b"].reshape(1, -1),           # (1, V)
    }


# ----------------------------------------------------------------------------
# Pure-JAX reference (mirrors the PyTorch forward exactly, f32 HIGHEST) for
# validation of the bf16-MXU Pallas path.
# ----------------------------------------------------------------------------
HIGH = jax.lax.Precision.HIGHEST


def _ref_ln(x, g, b, eps=1e-5):
    mu = x.mean(-1, keepdims=True)
    var = ((x - mu) ** 2).mean(-1, keepdims=True)
    return (x - mu) / jnp.sqrt(var + eps) * g + b


def _ref_attn(p, values, keys, query, mask, heads, embed_size):
    N, Lq, E = query.shape
    hd = E // heads
    Lv, Lk = values.shape[1], keys.shape[1]
    v = jnp.einsum("nlhd,ed->nlhe", values.reshape(N, Lv, heads, hd), p["Wv"], precision=HIGH)
    k = jnp.einsum("nlhd,ed->nlhe", keys.reshape(N, Lk, heads, hd), p["Wk"], precision=HIGH)
    q = jnp.einsum("nlhd,ed->nlhe", query.reshape(N, Lq, heads, hd), p["Wq"], precision=HIGH)
    energy = jnp.einsum("nqhd,nkhd->nhqk", q, k, precision=HIGH)
    energy = jnp.where(mask == 0, jnp.float32(-1e20), energy)
    attn = jax.nn.softmax(energy / math.sqrt(embed_size), axis=3)
    out = jnp.einsum("nhql,nlhd->nqhd", attn, v, precision=HIGH).reshape(N, Lq, E)
    return jnp.einsum("nqe,fe->nqf", out, p["Wo"], precision=HIGH) + p["bo"]


def _ref_tb(p, value, key, query, mask, heads, embed_size):
    attn = _ref_attn(p["attn"], value, key, query, mask, heads, embed_size)
    x = _ref_ln(attn + query, p["norm1"]["g"], p["norm1"]["b"])
    h = jnp.maximum(jnp.einsum("nqe,fe->nqf", x, p["ff"]["W1"], precision=HIGH) + p["ff"]["b1"], 0.0)
    h = jnp.einsum("nqf,ef->nqe", h, p["ff"]["W2"], precision=HIGH) + p["ff"]["b2"]
    return _ref_ln(h + x, p["norm2"]["g"], p["norm2"]["b"])


def ref_decoder_forward(params, x_tokens, enc_out, src_mask, trg_mask, heads, embed_size):
    N, L = x_tokens.shape
    x = jnp.broadcast_to(params["pos_emb"][:L][None], (N, L, embed_size))
    for lp in params["layers"]:
        attn = _ref_attn(lp["self_attn"], x, x, x, trg_mask, heads, embed_size)
        query = _ref_ln(attn + x, lp["norm"]["g"], lp["norm"]["b"])
        x = _ref_tb(lp["tb"], enc_out, enc_out, query, src_mask, heads, embed_size)
    return jnp.einsum("nqe,ve->nqv", x, params["fc_out"]["W"], precision=HIGH) + params["fc_out"]["b"]


# ----------------------------------------------------------------------------
# Deterministic parameter init (shapes follow the PyTorch module's __init__)
# ----------------------------------------------------------------------------
def init_params(key, vocab, E, num_layers, heads, fe, max_len):
    hd = E // heads
    keys = iter(jax.random.split(key, 256))

    def nrm(shape, scale=0.05):
        return scale * jax.random.normal(next(keys), shape, jnp.float32)

    def attn_params():
        return {"Wv": nrm((hd, hd)), "Wk": nrm((hd, hd)), "Wq": nrm((hd, hd)),
                "Wo": nrm((E, E)), "bo": nrm((E,))}

    def ln_params():
        return {"g": jnp.ones((E,), jnp.float32) + nrm((E,), 0.01), "b": nrm((E,), 0.01)}

    layers = []
    for _ in range(num_layers):
        layers.append({
            "self_attn": attn_params(),
            "norm": ln_params(),
            "tb": {
                "attn": attn_params(),
                "norm1": ln_params(),
                "norm2": ln_params(),
                "ff": {"W1": nrm((fe * E, E)), "b1": nrm((fe * E,)),
                       "W2": nrm((E, fe * E)), "b2": nrm((E,))},
            },
        })
    return {"pos_emb": nrm((max_len, E), 1.0),
            "layers": layers,
            "fc_out": {"W": nrm((vocab, E)), "b": nrm((vocab,))}}


# ----------------------------------------------------------------------------
if __name__ == "__main__":
    N, L, E, H, FE, V, MAXLEN, NLAYERS = 2, 8, 32, 4, 4, 16, 16, 2

    key = jax.random.PRNGKey(0)
    kp, kx, ke = jax.random.split(key, 3)

    params = init_params(kp, V, E, NLAYERS, H, FE, MAXLEN)
    prepared = prepare_params(params, H)

    x_tokens = jax.random.randint(kx, (N, L), 0, V)                   # only shape is used
    enc_out = jax.random.normal(ke, (N, L, E), jnp.float32)
    src_mask = jnp.ones((N, 1, 1, L), jnp.float32)
    trg_mask = jnp.broadcast_to(
        jnp.tril(jnp.ones((L, L), jnp.float32))[None, None], (N, 1, L, L))

    fwd = jax.jit(functools.partial(decoder_forward, heads=H, embed_size=E))
    out = fwd(prepared, x_tokens, enc_out, src_mask, trg_mask)
    out = jax.block_until_ready(out)
    assert out.shape == (N, L, V)

    ref = ref_decoder_forward(params, x_tokens, enc_out, src_mask, trg_mask, H, E)
    # Kernel uses bf16 MXU operands with f32 accumulation; reference is full f32.
    np.testing.assert_allclose(np.asarray(out), np.asarray(ref), rtol=1e-2, atol=1e-2)

    print("KERNEL_OK")
</pallas_src>

<mosaic_0001>
module attributes {stable_mosaic.version = 11 : i64} {
  func.func @_decoder_stack_kernel(%arg0: i32, %arg1: i32, %arg2: memref<8x32xf32, #tpu.memory_space<vmem>>, %arg3: memref<1x8x32xf32, #tpu.memory_space<vmem>>, %arg4: memref<1x1x8x8xf32, #tpu.memory_space<vmem>>, %arg5: memref<1x1x1x8xf32, #tpu.memory_space<vmem>>, %arg6: memref<1x32x32xbf16, #tpu.memory_space<vmem>>, %arg7: memref<1x32x64xbf16, #tpu.memory_space<vmem>>, %arg8: memref<1x32x32xbf16, #tpu.memory_space<vmem>>, %arg9: memref<1x1x32xf32, #tpu.memory_space<vmem>>, %arg10: memref<1x1x32xf32, #tpu.memory_space<vmem>>, %arg11: memref<1x1x32xf32, #tpu.memory_space<vmem>>, %arg12: memref<1x32x32xbf16, #tpu.memory_space<vmem>>, %arg13: memref<1x32x64xbf16, #tpu.memory_space<vmem>>, %arg14: memref<1x32x32xbf16, #tpu.memory_space<vmem>>, %arg15: memref<1x1x32xf32, #tpu.memory_space<vmem>>, %arg16: memref<1x1x32xf32, #tpu.memory_space<vmem>>, %arg17: memref<1x1x32xf32, #tpu.memory_space<vmem>>, %arg18: memref<1x32x128xbf16, #tpu.memory_space<vmem>>, %arg19: memref<1x1x128xf32, #tpu.memory_space<vmem>>, %arg20: memref<1x128x32xbf16, #tpu.memory_space<vmem>>, %arg21: memref<1x1x32xf32, #tpu.memory_space<vmem>>, %arg22: memref<1x1x32xf32, #tpu.memory_space<vmem>>, %arg23: memref<1x1x32xf32, #tpu.memory_space<vmem>>, %arg24: memref<32x16xbf16, #tpu.memory_space<vmem>>, %arg25: memref<1x16xf32, #tpu.memory_space<vmem>>, %arg26: memref<1x8x16xf32, #tpu.memory_space<vmem>>, %arg27: memref<8x32xf32, #tpu.memory_space<vmem>>) attributes {dimension_semantics = [#tpu.dimension_semantics<parallel>, #tpu.dimension_semantics<arbitrary>], iteration_bounds = array<i64: 2, 2>, scalar_prefetch = 0 : i64, scratch_operands = 1 : i64, tpu.core_type = #tpu.core_type<tc>, window_params = [{pipeline_mode = #tpu.pipeline_mode<synchronous>, transform_indices = @transform_0, window_bounds = array<i64: 8, 32>}, {transform_indices = @transform_1, window_bounds = array<i64: 1, 8, 32>}, {transform_indices = @transform_2, window_bounds = array<i64: 1, 1, 8, 8>}, {transform_indices = @transform_3, window_bounds = array<i64: 1, 1, 1, 8>}, {transform_indices = @transform_4, window_bounds = array<i64: 1, 32, 32>}, {transform_indices = @transform_5, window_bounds = array<i64: 1, 32, 64>}, {transform_indices = @transform_6, window_bounds = array<i64: 1, 32, 32>}, {transform_indices = @transform_7, window_bounds = array<i64: 1, 1, 32>}, {transform_indices = @transform_8, window_bounds = array<i64: 1, 1, 32>}, {transform_indices = @transform_9, window_bounds = array<i64: 1, 1, 32>}, {transform_indices = @transform_10, window_bounds = array<i64: 1, 32, 32>}, {transform_indices = @transform_11, window_bounds = array<i64: 1, 32, 64>}, {transform_indices = @transform_12, window_bounds = array<i64: 1, 32, 32>}, {transform_indices = @transform_13, window_bounds = array<i64: 1, 1, 32>}, {transform_indices = @transform_14, window_bounds = array<i64: 1, 1, 32>}, {transform_indices = @transform_15, window_bounds = array<i64: 1, 1, 32>}, {transform_indices = @transform_16, window_bounds = array<i64: 1, 32, 128>}, {transform_indices = @transform_17, window_bounds = array<i64: 1, 1, 128>}, {transform_indices = @transform_18, window_bounds = array<i64: 1, 128, 32>}, {transform_indices = @transform_19, window_bounds = array<i64: 1, 1, 32>}, {transform_indices = @transform_20, window_bounds = array<i64: 1, 1, 32>}, {transform_indices = @transform_21, window_bounds = array<i64: 1, 1, 32>}, {pipeline_mode = #tpu.pipeline_mode<synchronous>, transform_indices = @transform_22, window_bounds = array<i64: 32, 16>}, {pipeline_mode = #tpu.pipeline_mode<synchronous>, transform_indices = @transform_23, window_bounds = array<i64: 1, 16>}, {transform_indices = @transform_24, window_bounds = array<i64: 1, 8, 16>}]} {
    %c0_i32 = arith.constant 0 : i32
    %0 = arith.cmpi eq, %arg1, %c0_i32 : i32
    %1 = arith.extui %0 : i1 to i32
    %c0_i32_0 = arith.constant 0 : i32
    %2 = arith.cmpi ne, %1, %c0_i32_0 : i32
    scf.if %2 {
      %c0_143 = arith.constant 0 : index
      %c0_144 = arith.constant 0 : index
      %339 = vector.load %arg2[%c0_143, %c0_144] : memref<8x32xf32, #tpu.memory_space<vmem>>, vector<8x32xf32>
      %c0_145 = arith.constant 0 : index
      %c0_146 = arith.constant 0 : index
      %340 = vector.load %arg27[%c0_145, %c0_146] : memref<8x32xf32, #tpu.memory_space<vmem>>, vector<8x32xf32>
      tpu.vector_store %arg27[%c0_145, %c0_146], %339 {strides = array<i32>} : memref<8x32xf32, #tpu.memory_space<vmem>>, vector<8x32xf32>,
    } else {
    }
    %c0 = arith.constant 0 : index
    %c0_1 = arith.constant 0 : index
    %3 = vector.load %arg27[%c0, %c0_1] : memref<8x32xf32, #tpu.memory_space<vmem>>, vector<8x32xf32>
    %c0_2 = arith.constant 0 : index
    %c0_3 = arith.constant 0 : index
    %c0_4 = arith.constant 0 : index
    %c0_5 = arith.constant 0 : index
    %4 = vector.load %arg4[%c0_2, %c0_3, %c0_4, %c0_5] : memref<1x1x8x8xf32, #tpu.memory_space<vmem>>, vector<1x1x8x8xf32>
    %5 = vector.shape_cast %4 : vector<1x1x8x8xf32> to vector<8x8xf32>
    %c0_6 = arith.constant 0 : index
    %c0_7 = arith.constant 0 : index
    %c0_8 = arith.constant 0 : index
    %6 = vector.load %arg6[%c0_6, %c0_7, %c0_8] : memref<1x32x32xbf16, #tpu.memory_space<vmem>>, vector<1x32x32xbf16>
    %7 = vector.shape_cast %6 : vector<1x32x32xbf16> to vector<32x32xbf16>
    %c0_9 = arith.constant 0 : index
    %c0_10 = arith.constant 0 : index
    %c0_11 = arith.constant 0 : index
    %8 = vector.load %arg7[%c0_9, %c0_10, %c0_11] : memref<1x32x64xbf16, #tpu.memory_space<vmem>>, vector<1x32x64xbf16>
    %9 = vector.shape_cast %8 : vector<1x32x64xbf16> to vector<32x64xbf16>
    %c0_12 = arith.constant 0 : index
    %c0_13 = arith.constant 0 : index
    %c0_14 = arith.constant 0 : index
    %10 = vector.load %arg8[%c0_12, %c0_13, %c0_14] : memref<1x32x32xbf16, #tpu.memory_space<vmem>>, vector<1x32x32xbf16>
    %11 = vector.shape_cast %10 : vector<1x32x32xbf16> to vector<32x32xbf16>
    %c0_15 = arith.constant 0 : index
    %c0_16 = arith.constant 0 : index
    %c0_17 = arith.constant 0 : index
    %12 = vector.load %arg9[%c0_15, %c0_16, %c0_17] : memref<1x1x32xf32, #tpu.memory_space<vmem>>, vector<1x1x32xf32>
    %13 = vector.shape_cast %12 : vector<1x1x32xf32> to vector<1x32xf32>
    %14 = arith.truncf %3 : vector<8x32xf32> to vector<8x32xbf16>
    %cst = arith.constant dense<0.000000e+00> : vector<8x32xf32>
    %15 = tpu.matmul %14, %7, %cst {dimension_numbers = #tpu.dot_dimension_numbers<[1], [0], [0], [1], [0, 0, 1, 1], [], []>} : vector<8x32xbf16>, vector<32x32xbf16>, vector<8x32xf32> -> vector<8x32xf32>
    %16 = arith.truncf %3 : vector<8x32xf32> to vector<8x32xbf16>
    %cst_18 = arith.constant dense<0.000000e+00> : vector<8x64xf32>
    %17 = tpu.matmul %16, %9, %cst_18 {dimension_numbers = #tpu.dot_dimension_numbers<[1], [0], [0], [1], [0, 0, 1, 1], [], []>} : vector<8x32xbf16>, vector<32x64xbf16>, vector<8x64xf32> -> vector<8x64xf32>
    %18 = vector.extract_strided_slice %17 {offsets = [0, 0], sizes = [8, 32], strides = [1, 1]} : vector<8x64xf32> to vector<8x32xf32>
    %19 = vector.extract_strided_slice %17 {offsets = [0, 32], sizes = [8, 32], strides = [1, 1]} : vector<8x64xf32> to vector<8x32xf32>
    %cst_19 = arith.constant 0.000000e+00 : f32
    %20 = vector.broadcast %cst_19 : f32 to vector<8x8xf32>
    %21 = arith.cmpf oeq, %5, %20 : vector<8x8xf32>
    %22 = vector.extract_strided_slice %15 {offsets = [0, 0], sizes = [8, 8], strides = [1, 1]} : vector<8x32xf32> to vector<8x8xf32>
    %23 = vector.extract_strided_slice %18 {offsets = [0, 0], sizes = [8, 8], strides = [1, 1]} : vector<8x32xf32> to vector<8x8xf32>
    %24 = arith.truncf %22 : vector<8x8xf32> to vector<8x8xbf16>
    %25 = arith.truncf %23 : vector<8x8xf32> to vector<8x8xbf16>
    %cst_20 = arith.constant dense<0.000000e+00> : vector<8x8xf32>
    %26 = tpu.matmul %24, %25, %cst_20 {dimension_numbers = #tpu.dot_dimension_numbers<[1], [1], [0], [0], [0, 0, 1, 0], [], []>} : vector<8x8xbf16>, vector<8x8xbf16>, vector<8x8xf32> -> vector<8x8xf32>
    %cst_21 = arith.constant -1.000000e+20 : f32
    %27 = vector.broadcast %cst_21 : f32 to vector<8x8xf32>
    %28 = arith.select %21, %27, %26 : vector<8x8xi1>, vector<8x8xf32>
    %cst_22 = arith.constant 0.176776692 : f32
    %29 = vector.broadcast %cst_22 : f32 to vector<8x8xf32>
    %30 = arith.mulf %28, %29 : vector<8x8xf32>
    %cst_23 = arith.constant dense<0xFF800000> : vector<8xf32>
    %31 = vector.multi_reduction <maximumf>, %30, %cst_23 [1] : vector<8x8xf32> to vector<8xf32>
    %32 = vector.shape_cast %31 : vector<8xf32> to vector<8x1xf32>
    %33 = vector.broadcast %32 : vector<8x1xf32> to vector<8x8xf32>
    %34 = arith.subf %30, %33 : vector<8x8xf32>
    %35 = math.exp %34 : vector<8x8xf32>
    %cst_24 = arith.constant dense<0.000000e+00> : vector<8xf32>
    %36 = vector.multi_reduction <add>, %35, %cst_24 [1] : vector<8x8xf32> to vector<8xf32>
    %37 = vector.shape_cast %36 : vector<8xf32> to vector<8x1xf32>
    %38 = vector.broadcast %37 : vector<8x1xf32> to vector<8x8xf32>
    %39 = arith.divf %35, %38 : vector<8x8xf32>
    %40 = vector.extract_strided_slice %19 {offsets = [0, 0], sizes = [8, 8], strides = [1, 1]} : vector<8x32xf32> to vector<8x8xf32>
    %41 = arith.truncf %39 : vector<8x8xf32> to vector<8x8xbf16>
    %42 = arith.truncf %40 : vector<8x8xf32> to vector<8x8xbf16>
    %cst_25 = arith.constant dense<0.000000e+00> : vector<8x8xf32>
    %43 = tpu.matmul %41, %42, %cst_25 {dimension_numbers = #tpu.dot_dimension_numbers<[1], [0], [0], [1], [0, 0, 1, 1], [], []>} : vector<8x8xbf16>, vector<8x8xbf16>, vector<8x8xf32> -> vector<8x8xf32>
    %44 = vector.extract_strided_slice %15 {offsets = [0, 8], sizes = [8, 8], strides = [1, 1]} : vector<8x32xf32> to vector<8x8xf32>
    %45 = vector.extract_strided_slice %18 {offsets = [0, 8], sizes = [8, 8], strides = [1, 1]} : vector<8x32xf32> to vector<8x8xf32>
    %46 = arith.truncf %44 : vector<8x8xf32> to vector<8x8xbf16>
    %47 = arith.truncf %45 : vector<8x8xf32> to vector<8x8xbf16>
    %cst_26 = arith.constant dense<0.000000e+00> : vector<8x8xf32>
    %48 = tpu.matmul %46, %47, %cst_26 {dimension_numbers = #tpu.dot_dimension_numbers<[1], [1], [0], [0], [0, 0, 1, 0], [], []>} : vector<8x8xbf16>, vector<8x8xbf16>, vector<8x8xf32> -> vector<8x8xf32>
    %cst_27 = arith.constant -1.000000e+20 : f32
    %49 = vector.broadcast %cst_27 : f32 to vector<8x8xf32>
    %50 = arith.select %21, %49, %48 : vector<8x8xi1>, vector<8x8xf32>
    %cst_28 = arith.constant 0.176776692 : f32
    %51 = vector.broadcast %cst_28 : f32 to vector<8x8xf32>
    %52 = arith.mulf %50, %51 : vector<8x8xf32>
    %cst_29 = arith.constant dense<0xFF800000> : vector<8xf32>
    %53 = vector.multi_reduction <maximumf>, %52, %cst_29 [1] : vector<8x8xf32> to vector<8xf32>
    %54 = vector.shape_cast %53 : vector<8xf32> to vector<8x1xf32>
    %55 = vector.broadcast %54 : vector<8x1xf32> to vector<8x8xf32>
    %56 = arith.subf %52, %55 : vector<8x8xf32>
    %57 = math.exp %56 : vector<8x8xf32>
    %cst_30 = arith.constant dense<0.000000e+00> : vector<8xf32>
    %58 = vector.multi_reduction <add>, %57, %cst_30 [1] : vector<8x8xf32> to vector<8xf32>
    %59 = vector.shape_cast %58 : vector<8xf32> to vector<8x1xf32>
    %60 = vector.broadcast %59 : vector<8x1xf32> to vector<8x8xf32>
    %61 = arith.divf %57, %60 : vector<8x8xf32>
    %62 = vector.extract_strided_slice %19 {offsets = [0, 8], sizes = [8, 8], strides = [1, 1]} : vector<8x32xf32> to vector<8x8xf32>
    %63 = arith.truncf %61 : vector<8x8xf32> to vector<8x8xbf16>
    %64 = arith.truncf %62 : vector<8x8xf32> to vector<8x8xbf16>
    %cst_31 = arith.constant dense<0.000000e+00> : vector<8x8xf32>
    %65 = tpu.matmul %63, %64, %cst_31 {dimension_numbers = #tpu.dot_dimension_numbers<[1], [0], [0], [1], [0, 0, 1, 1], [], []>} : vector<8x8xbf16>, vector<8x8xbf16>, vector<8x8xf32> -> vector<8x8xf32>
    %66 = vector.extract_strided_slice %15 {offsets = [0, 16], sizes = [8, 8], strides = [1, 1]} : vector<8x32xf32> to vector<8x8xf32>
    %67 = vector.extract_strided_slice %18 {offsets = [0, 16], sizes = [8, 8], strides = [1, 1]} : vector<8x32xf32> to vector<8x8xf32>
    %68 = arith.truncf %66 : vector<8x8xf32> to vector<8x8xbf16>
    %69 = arith.truncf %67 : vector<8x8xf32> to vector<8x8xbf16>
    %cst_32 = arith.constant dense<0.000000e+00> : vector<8x8xf32>
    %70 = tpu.matmul %68, %69, %cst_32 {dimension_numbers = #tpu.dot_dimension_numbers<[1], [1], [0], [0], [0, 0, 1, 0], [], []>} : vector<8x8xbf16>, vector<8x8xbf16>, vector<8x8xf32> -> vector<8x8xf32>
    %cst_33 = arith.constant -1.000000e+20 : f32
    %71 = vector.broadcast %cst_33 : f32 to vector<8x8xf32>
    %72 = arith.select %21, %71, %70 : vector<8x8xi1>, vector<8x8xf32>
    %cst_34 = arith.constant 0.176776692 : f32
    %73 = vector.broadcast %cst_34 : f32 to vector<8x8xf32>
    %74 = arith.mulf %72, %73 : vector<8x8xf32>
    %cst_35 = arith.constant dense<0xFF800000> : vector<8xf32>
    %75 = vector.multi_reduction <maximumf>, %74, %cst_35 [1] : vector<8x8xf32> to vector<8xf32>
    %76 = vector.shape_cast %75 : vector<8xf32> to vector<8x1xf32>
    %77 = vector.broadcast %76 : vector<8x1xf32> to vector<8x8xf32>
    %78 = arith.subf %74, %77 : vector<8x8xf32>
    %79 = math.exp %78 : vector<8x8xf32>
    %cst_36 = arith.constant dense<0.000000e+00> : vector<8xf32>
    %80 = vector.multi_reduction <add>, %79, %cst_36 [1] : vector<8x8xf32> to vector<8xf32>
    %81 = vector.shape_cast %80 : vector<8xf32> to vector<8x1xf32>
    %82 = vector.broadcast %81 : vector<8x1xf32> to vector<8x8xf32>
    %83 = arith.divf %79, %82 : vector<8x8xf32>
    %84 = vector.extract_strided_slice %19 {offsets = [0, 16], sizes = [8, 8], strides = [1, 1]} : vector<8x32xf32> to vector<8x8xf32>
    %85 = arith.truncf %83 : vector<8x8xf32> to vector<8x8xbf16>
    %86 = arith.truncf %84 : vector<8x8xf32> to vector<8x8xbf16>
    %cst_37 = arith.constant dense<0.000000e+00> : vector<8x8xf32>
    %87 = tpu.matmul %85, %86, %cst_37 {dimension_numbers = #tpu.dot_dimension_numbers<[1], [0], [0], [1], [0, 0, 1, 1], [], []>} : vector<8x8xbf16>, vector<8x8xbf16>, vector<8x8xf32> -> vector<8x8xf32>
    %88 = vector.extract_strided_slice %15 {offsets = [0, 24], sizes = [8, 8], strides = [1, 1]} : vector<8x32xf32> to vector<8x8xf32>
    %89 = vector.extract_strided_slice %18 {offsets = [0, 24], sizes = [8, 8], strides = [1, 1]} : vector<8x32xf32> to vector<8x8xf32>
    %90 = arith.truncf %88 : vector<8x8xf32> to vector<8x8xbf16>
    %91 = arith.truncf %89 : vector<8x8xf32> to vector<8x8xbf16>
    %cst_38 = arith.constant dense<0.000000e+00> : vector<8x8xf32>
    %92 = tpu.matmul %90, %91, %cst_38 {dimension_numbers = #tpu.dot_dimension_numbers<[1], [1], [0], [0], [0, 0, 1, 0], [], []>} : vector<8x8xbf16>, vector<8x8xbf16>, vector<8x8xf32> -> vector<8x8xf32>
    %cst_39 = arith.constant -1.000000e+20 : f32
    %93 = vector.broadcast %cst_39 : f32 to vector<8x8xf32>
    %94 = arith.select %21, %93, %92 : vector<8x8xi1>, vector<8x8xf32>
    %cst_40 = arith.constant 0.176776692 : f32
    %95 = vector.broadcast %cst_40 : f32 to vector<8x8xf32>
    %96 = arith.mulf %94, %95 : vector<8x8xf32>
    %cst_41 = arith.constant dense<0xFF800000> : vector<8xf32>
    %97 = vector.multi_reduction <maximumf>, %96, %cst_41 [1] : vector<8x8xf32> to vector<8xf32>
    %98 = vector.shape_cast %97 : vector<8xf32> to vector<8x1xf32>
    %99 = vector.broadcast %98 : vector<8x1xf32> to vector<8x8xf32>
    %100 = arith.subf %96, %99 : vector<8x8xf32>
    %101 = math.exp %100 : vector<8x8xf32>
    %cst_42 = arith.constant dense<0.000000e+00> : vector<8xf32>
    %102 = vector.multi_reduction <add>, %101, %cst_42 [1] : vector<8x8xf32> to vector<8xf32>
    %103 = vector.shape_cast %102 : vector<8xf32> to vector<8x1xf32>
    %104 = vector.broadcast %103 : vector<8x1xf32> to vector<8x8xf32>
    %105 = arith.divf %101, %104 : vector<8x8xf32>
    %106 = vector.extract_strided_slice %19 {offsets = [0, 24], sizes = [8, 8], strides = [1, 1]} : vector<8x32xf32> to vector<8x8xf32>
    %107 = arith.truncf %105 : vector<8x8xf32> to vector<8x8xbf16>
    %108 = arith.truncf %106 : vector<8x8xf32> to vector<8x8xbf16>
    %cst_43 = arith.constant dense<0.000000e+00> : vector<8x8xf32>
    %109 = tpu.matmul %107, %108, %cst_43 {dimension_numbers = #tpu.dot_dimension_numbers<[1], [0], [0], [1], [0, 0, 1, 1], [], []>} : vector<8x8xbf16>, vector<8x8xbf16>, vector<8x8xf32> -> vector<8x8xf32>
    %110 = tpu.concatenate %43, %65, %87, %109 in 1 : vector<8x8xf32>, vector<8x8xf32>, vector<8x8xf32>, vector<8x8xf32> -> vector<8x32xf32>
    %111 = arith.truncf %110 : vector<8x32xf32> to vector<8x32xbf16>
    %cst_44 = arith.constant dense<0.000000e+00> : vector<8x32xf32>
    %112 = tpu.matmul %111, %11, %cst_44 {dimension_numbers = #tpu.dot_dimension_numbers<[1], [0], [0], [1], [0, 0, 1, 1], [], []>} : vector<8x32xbf16>, vector<32x32xbf16>, vector<8x32xf32> -> vector<8x32xf32>
    %113 = vector.broadcast %13 : vector<1x32xf32> to vector<8x32xf32>
    %114 = arith.addf %112, %113 : vector<8x32xf32>
    %115 = arith.addf %114, %3 : vector<8x32xf32>
    %c0_45 = arith.constant 0 : index
    %c0_46 = arith.constant 0 : index
    %c0_47 = arith.constant 0 : index
    %116 = vector.load %arg10[%c0_45, %c0_46, %c0_47] : memref<1x1x32xf32, #tpu.memory_space<vmem>>, vector<1x1x32xf32>
    %117 = vector.shape_cast %116 : vector<1x1x32xf32> to vector<1x32xf32>
    %c0_48 = arith.constant 0 : index
    %c0_49 = arith.constant 0 : index
    %c0_50 = arith.constant 0 : index
    %118 = vector.load %arg11[%c0_48, %c0_49, %c0_50] : memref<1x1x32xf32, #tpu.memory_space<vmem>>, vector<1x1x32xf32>
    %119 = vector.shape_cast %118 : vector<1x1x32xf32> to vector<1x32xf32>
    %cst_51 = arith.constant dense<0.000000e+00> : vector<8xf32>
    %120 = vector.multi_reduction <add>, %115, %cst_51 [1] : vector<8x32xf32> to vector<8xf32>
    %121 = vector.shape_cast %120 : vector<8xf32> to vector<8x1xf32>
    %cst_52 = arith.constant 3.200000e+01 : f32
    %122 = vector.broadcast %cst_52 : f32 to vector<8x1xf32>
    %123 = arith.divf %121, %122 : vector<8x1xf32>
    %124 = vector.broadcast %123 : vector<8x1xf32> to vector<8x32xf32>
    %125 = arith.subf %115, %124 : vector<8x32xf32>
    %126 = arith.mulf %125, %125 : vector<8x32xf32>
    %cst_53 = arith.constant dense<0.000000e+00> : vector<8xf32>
    %127 = vector.multi_reduction <add>, %126, %cst_53 [1] : vector<8x32xf32> to vector<8xf32>
    %128 = vector.shape_cast %127 : vector<8xf32> to vector<8x1xf32>
    %cst_54 = arith.constant 3.200000e+01 : f32
    %129 = vector.broadcast %cst_54 : f32 to vector<8x1xf32>
    %130 = arith.divf %128, %129 : vector<8x1xf32>
    %131 = vector.broadcast %123 : vector<8x1xf32> to vector<8x32xf32>
    %132 = arith.subf %115, %131 : vector<8x32xf32>
    %cst_55 = arith.constant 9.99999974E-6 : f32
    %133 = vector.broadcast %cst_55 : f32 to vector<8x1xf32>
    %134 = arith.addf %130, %133 : vector<8x1xf32>
    %135 = math.sqrt %134 : vector<8x1xf32>
    %136 = vector.broadcast %135 : vector<8x1xf32> to vector<8x32xf32>
    %137 = arith.divf %132, %136 : vector<8x32xf32>
    %138 = vector.broadcast %117 : vector<1x32xf32> to vector<8x32xf32>
    %139 = arith.mulf %137, %138 : vector<8x32xf32>
    %140 = vector.broadcast %119 : vector<1x32xf32> to vector<8x32xf32>
    %141 = arith.addf %139, %140 : vector<8x32xf32>
    %c0_56 = arith.constant 0 : index
    %c0_57 = arith.constant 0 : index
    %c0_58 = arith.constant 0 : index
    %142 = vector.load %arg3[%c0_56, %c0_57, %c0_58] : memref<1x8x32xf32, #tpu.memory_space<vmem>>, vector<1x8x32xf32>
    %143 = vector.shape_cast %142 : vector<1x8x32xf32> to vector<8x32xf32>
    %c0_59 = arith.constant 0 : index
    %c0_60 = arith.constant 0 : index
    %c0_61 = arith.constant 0 : index
    %c0_62 = arith.constant 0 : index
    %144 = vector.load %arg5[%c0_59, %c0_60, %c0_61, %c0_62] : memref<1x1x1x8xf32, #tpu.memory_space<vmem>>, vector<1x1x1x8xf32>
    %145 = vector.shape_cast %144 : vector<1x1x1x8xf32> to vector<1x8xf32>
    %c0_63 = arith.constant 0 : index
    %c0_64 = arith.constant 0 : index
    %c0_65 = arith.constant 0 : index
    %146 = vector.load %arg12[%c0_63, %c0_64, %c0_65] : memref<1x32x32xbf16, #tpu.memory_space<vmem>>, vector<1x32x32xbf16>
    %147 = vector.shape_cast %146 : vector<1x32x32xbf16> to vector<32x32xbf16>
    %c0_66 = arith.constant 0 : index
    %c0_67 = arith.constant 0 : index
    %c0_68 = arith.constant 0 : index
    %148 = vector.load %arg13[%c0_66, %c0_67, %c0_68] : memref<1x32x64xbf16, #tpu.memory_space<vmem>>, vector<1x32x64xbf16>
    %149 = vector.shape_cast %148 : vector<1x32x64xbf16> to vector<32x64xbf16>
    %c0_69 = arith.constant 0 : index
    %c0_70 = arith.constant 0 : index
    %c0_71 = arith.constant 0 : index
    %150 = vector.load %arg14[%c0_69, %c0_70, %c0_71] : memref<1x32x32xbf16, #tpu.memory_space<vmem>>, vector<1x32x32xbf16>
    %151 = vector.shape_cast %150 : vector<1x32x32xbf16> to vector<32x32xbf16>
    %c0_72 = arith.constant 0 : index
    %c0_73 = arith.constant 0 : index
    %c0_74 = arith.constant 0 : index
    %152 = vector.load %arg15[%c0_72, %c0_73, %c0_74] : memref<1x1x32xf32, #tpu.memory_space<vmem>>, vector<1x1x32xf32>
    %153 = vector.shape_cast %152 : vector<1x1x32xf32> to vector<1x32xf32>
    %154 = arith.truncf %141 : vector<8x32xf32> to vector<8x32xbf16>
    %cst_75 = arith.constant dense<0.000000e+00> : vector<8x32xf32>
    %155 = tpu.matmul %154, %147, %cst_75 {dimension_numbers = #tpu.dot_dimension_numbers<[1], [0], [0], [1], [0, 0, 1, 1], [], []>} : vector<8x32xbf16>, vector<32x32xbf16>, vector<8x32xf32> -> vector<8x32xf32>
    %156 = arith.truncf %143 : vector<8x32xf32> to vector<8x32xbf16>
    %cst_76 = arith.constant dense<0.000000e+00> : vector<8x64xf32>
    %157 = tpu.matmul %156, %149, %cst_76 {dimension_numbers = #tpu.dot_dimension_numbers<[1], [0], [0], [1], [0, 0, 1, 1], [], []>} : vector<8x32xbf16>, vector<32x64xbf16>, vector<8x64xf32> -> vector<8x64xf32>
    %158 = vector.extract_strided_slice %157 {offsets = [0, 0], sizes = [8, 32], strides = [1, 1]} : vector<8x64xf32> to vector<8x32xf32>
    %159 = vector.extract_strided_slice %157 {offsets = [0, 32], sizes = [8, 32], strides = [1, 1]} : vector<8x64xf32> to vector<8x32xf32>
    %cst_77 = arith.constant 0.000000e+00 : f32
    %160 = vector.broadcast %cst_77 : f32 to vector<1x8xf32>
    %161 = arith.cmpf oeq, %145, %160 : vector<1x8xf32>
    %162 = vector.extract_strided_slice %155 {offsets = [0, 0], sizes = [8, 8], strides = [1, 1]} : vector<8x32xf32> to vector<8x8xf32>
    %163 = vector.extract_strided_slice %158 {offsets = [0, 0], sizes = [8, 8], strides = [1, 1]} : vector<8x32xf32> to vector<8x8xf32>
    %164 = arith.truncf %162 : vector<8x8xf32> to vector<8x8xbf16>
    %165 = arith.truncf %163 : vector<8x8xf32> to vector<8x8xbf16>
    %cst_78 = arith.constant dense<0.000000e+00> : vector<8x8xf32>
    %166 = tpu.matmul %164, %165, %cst_78 {dimension_numbers = #tpu.dot_dimension_numbers<[1], [1], [0], [0], [0, 0, 1, 0], [], []>} : vector<8x8xbf16>, vector<8x8xbf16>, vector<8x8xf32> -> vector<8x8xf32>
    %cst_79 = arith.constant -1.000000e+20 : f32
    %167 = vector.shape_cast %161 : vector<1x8xi1> to vector<1x8xi1>
    %168 = vector.broadcast %167 : vector<1x8xi1> to vector<8x8xi1>
    %169 = vector.broadcast %cst_79 : f32 to vector<8x8xf32>
    %170 = arith.select %168, %169, %166 : vector<8x8xi1>, vector<8x8xf32>
    %cst_80 = arith.constant 0.176776692 : f32
    %171 = vector.broadcast %cst_80 : f32 to vector<8x8xf32>
    %172 = arith.mulf %170, %171 : vector<8x8xf32>
    %cst_81 = arith.constant dense<0xFF800000> : vector<8xf32>
    %173 = vector.multi_reduction <maximumf>, %172, %cst_81 [1] : vector<8x8xf32> to vector<8xf32>
    %174 = vector.shape_cast %173 : vector<8xf32> to vector<8x1xf32>
    %175 = vector.broadcast %174 : vector<8x1xf32> to vector<8x8xf32>
    %176 = arith.subf %172, %175 : vector<8x8xf32>
    %177 = math.exp %176 : vector<8x8xf32>
    %cst_82 = arith.constant dense<0.000000e+00> : vector<8xf32>
    %178 = vector.multi_reduction <add>, %177, %cst_82 [1] : vector<8x8xf32> to vector<8xf32>
    %179 = vector.shape_cast %178 : vector<8xf32> to vector<8x1xf32>
    %180 = vector.broadcast %179 : vector<8x1xf32> to vector<8x8xf32>
    %181 = arith.divf %177, %180 : vector<8x8xf32>
    %182 = vector.extract_strided_slice %159 {offsets = [0, 0], sizes = [8, 8], strides = [1, 1]} : vector<8x32xf32> to vector<8x8xf32>
    %183 = arith.truncf %181 : vector<8x8xf32> to vector<8x8xbf16>
    %184 = arith.truncf %182 : vector<8x8xf32> to vector<8x8xbf16>
    %cst_83 = arith.constant dense<0.000000e+00> : vector<8x8xf32>
    %185 = tpu.matmul %183, %184, %cst_83 {dimension_numbers = #tpu.dot_dimension_numbers<[1], [0], [0], [1], [0, 0, 1, 1], [], []>} : vector<8x8xbf16>, vector<8x8xbf16>, vector<8x8xf32> -> vector<8x8xf32>
    %186 = vector.extract_strided_slice %155 {offsets = [0, 8], sizes = [8, 8], strides = [1, 1]} : vector<8x32xf32> to vector<8x8xf32>
    %187 = vector.extract_strided_slice %158 {offsets = [0, 8], sizes = [8, 8], strides = [1, 1]} : vector<8x32xf32> to vector<8x8xf32>
    %188 = arith.truncf %186 : vector<8x8xf32> to vector<8x8xbf16>
    %189 = arith.truncf %187 : vector<8x8xf32> to vector<8x8xbf16>
    %cst_84 = arith.constant dense<0.000000e+00> : vector<8x8xf32>
    %190 = tpu.matmul %188, %189, %cst_84 {dimension_numbers = #tpu.dot_dimension_numbers<[1], [1], [0], [0], [0, 0, 1, 0], [], []>} : vector<8x8xbf16>, vector<8x8xbf16>, vector<8x8xf32> -> vector<8x8xf32>
    %cst_85 = arith.constant -1.000000e+20 : f32
    %191 = vector.shape_cast %161 : vector<1x8xi1> to vector<1x8xi1>
    %192 = vector.broadcast %191 : vector<1x8xi1> to vector<8x8xi1>
    %193 = vector.broadcast %cst_85 : f32 to vector<8x8xf32>
    %194 = arith.select %192, %193, %190 : vector<8x8xi1>, vector<8x8xf32>
    %cst_86 = arith.constant 0.176776692 : f32
    %195 = vector.broadcast %cst_86 : f32 to vector<8x8xf32>
    %196 = arith.mulf %194, %195 : vector<8x8xf32>
    %cst_87 = arith.constant dense<0xFF800000> : vector<8xf32>
    %197 = vector.multi_reduction <maximumf>, %196, %cst_87 [1] : vector<8x8xf32> to vector<8xf32>
    %198 = vector.shape_cast %197 : vector<8xf32> to vector<8x1xf32>
    %199 = vector.broadcast %198 : vector<8x1xf32> to vector<8x8xf32>
    %200 = arith.subf %196, %199 : vector<8x8xf32>
    %201 = math.exp %200 : vector<8x8xf32>
    %cst_88 = arith.constant dense<0.000000e+00> : vector<8xf32>
    %202 = vector.multi_reduction <add>, %201, %cst_88 [1] : vector<8x8xf32> to vector<8xf32>
    %203 = vector.shape_cast %202 : vector<8xf32> to vector<8x1xf32>
    %204 = vector.broadcast %203 : vector<8x1xf32> to vector<8x8xf32>
    %205 = arith.divf %201, %204 : vector<8x8xf32>
    %206 = vector.extract_strided_slice %159 {offsets = [0, 8], sizes = [8, 8], strides = [1, 1]} : vector<8x32xf32> to vector<8x8xf32>
    %207 = arith.truncf %205 : vector<8x8xf32> to vector<8x8xbf16>
    %208 = arith.truncf %206 : vector<8x8xf32> to vector<8x8xbf16>
    %cst_89 = arith.constant dense<0.000000e+00> : vector<8x8xf32>
    %209 = tpu.matmul %207, %208, %cst_89 {dimension_numbers = #tpu.dot_dimension_numbers<[1], [0], [0], [1], [0, 0, 1, 1], [], []>} : vector<8x8xbf16>, vector<8x8xbf16>, vector<8x8xf32> -> vector<8x8xf32>
    %210 = vector.extract_strided_slice %155 {offsets = [0, 16], sizes = [8, 8], strides = [1, 1]} : vector<8x32xf32> to vector<8x8xf32>
    %211 = vector.extract_strided_slice %158 {offsets = [0, 16], sizes = [8, 8], strides = [1, 1]} : vector<8x32xf32> to vector<8x8xf32>
    %212 = arith.truncf %210 : vector<8x8xf32> to vector<8x8xbf16>
    %213 = arith.truncf %211 : vector<8x8xf32> to vector<8x8xbf16>
    %cst_90 = arith.constant dense<0.000000e+00> : vector<8x8xf32>
    %214 = tpu.matmul %212, %213, %cst_90 {dimension_numbers = #tpu.dot_dimension_numbers<[1], [1], [0], [0], [0, 0, 1, 0], [], []>} : vector<8x8xbf16>, vector<8x8xbf16>, vector<8x8xf32> -> vector<8x8xf32>
    %cst_91 = arith.constant -1.000000e+20 : f32
    %215 = vector.shape_cast %161 : vector<1x8xi1> to vector<1x8xi1>
    %216 = vector.broadcast %215 : vector<1x8xi1> to vector<8x8xi1>
    %217 = vector.broadcast %cst_91 : f32 to vector<8x8xf32>
    %218 = arith.select %216, %217, %214 : vector<8x8xi1>, vector<8x8xf32>
    %cst_92 = arith.constant 0.176776692 : f32
    %219 = vector.broadcast %cst_92 : f32 to vector<8x8xf32>
    %220 = arith.mulf %218, %219 : vector<8x8xf32>
    %cst_93 = arith.constant dense<0xFF800000> : vector<8xf32>
    %221 = vector.multi_reduction <maximumf>, %220, %cst_93 [1] : vector<8x8xf32> to vector<8xf32>
    %222 = vector.shape_cast %221 : vector<8xf32> to vector<8x1xf32>
    %223 = vector.broadcast %222 : vector<8x1xf32> to vector<8x8xf32>
    %224 = arith.subf %220, %223 : vector<8x8xf32>
    %225 = math.exp %224 : vector<8x8xf32>
    %cst_94 = arith.constant dense<0.000000e+00> : vector<8xf32>
    %226 = vector.multi_reduction <add>, %225, %cst_94 [1] : vector<8x8xf32> to vector<8xf32>
    %227 = vector.shape_cast %226 : vector<8xf32> to vector<8x1xf32>
    %228 = vector.broadcast %227 : vector<8x1xf32> to vector<8x8xf32>
    %229 = arith.divf %225, %228 : vector<8x8xf32>
    %230 = vector.extract_strided_slice %159 {offsets = [0, 16], sizes = [8, 8], strides = [1, 1]} : vector<8x32xf32> to vector<8x8xf32>
    %231 = arith.truncf %229 : vector<8x8xf32> to vector<8x8xbf16>
    %232 = arith.truncf %230 : vector<8x8xf32> to vector<8x8xbf16>
    %cst_95 = arith.constant dense<0.000000e+00> : vector<8x8xf32>
    %233 = tpu.matmul %231, %232, %cst_95 {dimension_numbers = #tpu.dot_dimension_numbers<[1], [0], [0], [1], [0, 0, 1, 1], [], []>} : vector<8x8xbf16>, vector<8x8xbf16>, vector<8x8xf32> -> vector<8x8xf32>
    %234 = vector.extract_strided_slice %155 {offsets = [0, 24], sizes = [8, 8], strides = [1, 1]} : vector<8x32xf32> to vector<8x8xf32>
    %235 = vector.extract_strided_slice %158 {offsets = [0, 24], sizes = [8, 8], strides = [1, 1]} : vector<8x32xf32> to vector<8x8xf32>
    %236 = arith.truncf %234 : vector<8x8xf32> to vector<8x8xbf16>
    %237 = arith.truncf %235 : vector<8x8xf32> to vector<8x8xbf16>
    %cst_96 = arith.constant dense<0.000000e+00> : vector<8x8xf32>
    %238 = tpu.matmul %236, %237, %cst_96 {dimension_numbers = #tpu.dot_dimension_numbers<[1], [1], [0], [0], [0, 0, 1, 0], [], []>} : vector<8x8xbf16>, vector<8x8xbf16>, vector<8x8xf32> -> vector<8x8xf32>
    %cst_97 = arith.constant -1.000000e+20 : f32
    %239 = vector.shape_cast %161 : vector<1x8xi1> to vector<1x8xi1>
    %240 = vector.broadcast %239 : vector<1x8xi1> to vector<8x8xi1>
    %241 = vector.broadcast %cst_97 : f32 to vector<8x8xf32>
    %242 = arith.select %240, %241, %238 : vector<8x8xi1>, vector<8x8xf32>
    %cst_98 = arith.constant 0.176776692 : f32
    %243 = vector.broadcast %cst_98 : f32 to vector<8x8xf32>
    %244 = arith.mulf %242, %243 : vector<8x8xf32>
    %cst_99 = arith.constant dense<0xFF800000> : vector<8xf32>
    %245 = vector.multi_reduction <maximumf>, %244, %cst_99 [1] : vector<8x8xf32> to vector<8xf32>
    %246 = vector.shape_cast %245 : vector<8xf32> to vector<8x1xf32>
    %247 = vector.broadcast %246 : vector<8x1xf32> to vector<8x8xf32>
    %248 = arith.subf %244, %247 : vector<8x8xf32>
    %249 = math.exp %248 : vector<8x8xf32>
    %cst_100 = arith.constant dense<0.000000e+00> : vector<8xf32>
    %250 = vector.multi_reduction <add>, %249, %cst_100 [1] : vector<8x8xf32> to vector<8xf32>
    %251 = vector.shape_cast %250 : vector<8xf32> to vector<8x1xf32>
    %252 = vector.broadcast %251 : vector<8x1xf32> to vector<8x8xf32>
    %253 = arith.divf %249, %252 : vector<8x8xf32>
    %254 = vector.extract_strided_slice %159 {offsets = [0, 24], sizes = [8, 8], strides = [1, 1]} : vector<8x32xf32> to vector<8x8xf32>
    %255 = arith.truncf %253 : vector<8x8xf32> to vector<8x8xbf16>
    %256 = arith.truncf %254 : vector<8x8xf32> to vector<8x8xbf16>
    %cst_101 = arith.constant dense<0.000000e+00> : vector<8x8xf32>
    %257 = tpu.matmul %255, %256, %cst_101 {dimension_numbers = #tpu.dot_dimension_numbers<[1], [0], [0], [1], [0, 0, 1, 1], [], []>} : vector<8x8xbf16>, vector<8x8xbf16>, vector<8x8xf32> -> vector<8x8xf32>
    %258 = tpu.concatenate %185, %209, %233, %257 in 1 : vector<8x8xf32>, vector<8x8xf32>, vector<8x8xf32>, vector<8x8xf32> -> vector<8x32xf32>
    %259 = arith.truncf %258 : vector<8x32xf32> to vector<8x32xbf16>
    %cst_102 = arith.constant dense<0.000000e+00> : vector<8x32xf32>
    %260 = tpu.matmul %259, %151, %cst_102 {dimension_numbers = #tpu.dot_dimension_numbers<[1], [0], [0], [1], [0, 0, 1, 1], [], []>} : vector<8x32xbf16>, vector<32x32xbf16>, vector<8x32xf32> -> vector<8x32xf32>
    %261 = vector.broadcast %153 : vector<1x32xf32> to vector<8x32xf32>
    %262 = arith.addf %260, %261 : vector<8x32xf32>
    %263 = arith.addf %262, %141 : vector<8x32xf32>
    %c0_103 = arith.constant 0 : index
    %c0_104 = arith.constant 0 : index
    %c0_105 = arith.constant 0 : index
    %264 = vector.load %arg16[%c0_103, %c0_104, %c0_105] : memref<1x1x32xf32, #tpu.memory_space<vmem>>, vector<1x1x32xf32>
    %265 = vector.shape_cast %264 : vector<1x1x32xf32> to vector<1x32xf32>
    %c0_106 = arith.constant 0 : index
    %c0_107 = arith.constant 0 : index
    %c0_108 = arith.constant 0 : index
    %266 = vector.load %arg17[%c0_106, %c0_107, %c0_108] : memref<1x1x32xf32, #tpu.memory_space<vmem>>, vector<1x1x32xf32>
    %267 = vector.shape_cast %266 : vector<1x1x32xf32> to vector<1x32xf32>
    %cst_109 = arith.constant dense<0.000000e+00> : vector<8xf32>
    %268 = vector.multi_reduction <add>, %263, %cst_109 [1] : vector<8x32xf32> to vector<8xf32>
    %269 = vector.shape_cast %268 : vector<8xf32> to vector<8x1xf32>
    %cst_110 = arith.constant 3.200000e+01 : f32
    %270 = vector.broadcast %cst_110 : f32 to vector<8x1xf32>
    %271 = arith.divf %269, %270 : vector<8x1xf32>
    %272 = vector.broadcast %271 : vector<8x1xf32> to vector<8x32xf32>
    %273 = arith.subf %263, %272 : vector<8x32xf32>
    %274 = arith.mulf %273, %273 : vector<8x32xf32>
    %cst_111 = arith.constant dense<0.000000e+00> : vector<8xf32>
    %275 = vector.multi_reduction <add>, %274, %cst_111 [1] : vector<8x32xf32> to vector<8xf32>
    %276 = vector.shape_cast %275 : vector<8xf32> to vector<8x1xf32>
    %cst_112 = arith.constant 3.200000e+01 : f32
    %277 = vector.broadcast %cst_112 : f32 to vector<8x1xf32>
    %278 = arith.divf %276, %277 : vector<8x1xf32>
    %279 = vector.broadcast %271 : vector<8x1xf32> to vector<8x32xf32>
    %280 = arith.subf %263, %279 : vector<8x32xf32>
    %cst_113 = arith.constant 9.99999974E-6 : f32
    %281 = vector.broadcast %cst_113 : f32 to vector<8x1xf32>
    %282 = arith.addf %278, %281 : vector<8x1xf32>
    %283 = math.sqrt %282 : vector<8x1xf32>
    %284 = vector.broadcast %283 : vector<8x1xf32> to vector<8x32xf32>
    %285 = arith.divf %280, %284 : vector<8x32xf32>
    %286 = vector.broadcast %265 : vector<1x32xf32> to vector<8x32xf32>
    %287 = arith.mulf %285, %286 : vector<8x32xf32>
    %288 = vector.broadcast %267 : vector<1x32xf32> to vector<8x32xf32>
    %289 = arith.addf %287, %288 : vector<8x32xf32>
    %c0_114 = arith.constant 0 : index
    %c0_115 = arith.constant 0 : index
    %c0_116 = arith.constant 0 : index
    %290 = vector.load %arg18[%c0_114, %c0_115, %c0_116] : memref<1x32x128xbf16, #tpu.memory_space<vmem>>, vector<1x32x128xbf16>
    %291 = vector.shape_cast %290 : vector<1x32x128xbf16> to vector<32x128xbf16>
    %292 = arith.truncf %289 : vector<8x32xf32> to vector<8x32xbf16>
    %cst_117 = arith.constant dense<0.000000e+00> : vector<8x128xf32>
    %293 = tpu.matmul %292, %291, %cst_117 {dimension_numbers = #tpu.dot_dimension_numbers<[1], [0], [0], [1], [0, 0, 1, 1], [], []>} : vector<8x32xbf16>, vector<32x128xbf16>, vector<8x128xf32> -> vector<8x128xf32>
    %c0_118 = arith.constant 0 : index
    %c0_119 = arith.constant 0 : index
    %c0_120 = arith.constant 0 : index
    %294 = vector.load %arg19[%c0_118, %c0_119, %c0_120] : memref<1x1x128xf32, #tpu.memory_space<vmem>>, vector<1x1x128xf32>
    %295 = vector.shape_cast %294 : vector<1x1x128xf32> to vector<1x128xf32>
    %296 = vector.broadcast %295 : vector<1x128xf32> to vector<8x128xf32>
    %297 = arith.addf %293, %296 : vector<8x128xf32>
    %cst_121 = arith.constant 0.000000e+00 : f32
    %298 = vector.broadcast %cst_121 : f32 to vector<8x128xf32>
    %299 = arith.maximumf %297, %298 : vector<8x128xf32>
    %c0_122 = arith.constant 0 : index
    %c0_123 = arith.constant 0 : index
    %c0_124 = arith.constant 0 : index
    %300 = vector.load %arg20[%c0_122, %c0_123, %c0_124] : memref<1x128x32xbf16, #tpu.memory_space<vmem>>, vector<1x128x32xbf16>
    %301 = vector.shape_cast %300 : vector<1x128x32xbf16> to vector<128x32xbf16>
    %302 = arith.truncf %299 : vector<8x128xf32> to vector<8x128xbf16>
    %cst_125 = arith.constant dense<0.000000e+00> : vector<8x32xf32>
    %303 = tpu.matmul %302, %301, %cst_125 {dimension_numbers = #tpu.dot_dimension_numbers<[1], [0], [0], [1], [0, 0, 1, 1], [], []>} : vector<8x128xbf16>, vector<128x32xbf16>, vector<8x32xf32> -> vector<8x32xf32>
    %c0_126 = arith.constant 0 : index
    %c0_127 = arith.constant 0 : index
    %c0_128 = arith.constant 0 : index
    %304 = vector.load %arg21[%c0_126, %c0_127, %c0_128] : memref<1x1x32xf32, #tpu.memory_space<vmem>>, vector<1x1x32xf32>
    %305 = vector.shape_cast %304 : vector<1x1x32xf32> to vector<1x32xf32>
    %306 = vector.broadcast %305 : vector<1x32xf32> to vector<8x32xf32>
    %307 = arith.addf %303, %306 : vector<8x32xf32>
    %308 = arith.addf %307, %289 : vector<8x32xf32>
    %c0_129 = arith.constant 0 : index
    %c0_130 = arith.constant 0 : index
    %c0_131 = arith.constant 0 : index
    %309 = vector.load %arg22[%c0_129, %c0_130, %c0_131] : memref<1x1x32xf32, #tpu.memory_space<vmem>>, vector<1x1x32xf32>
    %310 = vector.shape_cast %309 : vector<1x1x32xf32> to vector<1x32xf32>
    %c0_132 = arith.constant 0 : index
    %c0_133 = arith.constant 0 : index
    %c0_134 = arith.constant 0 : index
    %311 = vector.load %arg23[%c0_132, %c0_133, %c0_134] : memref<1x1x32xf32, #tpu.memory_space<vmem>>, vector<1x1x32xf32>
    %312 = vector.shape_cast %311 : vector<1x1x32xf32> to vector<1x32xf32>
    %cst_135 = arith.constant dense<0.000000e+00> : vector<8xf32>
    %313 = vector.multi_reduction <add>, %308, %cst_135 [1] : vector<8x32xf32> to vector<8xf32>
    %314 = vector.shape_cast %313 : vector<8xf32> to vector<8x1xf32>
    %cst_136 = arith.constant 3.200000e+01 : f32
    %315 = vector.broadcast %cst_136 : f32 to vector<8x1xf32>
    %316 = arith.divf %314, %315 : vector<8x1xf32>
    %317 = vector.broadcast %316 : vector<8x1xf32> to vector<8x32xf32>
    %318 = arith.subf %308, %317 : vector<8x32xf32>
    %319 = arith.mulf %318, %318 : vector<8x32xf32>
    %cst_137 = arith.constant dense<0.000000e+00> : vector<8xf32>
    %320 = vector.multi_reduction <add>, %319, %cst_137 [1] : vector<8x32xf32> to vector<8xf32>
    %321 = vector.shape_cast %320 : vector<8xf32> to vector<8x1xf32>
    %cst_138 = arith.constant 3.200000e+01 : f32
    %322 = vector.broadcast %cst_138 : f32 to vector<8x1xf32>
    %323 = arith.divf %321, %322 : vector<8x1xf32>
    %324 = vector.broadcast %316 : vector<8x1xf32> to vector<8x32xf32>
    %325 = arith.subf %308, %324 : vector<8x32xf32>
    %cst_139 = arith.constant 9.99999974E-6 : f32
    %326 = vector.broadcast %cst_139 : f32 to vector<8x1xf32>
    %327 = arith.addf %323, %326 : vector<8x1xf32>
    %328 = math.sqrt %327 : vector<8x1xf32>
    %329 = vector.broadcast %328 : vector<8x1xf32> to vector<8x32xf32>
    %330 = arith.divf %325, %329 : vector<8x32xf32>
    %331 = vector.broadcast %310 : vector<1x32xf32> to vector<8x32xf32>
    %332 = arith.mulf %330, %331 : vector<8x32xf32>
    %333 = vector.broadcast %312 : vector<1x32xf32> to vector<8x32xf32>
    %334 = arith.addf %332, %333 : vector<8x32xf32>
    %c0_140 = arith.constant 0 : index
    %c0_141 = arith.constant 0 : index
    %335 = vector.load %arg27[%c0_140, %c0_141] : memref<8x32xf32, #tpu.memory_space<vmem>>, vector<8x32xf32>
    tpu.vector_store %arg27[%c0_140, %c0_141], %334 {strides = array<i32>} : memref<8x32xf32, #tpu.memory_space<vmem>>, vector<8x32xf32>,
    %c1_i32 = arith.constant 1 : i32
    %336 = arith.cmpi eq, %arg1, %c1_i32 : i32
    %337 = arith.extui %336 : i1 to i32
    %c0_i32_142 = arith.constant 0 : i32
    %338 = arith.cmpi ne, %337, %c0_i32_142 : i32
    scf.if %338 {
      %c0_143 = arith.constant 0 : index
      %c0_144 = arith.constant 0 : index
      %339 = vector.load %arg24[%c0_143, %c0_144] : memref<32x16xbf16, #tpu.memory_space<vmem>>, vector<32x16xbf16>
      %340 = arith.truncf %334 : vector<8x32xf32> to vector<8x32xbf16>
      %cst_145 = arith.constant dense<0.000000e+00> : vector<8x16xf32>
      %341 = tpu.matmul %340, %339, %cst_145 {dimension_numbers = #tpu.dot_dimension_numbers<[1], [0], [0], [1], [0, 0, 1, 1], [], []>} : vector<8x32xbf16>, vector<32x16xbf16>, vector<8x16xf32> -> vector<8x16xf32>
      %c0_146 = arith.constant 0 : index
      %c0_147 = arith.constant 0 : index
      %342 = vector.load %arg25[%c0_146, %c0_147] : memref<1x16xf32, #tpu.memory_space<vmem>>, vector<1x16xf32>
      %343 = vector.broadcast %342 : vector<1x16xf32> to vector<8x16xf32>
      %344 = arith.addf %341, %343 : vector<8x16xf32>
      %c0_148 = arith.constant 0 : index
      %c0_149 = arith.constant 0 : index
      %c0_150 = arith.constant 0 : index
      %345 = vector.load %arg26[%c0_148, %c0_149, %c0_150] : memref<1x8x16xf32, #tpu.memory_space<vmem>>, vector<1x8x16xf32>
      %346 = vector.shape_cast %345 : vector<1x8x16xf32> to vector<8x16xf32>
      %347 = vector.shape_cast %344 : vector<8x16xf32> to vector<1x8x16xf32>
      tpu.vector_store %arg26[%c0_148, %c0_149, %c0_150], %347 {strides = array<i32>} : memref<1x8x16xf32, #tpu.memory_space<vmem>>, vector<1x8x16xf32>,
    } else {
    }
    return
  }
  func.func @transform_0(%arg0: i32, %arg1: i32) -> (i32, i32) {
    %c0_i32 = arith.constant 0 : i32
    %c0_i32_0 = arith.constant 0 : i32
    %c0_i32_1 = arith.constant 0 : i32
    return %c0_i32, %c0_i32_0 : i32, i32
  }
  func.func @transform_1(%arg0: i32, %arg1: i32) -> (i32, i32, i32) {
    %c0_i32 = arith.constant 0 : i32
    %c0_i32_0 = arith.constant 0 : i32
    %c0_i32_1 = arith.constant 0 : i32
    return %arg0, %c0_i32, %c0_i32_0 : i32, i32, i32
  }
  func.func @transform_2(%arg0: i32, %arg1: i32) -> (i32, i32, i32, i32) {
    %c0_i32 = arith.constant 0 : i32
    %c0_i32_0 = arith.constant 0 : i32
    %c0_i32_1 = arith.constant 0 : i32
    %c0_i32_2 = arith.constant 0 : i32
    return %arg0, %c0_i32, %c0_i32_0, %c0_i32_1 : i32, i32, i32, i32
  }
  func.func @transform_3(%arg0: i32, %arg1: i32) -> (i32, i32, i32, i32) {
    %c0_i32 = arith.constant 0 : i32
    %c0_i32_0 = arith.constant 0 : i32
    %c0_i32_1 = arith.constant 0 : i32
    %c0_i32_2 = arith.constant 0 : i32
    return %arg0, %c0_i32, %c0_i32_0, %c0_i32_1 : i32, i32, i32, i32
  }
  func.func @transform_4(%arg0: i32, %arg1: i32) -> (i32, i32, i32) {
    %c0_i32 = arith.constant 0 : i32
    %c0_i32_0 = arith.constant 0 : i32
    %c0_i32_1 = arith.constant 0 : i32
    return %arg1, %c0_i32, %c0_i32_0 : i32, i32, i32
  }
  func.func @transform_5(%arg0: i32, %arg1: i32) -> (i32, i32, i32) {
    %c0_i32 = arith.constant 0 : i32
    %c0_i32_0 = arith.constant 0 : i32
    %c0_i32_1 = arith.constant 0 : i32
    return %arg1, %c0_i32, %c0_i32_0 : i32, i32, i32
  }
  func.func @transform_6(%arg0: i32, %arg1: i32) -> (i32, i32, i32) {
    %c0_i32 = arith.constant 0 : i32
    %c0_i32_0 = arith.constant 0 : i32
    %c0_i32_1 = arith.constant 0 : i32
    return %arg1, %c0_i32, %c0_i32_0 : i32, i32, i32
  }
  func.func @transform_7(%arg0: i32, %arg1: i32) -> (i32, i32, i32) {
    %c0_i32 = arith.constant 0 : i32
    %c0_i32_0 = arith.constant 0 : i32
    %c0_i32_1 = arith.constant 0 : i32
    return %arg1, %c0_i32, %c0_i32_0 : i32, i32, i32
  }
  func.func @transform_8(%arg0: i32, %arg1: i32) -> (i32, i32, i32) {
    %c0_i32 = arith.constant 0 : i32
    %c0_i32_0 = arith.constant 0 : i32
    %c0_i32_1 = arith.constant 0 : i32
    return %arg1, %c0_i32, %c0_i32_0 : i32, i32, i32
  }
  func.func @transform_9(%arg0: i32, %arg1: i32) -> (i32, i32, i32) {
    %c0_i32 = arith.constant 0 : i32
    %c0_i32_0 = arith.constant 0 : i32
    %c0_i32_1 = arith.constant 0 : i32
    return %arg1, %c0_i32, %c0_i32_0 : i32, i32, i32
  }
  func.func @transform_10(%arg0: i32, %arg1: i32) -> (i32, i32, i32) {
    %c0_i32 = arith.constant 0 : i32
    %c0_i32_0 = arith.constant 0 : i32
    %c0_i32_1 = arith.constant 0 : i32
    return %arg1, %c0_i32, %c0_i32_0 : i32, i32, i32
  }
  func.func @transform_11(%arg0: i32, %arg1: i32) -> (i32, i32, i32) {
    %c0_i32 = arith.constant 0 : i32
    %c0_i32_0 = arith.constant 0 : i32
    %c0_i32_1 = arith.constant 0 : i32
    return %arg1, %c0_i32, %c0_i32_0 : i32, i32, i32
  }
  func.func @transform_12(%arg0: i32, %arg1: i32) -> (i32, i32, i32) {
    %c0_i32 = arith.constant 0 : i32
    %c0_i32_0 = arith.constant 0 : i32
    %c0_i32_1 = arith.constant 0 : i32
    return %arg1, %c0_i32, %c0_i32_0 : i32, i32, i32
  }
  func.func @transform_13(%arg0: i32, %arg1: i32) -> (i32, i32, i32) {
    %c0_i32 = arith.constant 0 : i32
    %c0_i32_0 = arith.constant 0 : i32
    %c0_i32_1 = arith.constant 0 : i32
    return %arg1, %c0_i32, %c0_i32_0 : i32, i32, i32
  }
  func.func @transform_14(%arg0: i32, %arg1: i32) -> (i32, i32, i32) {
    %c0_i32 = arith.constant 0 : i32
    %c0_i32_0 = arith.constant 0 : i32
    %c0_i32_1 = arith.constant 0 : i32
    return %arg1, %c0_i32, %c0_i32_0 : i32, i32, i32
  }
  func.func @transform_15(%arg0: i32, %arg1: i32) -> (i32, i32, i32) {
    %c0_i32 = arith.constant 0 : i32
    %c0_i32_0 = arith.constant 0 : i32
    %c0_i32_1 = arith.constant 0 : i32
    return %arg1, %c0_i32, %c0_i32_0 : i32, i32, i32
  }
  func.func @transform_16(%arg0: i32, %arg1: i32) -> (i32, i32, i32) {
    %c0_i32 = arith.constant 0 : i32
    %c0_i32_0 = arith.constant 0 : i32
    %c0_i32_1 = arith.constant 0 : i32
    return %arg1, %c0_i32, %c0_i32_0 : i32, i32, i32
  }
  func.func @transform_17(%arg0: i32, %arg1: i32) -> (i32, i32, i32) {
    %c0_i32 = arith.constant 0 : i32
    %c0_i32_0 = arith.constant 0 : i32
    %c0_i32_1 = arith.constant 0 : i32
    return %arg1, %c0_i32, %c0_i32_0 : i32, i32, i32
  }
  func.func @transform_18(%arg0: i32, %arg1: i32) -> (i32, i32, i32) {
    %c0_i32 = arith.constant 0 : i32
    %c0_i32_0 = arith.constant 0 : i32
    %c0_i32_1 = arith.constant 0 : i32
    return %arg1, %c0_i32, %c0_i32_0 : i32, i32, i32
  }
  func.func @transform_19(%arg0: i32, %arg1: i32) -> (i32, i32, i32) {
    %c0_i32 = arith.constant 0 : i32
    %c0_i32_0 = arith.constant 0 : i32
    %c0_i32_1 = arith.constant 0 : i32
    return %arg1, %c0_i32, %c0_i32_0 : i32, i32, i32
  }
  func.func @transform_20(%arg0: i32, %arg1: i32) -> (i32, i32, i32) {
    %c0_i32 = arith.constant 0 : i32
    %c0_i32_0 = arith.constant 0 : i32
    %c0_i32_1 = arith.constant 0 : i32
    return %arg1, %c0_i32, %c0_i32_0 : i32, i32, i32
  }
  func.func @transform_21(%arg0: i32, %arg1: i32) -> (i32, i32, i32) {
    %c0_i32 = arith.constant 0 : i32
    %c0_i32_0 = arith.constant 0 : i32
    %c0_i32_1 = arith.constant 0 : i32
    return %arg1, %c0_i32, %c0_i32_0 : i32, i32, i32
  }
  func.func @transform_22(%arg0: i32, %arg1: i32) -> (i32, i32) {
    %c0_i32 = arith.constant 0 : i32
    %c0_i32_0 = arith.constant 0 : i32
    %c0_i32_1 = arith.constant 0 : i32
    return %c0_i32, %c0_i32_0 : i32, i32
  }
  func.func @transform_23(%arg0: i32, %arg1: i32) -> (i32, i32) {
    %c0_i32 = arith.constant 0 : i32
    %c0_i32_0 = arith.constant 0 : i32
    %c0_i32_1 = arith.constant 0 : i32
    return %c0_i32, %c0_i32_0 : i32, i32
  }
  func.func @transform_24(%arg0: i32, %arg1: i32) -> (i32, i32, i32) {
    %c0_i32 = arith.constant 0 : i32
    %c0_i32_0 = arith.constant 0 : i32
    %c0_i32_1 = arith.constant 0 : i32
    return %arg0, %c0_i32, %c0_i32_0 : i32, i32, i32
  }
}

</mosaic_0001>

<llo_original>
// kernel: decoder_forward.1
$region0: #{decoder_forward.1}
  #allocation0 [shape = 'u32[]', space=smem, size = 0x4, offset = 0x4, fixed_abs, tag = 'smem constant byte address 0x4 - core index']
  #allocation1 [shape = 'u32[144,128]{1,0:T(1,128)}', space=vmem, size = 0x12000, scoped, tag = 'internal scratch']
  #allocation2 [shape = 'f32[8,32]{1,0:T(8,128)}', space=vmem, size = 0x1000, scoped, tag = 'scratch operand']
  %s0 = inlined_call_operand.vmem [shape: f32[8,32], index: 0, kind: input, shape index: {}]
  %s1 = inlined_call_operand.vmem [shape: f32[2,8,32], index: 1, kind: input, shape index: {}]
  %s2 = inlined_call_operand.vmem [shape: f32[2,1,8,8], index: 2, kind: input, shape index: {}]
  %s3 = inlined_call_operand.vmem [shape: f32[2,1,1,8], index: 3, kind: input, shape index: {}]
  %s4 = inlined_call_operand.vmem [shape: bf16[2,32,32], index: 4, kind: input, shape index: {}]
  %s5 = inlined_call_operand.vmem [shape: bf16[2,32,64], index: 5, kind: input, shape index: {}]
  %s6 = inlined_call_operand.vmem [shape: bf16[2,32,32], index: 6, kind: input, shape index: {}]
  %s7 = inlined_call_operand.vmem [shape: f32[2,1,32], index: 7, kind: input, shape index: {}]
  %s8 = inlined_call_operand.vmem [shape: f32[2,1,32], index: 8, kind: input, shape index: {}]
  %s9 = inlined_call_operand.hbm [shape: f32[2,1,32], index: 9, kind: input, shape index: {}]
  %s10 = inlined_call_operand.vmem [shape: bf16[2,32,32], index: 10, kind: input, shape index: {}]
  %s11 = inlined_call_operand.vmem [shape: bf16[2,32,64], index: 11, kind: input, shape index: {}]
  %s12 = inlined_call_operand.hbm [shape: bf16[2,32,32], index: 12, kind: input, shape index: {}]
  %s13 = inlined_call_operand.vmem [shape: f32[2,1,32], index: 13, kind: input, shape index: {}]
  %s14 = inlined_call_operand.vmem [shape: f32[2,1,32], index: 14, kind: input, shape index: {}]
  %s15 = inlined_call_operand.hbm [shape: f32[2,1,32], index: 15, kind: input, shape index: {}]
  %s16 = inlined_call_operand.hbm [shape: bf16[2,32,128], index: 16, kind: input, shape index: {}]
  %s17 = inlined_call_operand.hbm [shape: f32[2,1,128], index: 17, kind: input, shape index: {}]
  %s18 = inlined_call_operand.vmem [shape: bf16[2,128,32], index: 18, kind: input, shape index: {}]
  %s19 = inlined_call_operand.hbm [shape: f32[2,1,32], index: 19, kind: input, shape index: {}]
  %s20 = inlined_call_operand.vmem [shape: f32[2,1,32], index: 20, kind: input, shape index: {}]
  %s21 = inlined_call_operand.hbm [shape: f32[2,1,32], index: 21, kind: input, shape index: {}]
  %s22 = inlined_call_operand.vmem [shape: bf16[32,16], index: 22, kind: input, shape index: {}]
  %s23 = inlined_call_operand.vmem [shape: f32[1,16], index: 23, kind: input, shape index: {}]
  %s24 = inlined_call_operand.hbm [shape: f32[2,8,16], index: 24, kind: output, shape index: {}]
  %s25 = sld [smem:[#allocation0]]
  $region165: #{decoder_forward.1} parent=0
    _
  %s27 = ssub.s32 1, %s25
  %s28 = scalar_select 0, %s27, %s25
  $region1: #{decoder_forward.1} parent=0
    #allocation3 [shape = 'u8[1024]{0}', space=vmem, size = 0x400, scoped, tag = 'input window, operand 9']
    #allocation4 [shape = 's32[2]{0}', space=sflag, size = 0x8, scoped, tag = 'scoped memory for decoder_forward.1']
    #allocation5 [shape = 's32[2]{0}', space=sflag, size = 0x8, scoped, tag = 'scoped memory for decoder_forward.1']
    #allocation6 [shape = 'u8[16384]{0}', space=vmem, size = 0x4000, scoped, tag = 'input window, operand 12']
    #allocation7 [shape = 's32[2]{0}', space=sflag, size = 0x8, scoped, tag = 'scoped memory for decoder_forward.1']
    #allocation8 [shape = 'u8[1024]{0}', space=vmem, size = 0x400, scoped, tag = 'input window, operand 15']
    #allocation9 [shape = 'u8[16384]{0}', space=vmem, size = 0x4000, scoped, tag = 'input window, operand 16']
    #allocation10 [shape = 's32[2]{0}', space=sflag, size = 0x8, scoped, tag = 'scoped memory for decoder_forward.1']
    #allocation11 [shape = 'u8[1024]{0}', space=vmem, size = 0x400, scoped, tag = 'input window, operand 17']
    #allocation12 [shape = 'u8[1024]{0}', space=vmem, size = 0x400, scoped, tag = 'input window, operand 19']
    #allocation13 [shape = 's32[2]{0}', space=sflag, size = 0x8, scoped, tag = 'scoped memory for decoder_forward.1']
    #allocation14 [shape = 'u8[1024]{0}', space=vmem, size = 0x400, scoped, tag = 'input window, operand 21']
    #allocation15 [shape = 'u8[8192]{0}', space=vmem, size = 0x2000, scoped, tag = 'output window, operand 0']
    %29 = vsyncpa [#allocation4], 0
    %s30 = scalar_lea.sflag [#allocation4], 1
    %31 = vsyncpa %s30, 0
    %32 = vsyncpa [#allocation7], 0
    %s33 = scalar_lea.sflag [#allocation7], 1
    %34 = vsyncpa %s33, 0
    %35 = vsyncpa [#allocation10], 0
    %s36 = scalar_lea.sflag [#allocation10], 1
    %37 = vsyncpa %s36, 0
    %38 = vsyncpa [#allocation13], 0
    %s39 = scalar_lea.sflag [#allocation13], 1
    %40 = vsyncpa %s39, 0
    %41 = vsyncpa [#allocation5], 0
    %s42 = scalar_lea.sflag [#allocation5], 1
    %43 = vsyncpa %s42, 0
    loop: start=0, step=1, limit=6
    $region2: #{decoder_forward.1} parent=1 // loop_pre_header
      _
    $region3: #{decoder_forward.1} parent=1 // loop_header
      %s45 = sphi 0, %s49
      %p46 = scmp.ge.s32.totalorder %s45, 6
      %s52 = sphi 0, %s64
      %s53 = sphi 0, %s60
      %s54 = sphi 0, %s52
      %s55 = sphi 0, %s53
      %s56 = sphi 0, %s54
      %s57 = sphi 0, %s55
      %s65 = sphi 0, %s65
      %s67 = sphi 0, %s65
      %s68 = sphi 0, %s67
      %s82 = sphi 0, %s68
      %s88 = sphi 0, %s90
      %s91 = sphi 0, %s88
      %s92 = sphi 0, %s91
      %s108 = sphi 0, %s92
      %s114 = sphi 0, %s116
      %s117 = sphi 0, %s114
      %s118 = sphi 0, %s117
      %s134 = sphi 0, %s118
      %s140 = sphi 0, %s142
      %s143 = sphi 0, %s140
      %s144 = sphi 0, %s143
      %s160 = sphi 0, %s144
      %s166 = sphi 0, %s168
      %s169 = sphi 0, %s166
      %s170 = sphi 0, %s169
      %s186 = sphi 0, %s170
      %s192 = sphi 0, %s194
      %s195 = sphi 0, %s192
      %s196 = sphi 0, %s195
      %s212 = sphi 0, %s196
      %s218 = sphi 0, %s220
      %s221 = sphi 0, %s218
      %s222 = sphi 0, %s221
      %s238 = sphi 0, %s222
      %s244 = sphi 0, %s246
      %s247 = sphi 0, %s244
      %s248 = sphi 0, %s247
      %s264 = sphi 0, %s248
      %s270 = sphi 0, %s272
      %s273 = sphi 0, %s270
      %s274 = sphi 0, %s273
      %s290 = sphi 0, %s274
      %s296 = sphi 0, %s298
      %s299 = sphi 0, %s296
      %s300 = sphi 0, %s299
      %s316 = sphi 0, %s300
      %s322 = sphi 0, %s324
      %s325 = sphi 0, %s322
      %s326 = sphi 0, %s325
      %s342 = sphi 0, %s326
      %s348 = sphi 0, %s350
      %s351 = sphi 0, %s348
      %s352 = sphi 0, %s351
      %s368 = sphi 0, %s352
      %s374 = sphi 0, %s376
      %s377 = sphi 0, %s374
      %s378 = sphi 0, %s377
      %s394 = sphi 0, %s378
      %s400 = sphi 0, %s402
      %s403 = sphi 0, %s400
      %s404 = sphi 0, %s403
      %s420 = sphi 0, %s404
      %s426 = sphi 0, %s428
      %s429 = sphi 0, %s426
      %s430 = sphi 0, %s429
      %s446 = sphi 0, %s430
      %s452 = sphi 0, %s454
      %s455 = sphi 0, %s452
      %s456 = sphi 0, %s455
      %s472 = sphi 0, %s456
      %s478 = sphi 0, %s480
      %s481 = sphi 0, %s478
      %s482 = sphi 0, %s481
      %s498 = sphi 0, %s482
      %s504 = sphi 0, %s506
      %s507 = sphi 0, %s504
      %s508 = sphi 0, %s507
      %s524 = sphi 0, %s508
      %s530 = sphi 0, %s532
      %s533 = sphi 0, %s530
      %s534 = sphi 0, %s533
      %s550 = sphi 0, %s534
      %s556 = sphi 0, %s558
      %s559 = sphi 0, %s556
      %s560 = sphi 0, %s559
      %s576 = sphi 0, %s560
      %s582 = sphi 0, %s584
      %s585 = sphi 0, %s582
      %s586 = sphi 0, %s585
      %s602 = sphi 0, %s586
      %s608 = sphi 0, %s610
      %s611 = sphi 0, %s608
      %s612 = sphi 0, %s611
      %s628 = sphi 0, %s612
      %s632 = sphi 0, %s632
      %s634 = sphi 0, %s632
      %s635 = sphi 0, %s634
      %s649 = sphi 0, %s635
      %s653 = sphi 0, %s653
      %s655 = sphi 0, %s653
      %s656 = sphi 0, %s655
      %s670 = sphi 0, %s656
      %s676 = sphi 0, %s678
      %s679 = sphi 0, %s676
      %s680 = sphi 0, %s679
      %s696 = sphi 0, %s680
    $region4: #{decoder_forward.1} parent=1 // loop_header_branch
      %48 = sbr.rel (%p46) target = $region8
    $region5: #{decoder_forward.1} parent=1 // loop_body
      %s50 = ssub.s32 %s45, 1
      %s51 = ssub.s32 %s45, 2
      %s58 = sadd.s32 1, %s53
      %p59 = scmp.ge.s32.totalorder %s58, 2
      %s60 = scalar_select %p59, 0, %s58
      %s61 = sadd.s32 1, %s52
      %s62 = scalar_select %p59, %s61, %s52
      %p63 = scmp.ge.s32.totalorder %s62, 2
      %s64 = scalar_select %p63, 0, %s62
      %s66 = sadd.s32 %s65, 1
      %p69 = scmp.eq.s32.totalorder %s45, 3
      %p70 = scmp.ne.s32.totalorder %s65, %s67
      %p71 = scmp.eq.s32.totalorder %s45, 0
      %p72 = por %p70, %p71
      %p73 = scmp.ne.s32.totalorder %s65, %s67
      %p74 = scmp.eq.s32.totalorder %s50, 3
      %p75 = por %p73, %p74
      %p76 = scmp.ne.s32.totalorder %s67, %s68
      %p77 = scmp.eq.s32.totalorder %s50, 0
      %p78 = por %p76, %p77
      %p79 = scmp.ne.s32.totalorder %s67, %s68
      %p80 = scmp.eq.s32.totalorder %s51, 3
      %p81 = por %p79, %p80
      %p83 = scmp.ne.s32.totalorder %s68, %s82
      %p84 = scmp.eq.s32.totalorder %s51, 0
      %p85 = por %p83, %p84
      %s86 = ssub.s32 %s52, %s64
      %p87 = scmp.eq.s32.totalorder %s86, 0
      %s89 = sadd.s32 %s88, 1
      %s90 = scalar_select %p87, %s88, %s89
      %p93 = pneg %p87
      %p94 = scmp.eq.s32.totalorder %s45, 3
      %p95 = por %p93, %p94
      %p96 = scmp.ne.s32.totalorder %s88, %s91
      %p97 = scmp.eq.s32.totalorder %s45, 0
      %p98 = por %p96, %p97
      %p99 = scmp.ne.s32.totalorder %s88, %s91
      %p100 = scmp.eq.s32.totalorder %s50, 3
      %p101 = por %p99, %p100
      %p102 = scmp.ne.s32.totalorder %s91, %s92
      %p103 = scmp.eq.s32.totalorder %s50, 0
      %p104 = por %p102, %p103
      %p105 = scmp.ne.s32.totalorder %s91, %s92
      %p106 = scmp.eq.s32.totalorder %s51, 3
      %p107 = por %p105, %p106
      %p109 = scmp.ne.s32.totalorder %s92, %s108
      %p110 = scmp.eq.s32.totalorder %s51, 0
      %p111 = por %p109, %p110
      %s112 = ssub.s32 %s52, %s64
      %p113 = scmp.eq.s32.totalorder %s112, 0
      %s115 = sadd.s32 %s114, 1
      %s116 = scalar_select %p113, %s114, %s115
      %p119 = pneg %p113
      %p120 = scmp.eq.s32.totalorder %s45, 3
      %p121 = por %p119, %p120
      %p122 = scmp.ne.s32.totalorder %s114, %s117
      %p123 = scmp.eq.s32.totalorder %s45, 0
      %p124 = por %p122, %p123
      %p125 = scmp.ne.s32.totalorder %s114, %s117
      %p126 = scmp.eq.s32.totalorder %s50, 3
      %p127 = por %p125, %p126
      %p128 = scmp.ne.s32.totalorder %s117, %s118
      %p129 = scmp.eq.s32.totalorder %s50, 0
      %p130 = por %p128, %p129
      %p131 = scmp.ne.s32.totalorder %s117, %s118
      %p132 = scmp.eq.s32.totalorder %s51, 3
      %p133 = por %p131, %p132
      %p135 = scmp.ne.s32.totalorder %s118, %s134
      %p136 = scmp.eq.s32.totalorder %s51, 0
      %p137 = por %p135, %p136
      %s138 = ssub.s32 %s52, %s64
      %p139 = scmp.eq.s32.totalorder %s138, 0
      %s141 = sadd.s32 %s140, 1
      %s142 = scalar_select %p139, %s140, %s141
      %p145 = pneg %p139
      %p146 = scmp.eq.s32.totalorder %s45, 3
      %p147 = por %p145, %p146
      %p148 = scmp.ne.s32.totalorder %s140, %s143
      %p149 = scmp.eq.s32.totalorder %s45, 0
      %p150 = por %p148, %p149
      %p151 = scmp.ne.s32.totalorder %s140, %s143
      %p152 = scmp.eq.s32.totalorder %s50, 3
      %p153 = por %p151, %p152
      %p154 = scmp.ne.s32.totalorder %s143, %s144
      %p155 = scmp.eq.s32.totalorder %s50, 0
      %p156 = por %p154, %p155
      %p157 = scmp.ne.s32.totalorder %s143, %s144
      %p158 = scmp.eq.s32.totalorder %s51, 3
      %p159 = por %p157, %p158
      %p161 = scmp.ne.s32.totalorder %s144, %s160
      %p162 = scmp.eq.s32.totalorder %s51, 0
      %p163 = por %p161, %p162
      %s164 = ssub.s32 %s53, %s60
      %p165 = scmp.eq.s32.totalorder %s164, 0
      %s167 = sadd.s32 %s166, 1
      %s168 = scalar_select %p165, %s166, %s167
      %p171 = pneg %p165
      %p172 = scmp.eq.s32.totalorder %s45, 3
      %p173 = por %p171, %p172
      %p174 = scmp.ne.s32.totalorder %s166, %s169
      %p175 = scmp.eq.s32.totalorder %s45, 0
      %p176 = por %p174, %p175
      %p177 = scmp.ne.s32.totalorder %s166, %s169
      %p178 = scmp.eq.s32.totalorder %s50, 3
      %p179 = por %p177, %p178
      %p180 = scmp.ne.s32.totalorder %s169, %s170
      %p181 = scmp.eq.s32.totalorder %s50, 0
      %p182 = por %p180, %p181
      %p183 = scmp.ne.s32.totalorder %s169, %s170
      %p184 = scmp.eq.s32.totalorder %s51, 3
      %p185 = por %p183, %p184
      %p187 = scmp.ne.s32.totalorder %s170, %s186
      %p188 = scmp.eq.s32.totalorder %s51, 0
      %p189 = por %p187, %p188
      %s190 = ssub.s32 %s53, %s60
      %p191 = scmp.eq.s32.totalorder %s190, 0
      %s193 = sadd.s32 %s192, 1
      %s194 = scalar_select %p191, %s192, %s193
      %p197 = pneg %p191
      %p198 = scmp.eq.s32.totalorder %s45, 3
      %p199 = por %p197, %p198
      %p200 = scmp.ne.s32.totalorder %s192, %s195
      %p201 = scmp.eq.s32.totalorder %s45, 0
      %p202 = por %p200, %p201
      %p203 = scmp.ne.s32.totalorder %s192, %s195
      %p204 = scmp.eq.s32.totalorder %s50, 3
      %p205 = por %p203, %p204
      %p206 = scmp.ne.s32.totalorder %s195, %s196
      %p207 = scmp.eq.s32.totalorder %s50, 0
      %p208 = por %p206, %p207
      %p209 = scmp.ne.s32.totalorder %s195, %s196
      %p210 = scmp.eq.s32.totalorder %s51, 3
      %p211 = por %p209, %p210
      %p213 = scmp.ne.s32.totalorder %s196, %s212
      %p214 = scmp.eq.s32.totalorder %s51, 0
      %p215 = por %p213, %p214
      %s216 = ssub.s32 %s53, %s60
      %p217 = scmp.eq.s32.totalorder %s216, 0
      %s219 = sadd.s32 %s218, 1
      %s220 = scalar_select %p217, %s218, %s219
      %p223 = pneg %p217
      %p224 = scmp.eq.s32.totalorder %s45, 3
      %p225 = por %p223, %p224
      %p226 = scmp.ne.s32.totalorder %s218, %s221
      %p227 = scmp.eq.s32.totalorder %s45, 0
      %p228 = por %p226, %p227
      %p229 = scmp.ne.s32.totalorder %s218, %s221
      %p230 = scmp.eq.s32.totalorder %s50, 3
      %p231 = por %p229, %p230
      %p232 = scmp.ne.s32.totalorder %s221, %s222
      %p233 = scmp.eq.s32.totalorder %s50, 0
      %p234 = por %p232, %p233
      %p235 = scmp.ne.s32.totalorder %s221, %s222
      %p236 = scmp.eq.s32.totalorder %s51, 3
      %p237 = por %p235, %p236
      %p239 = scmp.ne.s32.totalorder %s222, %s238
      %p240 = scmp.eq.s32.totalorder %s51, 0
      %p241 = por %p239, %p240
      %s242 = ssub.s32 %s53, %s60
      %p243 = scmp.eq.s32.totalorder %s242, 0
      %s245 = sadd.s32 %s244, 1
      %s246 = scalar_select %p243, %s244, %s245
      %p249 = pneg %p243
      %p250 = scmp.eq.s32.totalorder %s45, 3
      %p251 = por %p249, %p250
      %p252 = scmp.ne.s32.totalorder %s244, %s247
      %p253 = scmp.eq.s32.totalorder %s45, 0
      %p254 = por %p252, %p253
      %p255 = scmp.ne.s32.totalorder %s244, %s247
      %p256 = scmp.eq.s32.totalorder %s50, 3
      %p257 = por %p255, %p256
      %p258 = scmp.ne.s32.totalorder %s247, %s248
      %p259 = scmp.eq.s32.totalorder %s50, 0
      %p260 = por %p258, %p259
      %p261 = scmp.ne.s32.totalorder %s247, %s248
      %p262 = scmp.eq.s32.totalorder %s51, 3
      %p263 = por %p261, %p262
      %p265 = scmp.ne.s32.totalorder %s248, %s264
      %p266 = scmp.eq.s32.totalorder %s51, 0
      %p267 = por %p265, %p266
      %s268 = ssub.s32 %s53, %s60
      %p269 = scmp.eq.s32.totalorder %s268, 0
      %s271 = sadd.s32 %s270, 1
      %s272 = scalar_select %p269, %s270, %s271
      %p275 = pneg %p269
      %p276 = scmp.eq.s32.totalorder %s45, 3
      %p277 = por %p275, %p276
      %p278 = scmp.ne.s32.totalorder %s270, %s273
      %p279 = scmp.eq.s32.totalorder %s45, 0
      %p280 = por %p278, %p279
      %p281 = scmp.ne.s32.totalorder %s270, %s273
      %p282 = scmp.eq.s32.totalorder %s50, 3
      %p283 = por %p281, %p282
      %p284 = scmp.ne.s32.totalorder %s273, %s274
      %p285 = scmp.eq.s32.totalorder %s50, 0
      %p286 = por %p284, %p285
      %p287 = scmp.ne.s32.totalorder %s273, %s274
      %p288 = scmp.eq.s32.totalorder %s51, 3
      %p289 = por %p287, %p288
      %p291 = scmp.ne.s32.totalorder %s274, %s290
      %p292 = scmp.eq.s32.totalorder %s51, 0
      %p293 = por %p291, %p292
      %s294 = ssub.s32 %s53, %s60
      %p295 = scmp.eq.s32.totalorder %s294, 0
      %s297 = sadd.s32 %s296, 1
      %s298 = scalar_select %p295, %s296, %s297
      %p301 = pneg %p295
      %p302 = scmp.eq.s32.totalorder %s45, 3
      %p303 = por %p301, %p302
      %p304 = scmp.ne.s32.totalorder %s296, %s299
      %p305 = scmp.eq.s32.totalorder %s45, 0
      %p306 = por %p304, %p305
      %p307 = scmp.ne.s32.totalorder %s296, %s299
      %p308 = scmp.eq.s32.totalorder %s50, 3
      %p309 = por %p307, %p308
      %p310 = scmp.ne.s32.totalorder %s299, %s300
      %p311 = scmp.eq.s32.totalorder %s50, 0
      %p312 = por %p310, %p311
      %p313 = scmp.ne.s32.totalorder %s299, %s300
      %p314 = scmp.eq.s32.totalorder %s51, 3
      %p315 = por %p313, %p314
      %p317 = scmp.ne.s32.totalorder %s300, %s316
      %p318 = scmp.eq.s32.totalorder %s51, 0
      %p319 = por %p317, %p318
      %s320 = ssub.s32 %s53, %s60
      %p321 = scmp.eq.s32.totalorder %s320, 0
      %s323 = sadd.s32 %s322, 1
      %s324 = scalar_select %p321, %s322, %s323
      %p327 = pneg %p321
      %p328 = scmp.eq.s32.totalorder %s45, 3
      %p329 = por %p327, %p328
      %p330 = scmp.ne.s32.totalorder %s322, %s325
      %p331 = scmp.eq.s32.totalorder %s45, 0
      %p332 = por %p330, %p331
      %p333 = scmp.ne.s32.totalorder %s322, %s325
      %p334 = scmp.eq.s32.totalorder %s50, 3
      %p335 = por %p333, %p334
      %p336 = scmp.ne.s32.totalorder %s325, %s326
      %p337 = scmp.eq.s32.totalorder %s50, 0
      %p338 = por %p336, %p337
      %p339 = scmp.ne.s32.totalorder %s325, %s326
      %p340 = scmp.eq.s32.totalorder %s51, 3
      %p341 = por %p339, %p340
      %p343 = scmp.ne.s32.totalorder %s326, %s342
      %p344 = scmp.eq.s32.totalorder %s51, 0
      %p345 = por %p343, %p344
      %s346 = ssub.s32 %s53, %s60
      %p347 = scmp.eq.s32.totalorder %s346, 0
      %s349 = sadd.s32 %s348, 1
      %s350 = scalar_select %p347, %s348, %s349
      %p353 = pneg %p347
      %p354 = scmp.eq.s32.totalorder %s45, 3
      %p355 = por %p353, %p354
      %p356 = scmp.ne.s32.totalorder %s348, %s351
      %p357 = scmp.eq.s32.totalorder %s45, 0
      %p358 = por %p356, %p357
      %p359 = scmp.ne.s32.totalorder %s348, %s351
      %p360 = scmp.eq.s32.totalorder %s50, 3
      %p361 = por %p359, %p360
      %p362 = scmp.ne.s32.totalorder %s351, %s352
      %p363 = scmp.eq.s32.totalorder %s50, 0
      %p364 = por %p362, %p363
      %p365 = scmp.ne.s32.totalorder %s351, %s352
      %p366 = scmp.eq.s32.totalorder %s51, 3
      %p367 = por %p365, %p366
      %p369 = scmp.ne.s32.totalorder %s352, %s368
      %p370 = scmp.eq.s32.totalorder %s51, 0
      %p371 = por %p369, %p370
      %s372 = ssub.s32 %s53, %s60
      %p373 = scmp.eq.s32.totalorder %s372, 0
      %s375 = sadd.s32 %s374, 1
      %s376 = scalar_select %p373, %s374, %s375
      %p379 = pneg %p373
      %p380 = scmp.eq.s32.totalorder %s45, 3
      %p381 = por %p379, %p380
      %p382 = scmp.ne.s32.totalorder %s374, %s377
      %p383 = scmp.eq.s32.totalorder %s45, 0
      %p384 = por %p382, %p383
      %p385 = scmp.ne.s32.totalorder %s374, %s377
      %p386 = scmp.eq.s32.totalorder %s50, 3
      %p387 = por %p385, %p386
      %p388 = scmp.ne.s32.totalorder %s377, %s378
      %p389 = scmp.eq.s32.totalorder %s50, 0
      %p390 = por %p388, %p389
      %p391 = scmp.ne.s32.totalorder %s377, %s378
      %p392 = scmp.eq.s32.totalorder %s51, 3
      %p393 = por %p391, %p392
      %p395 = scmp.ne.s32.totalorder %s378, %s394
      %p396 = scmp.eq.s32.totalorder %s51, 0
      %p397 = por %p395, %p396
      %s398 = ssub.s32 %s53, %s60
      %p399 = scmp.eq.s32.totalorder %s398, 0
      %s401 = sadd.s32 %s400, 1
      %s402 = scalar_select %p399, %s400, %s401
      %p405 = pneg %p399
      %p406 = scmp.eq.s32.totalorder %s45, 3
      %p407 = por %p405, %p406
      %p408 = scmp.ne.s32.totalorder %s400, %s403
      %p409 = scmp.eq.s32.totalorder %s45, 0
      %p410 = por %p408, %p409
      %p411 = scmp.ne.s32.totalorder %s400, %s403
      %p412 = scmp.eq.s32.totalorder %s50, 3
      %p413 = por %p411, %p412
      %p414 = scmp.ne.s32.totalorder %s403, %s404
      %p415 = scmp.eq.s32.totalorder %s50, 0
      %p416 = por %p414, %p415
      %p417 = scmp.ne.s32.totalorder %s403, %s404
      %p418 = scmp.eq.s32.totalorder %s51, 3
      %p419 = por %p417, %p418
      %p421 = scmp.ne.s32.totalorder %s404, %s420
      %p422 = scmp.eq.s32.totalorder %s51, 0
      %p423 = por %p421, %p422
      %s424 = ssub.s32 %s53, %s60
      %p425 = scmp.eq.s32.totalorder %s424, 0
      %s427 = sadd.s32 %s426, 1
      %s428 = scalar_select %p425, %s426, %s427
      %p431 = pneg %p425
      %p432 = scmp.eq.s32.totalorder %s45, 3
      %p433 = por %p431, %p432
      %p434 = scmp.ne.s32.totalorder %s426, %s429
      %p435 = scmp.eq.s32.totalorder %s45, 0
      %p436 = por %p434, %p435
      %p437 = scmp.ne.s32.totalorder %s426, %s429
      %p438 = scmp.eq.s32.totalorder %s50, 3
      %p439 = por %p437, %p438
      %p440 = scmp.ne.s32.totalorder %s429, %s430
      %p441 = scmp.eq.s32.totalorder %s50, 0
      %p442 = por %p440, %p441
      %p443 = scmp.ne.s32.totalorder %s429, %s430
      %p444 = scmp.eq.s32.totalorder %s51, 3
      %p445 = por %p443, %p444
      %p447 = scmp.ne.s32.totalorder %s430, %s446
      %p448 = scmp.eq.s32.totalorder %s51, 0
      %p449 = por %p447, %p448
      %s450 = ssub.s32 %s53, %s60
      %p451 = scmp.eq.s32.totalorder %s450, 0
      %s453 = sadd.s32 %s452, 1
      %s454 = scalar_select %p451, %s452, %s453
      %p457 = pneg %p451
      %p458 = scmp.eq.s32.totalorder %s45, 3
      %p459 = por %p457, %p458
      %p460 = scmp.ne.s32.totalorder %s452, %s455
      %p461 = scmp.eq.s32.totalorder %s45, 0
      %p462 = por %p460, %p461
      %p463 = scmp.ne.s32.totalorder %s452, %s455
      %p464 = scmp.eq.s32.totalorder %s50, 3
      %p465 = por %p463, %p464
      %p466 = scmp.ne.s32.totalorder %s455, %s456
      %p467 = scmp.eq.s32.totalorder %s50, 0
      %p468 = por %p466, %p467
      %p469 = scmp.ne.s32.totalorder %s455, %s456
      %p470 = scmp.eq.s32.totalorder %s51, 3
      %p471 = por %p469, %p470
      %p473 = scmp.ne.s32.totalorder %s456, %s472
      %p474 = scmp.eq.s32.totalorder %s51, 0
      %p475 = por %p473, %p474
      %s476 = ssub.s32 %s53, %s60
      %p477 = scmp.eq.s32.totalorder %s476, 0
      %s479 = sadd.s32 %s478, 1
      %s480 = scalar_select %p477, %s478, %s479
      %p483 = pneg %p477
      %p484 = scmp.eq.s32.totalorder %s45, 3
      %p485 = por %p483, %p484
      %p486 = scmp.ne.s32.totalorder %s478, %s481
      %p487 = scmp.eq.s32.totalorder %s45, 0
      %p488 = por %p486, %p487
      %p489 = scmp.ne.s32.totalorder %s478, %s481
      %p490 = scmp.eq.s32.totalorder %s50, 3
      %p491 = por %p489, %p490
      %p492 = scmp.ne.s32.totalorder %s481, %s482
      %p493 = scmp.eq.s32.totalorder %s50, 0
      %p494 = por %p492, %p493
      %p495 = scmp.ne.s32.totalorder %s481, %s482
      %p496 = scmp.eq.s32.totalorder %s51, 3
      %p497 = por %p495, %p496
      %p499 = scmp.ne.s32.totalorder %s482, %s498
      %p500 = scmp.eq.s32.totalorder %s51, 0
      %p501 = por %p499, %p500
      %s502 = ssub.s32 %s53, %s60
      %p503 = scmp.eq.s32.totalorder %s502, 0
      %s505 = sadd.s32 %s504, 1
      %s506 = scalar_select %p503, %s504, %s505
      %p509 = pneg %p503
      %p510 = scmp.eq.s32.totalorder %s45, 3
      %p511 = por %p509, %p510
      %p512 = scmp.ne.s32.totalorder %s504, %s507
      %p513 = scmp.eq.s32.totalorder %s45, 0
      %p514 = por %p512, %p513
      %p515 = scmp.ne.s32.totalorder %s504, %s507
      %p516 = scmp.eq.s32.totalorder %s50, 3
      %p517 = por %p515, %p516
      %p518 = scmp.ne.s32.totalorder %s507, %s508
      %p519 = scmp.eq.s32.totalorder %s50, 0
      %p520 = por %p518, %p519
      %p521 = scmp.ne.s32.totalorder %s507, %s508
      %p522 = scmp.eq.s32.totalorder %s51, 3
      %p523 = por %p521, %p522
      %p525 = scmp.ne.s32.totalorder %s508, %s524
      %p526 = scmp.eq.s32.totalorder %s51, 0
      %p527 = por %p525, %p526
      %s528 = ssub.s32 %s53, %s60
      %p529 = scmp.eq.s32.totalorder %s528, 0
      %s531 = sadd.s32 %s530, 1
      %s532 = scalar_select %p529, %s530, %s531
      %p535 = pneg %p529
      %p536 = scmp.eq.s32.totalorder %s45, 3
      %p537 = por %p535, %p536
      %p538 = scmp.ne.s32.totalorder %s530, %s533
      %p539 = scmp.eq.s32.totalorder %s45, 0
      %p540 = por %p538, %p539
      %p541 = scmp.ne.s32.totalorder %s530, %s533
      %p542 = scmp.eq.s32.totalorder %s50, 3
      %p543 = por %p541, %p542
      %p544 = scmp.ne.s32.totalorder %s533, %s534
      %p545 = scmp.eq.s32.totalorder %s50, 0
      %p546 = por %p544, %p545
      %p547 = scmp.ne.s32.totalorder %s533, %s534
      %p548 = scmp.eq.s32.totalorder %s51, 3
      %p549 = por %p547, %p548
      %p551 = scmp.ne.s32.totalorder %s534, %s550
      %p552 = scmp.eq.s32.totalorder %s51, 0
      %p553 = por %p551, %p552
      %s554 = ssub.s32 %s53, %s60
      %p555 = scmp.eq.s32.totalorder %s554, 0
      %s557 = sadd.s32 %s556, 1
      %s558 = scalar_select %p555, %s556, %s557
      %p561 = pneg %p555
      %p562 = scmp.eq.s32.totalorder %s45, 3
      %p563 = por %p561, %p562
      %p564 = scmp.ne.s32.totalorder %s556, %s559
      %p565 = scmp.eq.s32.totalorder %s45, 0
      %p566 = por %p564, %p565
      %p567 = scmp.ne.s32.totalorder %s556, %s559
      %p568 = scmp.eq.s32.totalorder %s50, 3
      %p569 = por %p567, %p568
      %p570 = scmp.ne.s32.totalorder %s559, %s560
      %p571 = scmp.eq.s32.totalorder %s50, 0
      %p572 = por %p570, %p571
      %p573 = scmp.ne.s32.totalorder %s559, %s560
      %p574 = scmp.eq.s32.totalorder %s51, 3
      %p575 = por %p573, %p574
      %p577 = scmp.ne.s32.totalorder %s560, %s576
      %p578 = scmp.eq.s32.totalorder %s51, 0
      %p579 = por %p577, %p578
      %s580 = ssub.s32 %s53, %s60
      %p581 = scmp.eq.s32.totalorder %s580, 0
      %s583 = sadd.s32 %s582, 1
      %s584 = scalar_select %p581, %s582, %s583
      %p587 = pneg %p581
      %p588 = scmp.eq.s32.totalorder %s45, 3
      %p589 = por %p587, %p588
      %p590 = scmp.ne.s32.totalorder %s582, %s585
      %p591 = scmp.eq.s32.totalorder %s45, 0
      %p592 = por %p590, %p591
      %p593 = scmp.ne.s32.totalorder %s582, %s585
      %p594 = scmp.eq.s32.totalorder %s50, 3
      %p595 = por %p593, %p594
      %p596 = scmp.ne.s32.totalorder %s585, %s586
      %p597 = scmp.eq.s32.totalorder %s50, 0
      %p598 = por %p596, %p597
      %p599 = scmp.ne.s32.totalorder %s585, %s586
      %p600 = scmp.eq.s32.totalorder %s51, 3
      %p601 = por %p599, %p600
      %p603 = scmp.ne.s32.totalorder %s586, %s602
      %p604 = scmp.eq.s32.totalorder %s51, 0
      %p605 = por %p603, %p604
      %s606 = ssub.s32 %s53, %s60
      %p607 = scmp.eq.s32.totalorder %s606, 0
      %s609 = sadd.s32 %s608, 1
      %s610 = scalar_select %p607, %s608, %s609
      %p613 = pneg %p607
      %p614 = scmp.eq.s32.totalorder %s45, 3
      %p615 = por %p613, %p614
      %p616 = scmp.ne.s32.totalorder %s608, %s611
      %p617 = scmp.eq.s32.totalorder %s45, 0
      %p618 = por %p616, %p617
      %p619 = scmp.ne.s32.totalorder %s608, %s611
      %p620 = scmp.eq.s32.totalorder %s50, 3
      %p621 = por %p619, %p620
      %p622 = scmp.ne.s32.totalorder %s611, %s612
      %p623 = scmp.eq.s32.totalorder %s50, 0
      %p624 = por %p622, %p623
      %p625 = scmp.ne.s32.totalorder %s611, %s612
      %p626 = scmp.eq.s32.totalorder %s51, 3
      %p627 = por %p625, %p626
      %p629 = scmp.ne.s32.totalorder %s612, %s628
      %p630 = scmp.eq.s32.totalorder %s51, 0
      %p631 = por %p629, %p630
      %s633 = sadd.s32 %s632, 1
      %p636 = scmp.eq.s32.totalorder %s45, 3
      %p637 = scmp.ne.s32.totalorder %s632, %s634
      %p638 = scmp.eq.s32.totalorder %s45, 0
      %p639 = por %p637, %p638
      %p640 = scmp.ne.s32.totalorder %s632, %s634
      %p641 = scmp.eq.s32.totalorder %s50, 3
      %p642 = por %p640, %p641
      %p643 = scmp.ne.s32.totalorder %s634, %s635
      %p644 = scmp.eq.s32.totalorder %s50, 0
      %p645 = por %p643, %p644
      %p646 = scmp.ne.s32.totalorder %s634, %s635
      %p647 = scmp.eq.s32.totalorder %s51, 3
      %p648 = por %p646, %p647
      %p650 = scmp.ne.s32.totalorder %s635, %s649
      %p651 = scmp.eq.s32.totalorder %s51, 0
      %p652 = por %p650, %p651
      %s654 = sadd.s32 %s653, 1
      %p657 = scmp.eq.s32.totalorder %s45, 3
      %p658 = scmp.ne.s32.totalorder %s653, %s655
      %p659 = scmp.eq.s32.totalorder %s45, 0
      %p660 = por %p658, %p659
      %p661 = scmp.ne.s32.totalorder %s653, %s655
      %p662 = scmp.eq.s32.totalorder %s50, 3
      %p663 = por %p661, %p662
      %p664 = scmp.ne.s32.totalorder %s655, %s656
      %p665 = scmp.eq.s32.totalorder %s50, 0
      %p666 = por %p664, %p665
      %p667 = scmp.ne.s32.totalorder %s655, %s656
      %p668 = scmp.eq.s32.totalorder %s51, 3
      %p669 = por %p667, %p668
      %p671 = scmp.ne.s32.totalorder %s656, %s670
      %p672 = scmp.eq.s32.totalorder %s51, 0
      %p673 = por %p671, %p672
      %s674 = ssub.s32 %s52, %s64
      %p675 = scmp.eq.s32.totalorder %s674, 0
      %s677 = sadd.s32 %s676, 1
      %s678 = scalar_select %p675, %s676, %s677
      %p681 = pneg %p675
      %p682 = scmp.eq.s32.totalorder %s45, 3
      %p683 = por %p681, %p682
      %p684 = scmp.ne.s32.totalorder %s676, %s679
      %p685 = scmp.eq.s32.totalorder %s45, 0
      %p686 = por %p684, %p685
      %p687 = scmp.ne.s32.totalorder %s676, %s679
      %p688 = scmp.eq.s32.totalorder %s50, 3
      %p689 = por %p687, %p688
      %p690 = scmp.ne.s32.totalorder %s679, %s680
      %p691 = scmp.eq.s32.totalorder %s50, 0
      %p692 = por %p690, %p691
      %p693 = scmp.ne.s32.totalorder %s679, %s680
      %p694 = scmp.eq.s32.totalorder %s51, 3
      %p695 = por %p693, %p694
      %p697 = scmp.ne.s32.totalorder %s680, %s696
      %p698 = scmp.eq.s32.totalorder %s51, 0
      %p699 = por %p697, %p698
      %p700 = scmp.le.s32.totalorder 1, %s45
      %p701 = scmp.lt.s32.totalorder %s45, 5
      %p702 = pnand %p700, %p701
      %p703 = pneg %p702
      // Predicated region
      $region9: #{decoder_forward.1} parent=5 // pred_check
        _
      $region10: #{decoder_forward.1} parent=5 // pred_check_branch
        %705 = sbr.rel (%p702) target = $region12
      $region11: #{decoder_forward.1} parent=5 // pred_region
        %s706 = ssub.s32 %s45, 1
        // Predicated region
        $region13: #{decoder_forward.1} parent=11 // pred_check
          %p707 = pneg %p78
        $region14: #{decoder_forward.1} parent=11 // pred_check_branch
          %709 = sbr.rel (%p707) target = $region16
        $region15: #{decoder_forward.1} parent=11 // pred_region
          _
        $region16: #{decoder_forward.1} parent=11 // pred_fallthru
          _
        // Predicated region
        $region17: #{decoder_forward.1} parent=11 // pred_check
          %p710 = pneg %p645
        $region18: #{decoder_forward.1} parent=11 // pred_check_branch
          %712 = sbr.rel (%p710) target = $region20
        $region19: #{decoder_forward.1} parent=11 // pred_region
          _
        $region20: #{decoder_forward.1} parent=11 // pred_fallthru
          _
        // Predicated region
        $region21: #{decoder_forward.1} parent=11 // pred_check
          %p713 = pneg %p666
        $region22: #{decoder_forward.1} parent=11 // pred_check_branch
          %715 = sbr.rel (%p713) target = $region24
        $region23: #{decoder_forward.1} parent=11 // pred_region
          _
        $region24: #{decoder_forward.1} parent=11 // pred_fallthru
          _
      $region12: #{decoder_forward.1} parent=5 // pred_fallthru
        _
      %p716 = scmp.lt.s32.totalorder %s45, 4
      // Predicated region
      $region25: #{decoder_forward.1} parent=5 // pred_check
        %p717 = pneg %p716
      $region26: #{decoder_forward.1} parent=5 // pred_check_branch
        %719 = sbr.rel (%p717) target = $region28
      $region27: #{decoder_forward.1} parent=5 // pred_region
        // Predicated region
        $region29: #{decoder_forward.1} parent=27 // pred_check
          %p720 = pneg %p98
        $region30: #{decoder_forward.1} parent=27 // pred_check_branch
          %722 = sbr.rel (%p720) target = $region32
        $region31: #{decoder_forward.1} parent=27 // pred_region
          %p723 = scmp.lt.s32.totalorder %s52, 1
          %s724 = scalar_select %p723, %s52, 1
          %s725 = smul.addr %s724, 8
          %s726 = scalar_lea.vmem %s1, %s725
        $region32: #{decoder_forward.1} parent=27 // pred_fallthru
          _
        // Predicated region
        $region33: #{decoder_forward.1} parent=27 // pred_check
          %p727 = pneg %p124
        $region34: #{decoder_forward.1} parent=27 // pred_check_branch
          %729 = sbr.rel (%p727) target = $region36
        $region35: #{decoder_forward.1} parent=27 // pred_region
          %p730 = scmp.lt.s32.totalorder %s52, 1
          %s731 = scalar_select %p730, %s52, 1
          %s732 = smul.addr %s731, 8
          %s733 = scalar_lea.vmem %s2, %s732
        $region36: #{decoder_forward.1} parent=27 // pred_fallthru
          _
        // Predicated region
        $region37: #{decoder_forward.1} parent=27 // pred_check
          %p734 = pneg %p150
        $region38: #{decoder_forward.1} parent=27 // pred_check_branch
          %736 = sbr.rel (%p734) target = $region40
        $region39: #{decoder_forward.1} parent=27 // pred_region
          %p737 = scmp.lt.s32.totalorder %s52, 1
          %s738 = scalar_select %p737, %s52, 1
          %s739 = scalar_lea.vmem %s3, %s738
        $region40: #{decoder_forward.1} parent=27 // pred_fallthru
          _
        // Predicated region
        $region41: #{decoder_forward.1} parent=27 // pred_check
          %p740 = pneg %p176
        $region42: #{decoder_forward.1} parent=27 // pred_check_branch
          %742 = sbr.rel (%p740) target = $region44
        $region43: #{decoder_forward.1} parent=27 // pred_region
          %p743 = scmp.lt.s32.totalorder %s53, 1
          %s744 = scalar_select %p743, %s53, 1
          %s745 = smul.addr %s744, 4
          %s746 = smul.addr %s745, 4
          %s747 = scalar_lea.vmem %s4, %s746
        $region44: #{decoder_forward.1} parent=27 // pred_fallthru
          _
        // Predicated region
        $region45: #{decoder_forward.1} parent=27 // pred_check
          %p748 = pneg %p202
        $region46: #{decoder_forward.1} parent=27 // pred_check_branch
          %750 = sbr.rel (%p748) target = $region48
        $region47: #{decoder_forward.1} parent=27 // pred_region
          %p751 = scmp.lt.s32.totalorder %s53, 1
          %s752 = scalar_select %p751, %s53, 1
          %s753 = smul.addr %s752, 4
          %s754 = smul.addr %s753, 4
          %s755 = scalar_lea.vmem %s5, %s754
        $region48: #{decoder_forward.1} parent=27 // pred_fallthru
          _
        // Predicated region
        $region49: #{decoder_forward.1} parent=27 // pred_check
          %p756 = pneg %p228
        $region50: #{decoder_forward.1} parent=27 // pred_check_branch
          %758 = sbr.rel (%p756) target = $region52
        $region51: #{decoder_forward.1} parent=27 // pred_region
          %p759 = scmp.lt.s32.totalorder %s53, 1
          %s760 = scalar_select %p759, %s53, 1
          %s761 = smul.addr %s760, 4
          %s762 = smul.addr %s761, 4
          %s763 = scalar_lea.vmem %s6, %s762
        $region52: #{decoder_forward.1} parent=27 // pred_fallthru
          _
        // Predicated region
        $region53: #{decoder_forward.1} parent=27 // pred_check
          %p764 = pneg %p254
        $region54: #{decoder_forward.1} parent=27 // pred_check_branch
          %766 = sbr.rel (%p764) target = $region56
        $region55: #{decoder_forward.1} parent=27 // pred_region
          %p767 = scmp.lt.s32.totalorder %s53, 1
          %s768 = scalar_select %p767, %s53, 1
          %s769 = scalar_lea.vmem %s7, %s768
        $region56: #{decoder_forward.1} parent=27 // pred_fallthru
          _
        // Predicated region
        $region57: #{decoder_forward.1} parent=27 // pred_check
          %p770 = pneg %p280
        $region58: #{decoder_forward.1} parent=27 // pred_check_branch
          %772 = sbr.rel (%p770) target = $region60
        $region59: #{decoder_forward.1} parent=27 // pred_region
          %p773 = scmp.lt.s32.totalorder %s53, 1
          %s774 = scalar_select %p773, %s53, 1
          %s775 = scalar_lea.vmem %s8, %s774
        $region60: #{decoder_forward.1} parent=27 // pred_fallthru
          _
        // Predicated region
        $region61: #{decoder_forward.1} parent=27 // pred_check
          %p776 = pneg %p306
        $region62: #{decoder_forward.1} parent=27 // pred_check_branch
          %778 = sbr.rel (%p776) target = $region64
        $region63: #{decoder_forward.1} parent=27 // pred_region
          %s779 = sand.u32 %s296, 1
          %s780 = scalar_lea.sflag [#allocation4], %s779
          %s781 = sand.u32 %s296, 1
          %s782 = scalar_lea.vmem [#allocation3], %s781
          %s784 = ssub.s32 16, 16
          %785 = vsyncadd %s780, %s784
          %s786 = smul.addr %s53, 16
          %s787 = scalar_lea.hbm %s9, %s786
          %s789 = sshll.u32 %s782, 4
          %s790 = int_to_ptr.vmem [resolvable:$true] %s789
          %792 = dma.hbm_to_vmem [thread:$0]  %s787, 16, %s790, %s780
        $region64: #{decoder_forward.1} parent=27 // pred_fallthru
          _
        // Predicated region
        $region65: #{decoder_forward.1} parent=27 // pred_check
          %p793 = pneg %p332
        $region66: #{decoder_forward.1} parent=27 // pred_check_branch
          %795 = sbr.rel (%p793) target = $region68
        $region67: #{decoder_forward.1} parent=27 // pred_region
          %p796 = scmp.lt.s32.totalorder %s53, 1
          %s797 = scalar_select %p796, %s53, 1
          %s798 = smul.addr %s797, 4
          %s799 = smul.addr %s798, 4
          %s800 = scalar_lea.vmem %s10, %s799
        $region68: #{decoder_forward.1} parent=27 // pred_fallthru
          _
        // Predicated region
        $region69: #{decoder_forward.1} parent=27 // pred_check
          %p801 = pneg %p358
        $region70: #{decoder_forward.1} parent=27 // pred_check_branch
          %803 = sbr.rel (%p801) target = $region72
        $region71: #{decoder_forward.1} parent=27 // pred_region
          %p804 = scmp.lt.s32.totalorder %s53, 1
          %s805 = scalar_select %p804, %s53, 1
          %s806 = smul.addr %s805, 4
          %s807 = smul.addr %s806, 4
          %s808 = scalar_lea.vmem %s11, %s807
        $region72: #{decoder_forward.1} parent=27 // pred_fallthru
          _
        // Predicated region
        $region73: #{decoder_forward.1} parent=27 // pred_check
          %p809 = pneg %p384
        $region74: #{decoder_forward.1} parent=27 // pred_check_branch
          %811 = sbr.rel (%p809) target = $region76
        $region75: #{decoder_forward.1} parent=27 // pred_region
          %s812 = sand.u32 %s45, 1
          %s813 = scalar_lea.sflag [#allocation7], %s812
          %s814 = sand.u32 %s374, 1
          %s815 = smul.addr %s814, 16
          %s816 = scalar_lea.vmem [#allocation6], %s815
          %s818 = ssub.s32 256, 256
          %819 = vsyncadd %s813, %s818
          %s820 = smul.addr %s53, 4
          %s821 = smul.addr %s820, 64
          %s822 = scalar_lea.hbm %s12, %s821
          %s823 = sshll.u32 %s816, 4
          %s824 = int_to_ptr.vmem [resolvable:$true] %s823
          %829 = dma.hbm_to_vmem [thread:$0]  %s822, 256, %s824, %s813, 64, 64, 4
        $region76: #{decoder_forward.1} parent=27 // pred_fallthru
          _
        // Predicated region
        $region77: #{decoder_forward.1} parent=27 // pred_check
          %p830 = pneg %p410
        $region78: #{decoder_forward.1} parent=27 // pred_check_branch
          %832 = sbr.rel (%p830) target = $region80
        $region79: #{decoder_forward.1} parent=27 // pred_region
          %p833 = scmp.lt.s32.totalorder %s53, 1
          %s834 = scalar_select %p833, %s53, 1
          %s835 = scalar_lea.vmem %s13, %s834
        $region80: #{decoder_forward.1} parent=27 // pred_fallthru
          _
        // Predicated region
        $region81: #{decoder_forward.1} parent=27 // pred_check
          %p836 = pneg %p436
        $region82: #{decoder_forward.1} parent=27 // pred_check_branch
          %838 = sbr.rel (%p836) target = $region84
        $region83: #{decoder_forward.1} parent=27 // pred_region
          %p839 = scmp.lt.s32.totalorder %s53, 1
          %s840 = scalar_select %p839, %s53, 1
          %s841 = scalar_lea.vmem %s14, %s840
        $region84: #{decoder_forward.1} parent=27 // pred_fallthru
          _
        // Predicated region
        $region85: #{decoder_forward.1} parent=27 // pred_check
          %p842 = pneg %p462
        $region86: #{decoder_forward.1} parent=27 // pred_check_branch
          %844 = sbr.rel (%p842) target = $region88
        $region87: #{decoder_forward.1} parent=27 // pred_region
          %s845 = sand.u32 %s45, 1
          %s846 = scalar_lea.sflag [#allocation7], %s845
          %s847 = sand.u32 %s452, 1
          %s848 = scalar_lea.vmem [#allocation8], %s847
          %s850 = ssub.s32 16, 16
          %851 = vsyncadd %s846, %s850
          %s852 = smul.addr %s53, 16
          %s853 = scalar_lea.hbm %s15, %s852
          %s855 = sshll.u32 %s848, 4
          %s856 = int_to_ptr.vmem [resolvable:$true] %s855
          %858 = dma.hbm_to_vmem [thread:$0]  %s853, 16, %s856, %s846
        $region88: #{decoder_forward.1} parent=27 // pred_fallthru
          _
        // Predicated region
        $region89: #{decoder_forward.1} parent=27 // pred_check
          %p859 = pneg %p488
        $region90: #{decoder_forward.1} parent=27 // pred_check_branch
          %861 = sbr.rel (%p859) target = $region92
        $region91: #{decoder_forward.1} parent=27 // pred_region
          %s862 = sand.u32 %s45, 1
          %s863 = scalar_lea.sflag [#allocation10], %s862
          %s864 = sand.u32 %s478, 1
          %s865 = smul.addr %s864, 16
          %s866 = scalar_lea.vmem [#allocation9], %s865
          %s868 = ssub.s32 256, 256
          %869 = vsyncadd %s863, %s868
          %s870 = smul.addr %s53, 4
          %s871 = smul.addr %s870, 64
          %s872 = scalar_lea.hbm %s16, %s871
          %s873 = sshll.u32 %s866, 4
          %s874 = int_to_ptr.vmem [resolvable:$true] %s873
          %879 = dma.hbm_to_vmem [thread:$0]  %s872, 256, %s874, %s863, 64, 64, 4
        $region92: #{decoder_forward.1} parent=27 // pred_fallthru
          _
        // Predicated region
        $region93: #{decoder_forward.1} parent=27 // pred_check
          %p880 = pneg %p514
        $region94: #{decoder_forward.1} parent=27 // pred_check_branch
          %882 = sbr.rel (%p880) target = $region96
        $region95: #{decoder_forward.1} parent=27 // pred_region
          %s883 = sand.u32 %s45, 1
          %s884 = scalar_lea.sflag [#allocation10], %s883
          %s885 = sand.u32 %s504, 1
          %s886 = scalar_lea.vmem [#allocation11], %s885
          %s888 = ssub.s32 16, 16
          %889 = vsyncadd %s884, %s888
          %s890 = smul.addr %s53, 16
          %s891 = scalar_lea.hbm %s17, %s890
          %s893 = sshll.u32 %s886, 4
          %s894 = int_to_ptr.vmem [resolvable:$true] %s893
          %896 = dma.hbm_to_vmem [thread:$0]  %s891, 16, %s894, %s884
        $region96: #{decoder_forward.1} parent=27 // pred_fallthru
          _
        // Predicated region
        $region97: #{decoder_forward.1} parent=27 // pred_check
          %p897 = pneg %p540
        $region98: #{decoder_forward.1} parent=27 // pred_check_branch
          %899 = sbr.rel (%p897) target = $region100
        $region99: #{decoder_forward.1} parent=27 // pred_region
          %p900 = scmp.lt.s32.totalorder %s53, 1
          %s901 = scalar_select %p900, %s53, 1
          %s902 = smul.addr %s901, 16
          %s903 = smul.addr %s902, 4
          %s904 = scalar_lea.vmem %s18, %s903
        $region100: #{decoder_forward.1} parent=27 // pred_fallthru
          _
        // Predicated region
        $region101: #{decoder_forward.1} parent=27 // pred_check
          %p905 = pneg %p566
        $region102: #{decoder_forward.1} parent=27 // pred_check_branch
          %907 = sbr.rel (%p905) target = $region104
        $region103: #{decoder_forward.1} parent=27 // pred_region
          %s908 = sand.u32 %s45, 1
          %s909 = scalar_lea.sflag [#allocation13], %s908
          %s910 = sand.u32 %s556, 1
          %s911 = scalar_lea.vmem [#allocation12], %s910
          %s913 = ssub.s32 16, 16
          %914 = vsyncadd %s909, %s913
          %s915 = smul.addr %s53, 16
          %s916 = scalar_lea.hbm %s19, %s915
          %s918 = sshll.u32 %s911, 4
          %s919 = int_to_ptr.vmem [resolvable:$true] %s918
          %921 = dma.hbm_to_vmem [thread:$0]  %s916, 16, %s919, %s909
        $region104: #{decoder_forward.1} parent=27 // pred_fallthru
          _
        // Predicated region
        $region105: #{decoder_forward.1} parent=27 // pred_check
          %p922 = pneg %p592
        $region106: #{decoder_forward.1} parent=27 // pred_check_branch
          %924 = sbr.rel (%p922) target = $region108
        $region107: #{decoder_forward.1} parent=27 // pred_region
          %p925 = scmp.lt.s32.totalorder %s53, 1
          %s926 = scalar_select %p925, %s53, 1
          %s927 = scalar_lea.vmem %s20, %s926
        $region108: #{decoder_forward.1} parent=27 // pred_fallthru
          _
        // Predicated region
        $region109: #{decoder_forward.1} parent=27 // pred_check
          %p928 = pneg %p618
        $region110: #{decoder_forward.1} parent=27 // pred_check_branch
          %930 = sbr.rel (%p928) target = $region112
        $region111: #{decoder_forward.1} parent=27 // pred_region
          %s931 = sand.u32 %s45, 1
          %s932 = scalar_lea.sflag [#allocation13], %s931
          %s933 = sand.u32 %s608, 1
          %s934 = scalar_lea.vmem [#allocation14], %s933
          %s936 = ssub.s32 16, 16
          %937 = vsyncadd %s932, %s936
          %s938 = smul.addr %s53, 16
          %s939 = scalar_lea.hbm %s21, %s938
          %s941 = sshll.u32 %s934, 4
          %s942 = int_to_ptr.vmem [resolvable:$true] %s941
          %944 = dma.hbm_to_vmem [thread:$0]  %s939, 16, %s942, %s932
        $region112: #{decoder_forward.1} parent=27 // pred_fallthru
          _
      $region28: #{decoder_forward.1} parent=5 // pred_fallthru
        _
      %p945 = scmp.le.s32.totalorder 1, %s45
      %p946 = scmp.lt.s32.totalorder %s45, 5
      %p947 = pnand %p945, %p946
      %p948 = pneg %p947
      // Predicated region
      $region113: #{decoder_forward.1} parent=5 // pred_check
        _
      $region114: #{decoder_forward.1} parent=5 // pred_check_branch
        %950 = sbr.rel (%p947) target = $region116
      $region115: #{decoder_forward.1} parent=5 // pred_region
        %s951 = ssub.s32 %s45, 1
        %s952 = sand.u32 %s299, 1
        %s953 = scalar_lea.sflag [#allocation4], %s952
        %s954 = sand.u32 %s299, 1
        %s955 = scalar_lea.vmem [#allocation3], %s954
        // Predicated region
        $region117: #{decoder_forward.1} parent=115 // pred_check
          %p956 = pneg %p312
        $region118: #{decoder_forward.1} parent=115 // pred_check_branch
          %958 = sbr.rel (%p956) target = $region120
        $region119: #{decoder_forward.1} parent=115 // pred_region
          %959 = dma.done %s953, 16
        $region120: #{decoder_forward.1} parent=115 // pred_fallthru
          _
        %s960 = sand.u32 %s50, 1
        %s961 = scalar_lea.sflag [#allocation7], %s960
        %s962 = sand.u32 %s377, 1
        %s963 = smul.addr %s962, 16
        %s964 = scalar_lea.vmem [#allocation6], %s963
        // Predicated region
        $region121: #{decoder_forward.1} parent=115 // pred_check
          %p965 = pneg %p390
        $region122: #{decoder_forward.1} parent=115 // pred_check_branch
          %967 = sbr.rel (%p965) target = $region124
        $region123: #{decoder_forward.1} parent=115 // pred_region
          %968 = dma.done %s961, 256
        $region124: #{decoder_forward.1} parent=115 // pred_fallthru
          _
        %s969 = sand.u32 %s50, 1
        %s970 = scalar_lea.sflag [#allocation7], %s969
        %s971 = sand.u32 %s455, 1
        %s972 = scalar_lea.vmem [#allocation8], %s971
        // Predicated region
        $region125: #{decoder_forward.1} parent=115 // pred_check
          %p973 = pneg %p468
        $region126: #{decoder_forward.1} parent=115 // pred_check_branch
          %975 = sbr.rel (%p973) target = $region128
        $region127: #{decoder_forward.1} parent=115 // pred_region
          %976 = dma.done %s970, 16
        $region128: #{decoder_forward.1} parent=115 // pred_fallthru
          _
        %s977 = sand.u32 %s50, 1
        %s978 = scalar_lea.sflag [#allocation10], %s977
        %s979 = sand.u32 %s481, 1
        %s980 = smul.addr %s979, 16
        %s981 = scalar_lea.vmem [#allocation9], %s980
        // Predicated region
        $region129: #{decoder_forward.1} parent=115 // pred_check
          %p982 = pneg %p494
        $region130: #{decoder_forward.1} parent=115 // pred_check_branch
          %984 = sbr.rel (%p982) target = $region132
        $region131: #{decoder_forward.1} parent=115 // pred_region
          %985 = dma.done %s978, 256
        $region132: #{decoder_forward.1} parent=115 // pred_fallthru
          _
        %s986 = sand.u32 %s50, 1
        %s987 = scalar_lea.sflag [#allocation10], %s986
        %s988 = sand.u32 %s507, 1
        %s989 = scalar_lea.vmem [#allocation11], %s988
        // Predicated region
        $region133: #{decoder_forward.1} parent=115 // pred_check
          %p990 = pneg %p520
        $region134: #{decoder_forward.1} parent=115 // pred_check_branch
          %992 = sbr.rel (%p990) target = $region136
        $region135: #{decoder_forward.1} parent=115 // pred_region
          %993 = dma.done %s987, 16
        $region136: #{decoder_forward.1} parent=115 // pred_fallthru
          _
        %s994 = sand.u32 %s50, 1
        %s995 = scalar_lea.sflag [#allocation13], %s994
        %s996 = sand.u32 %s559, 1
        %s997 = scalar_lea.vmem [#allocation12], %s996
        // Predicated region
        $region137: #{decoder_forward.1} parent=115 // pred_check
          %p998 = pneg %p572
        $region138: #{decoder_forward.1} parent=115 // pred_check_branch
          %1000 = sbr.rel (%p998) target = $region140
        $region139: #{decoder_forward.1} parent=115 // pred_region
          %1001 = dma.done %s995, 16
        $region140: #{decoder_forward.1} parent=115 // pred_fallthru
          _
        %s1002 = sand.u32 %s50, 1
        %s1003 = scalar_lea.sflag [#allocation13], %s1002
        %s1004 = sand.u32 %s611, 1
        %s1005 = scalar_lea.vmem [#allocation14], %s1004
        // Predicated region
        $region141: #{decoder_forward.1} parent=115 // pred_check
          %p1006 = pneg %p624
        $region142: #{decoder_forward.1} parent=115 // pred_check_branch
          %1008 = sbr.rel (%p1006) target = $region144
        $region143: #{decoder_forward.1} parent=115 // pred_region
          %1009 = dma.done %s1003, 16
        $region144: #{decoder_forward.1} parent=115 // pred_fallthru
          _
        %p1010 = pneg %p78
        %p1011 = pneg %p75
        %p1012 = scmp.lt.s32.totalorder %s54, 1
        %s1013 = scalar_select %p1012, %s54, 1
        %s1014 = smul.addr %s1013, 8
        %s1015 = scalar_lea.vmem %s1, %s1014
        %p1016 = pneg %p104
        %p1017 = pneg %p101
        %p1018 = scmp.lt.s32.totalorder %s54, 1
        %s1019 = scalar_select %p1018, %s54, 1
        %s1020 = smul.addr %s1019, 8
        %s1021 = scalar_lea.vmem %s2, %s1020
        %p1022 = pneg %p130
        %p1023 = pneg %p127
        %p1024 = scmp.lt.s32.totalorder %s54, 1
        %s1025 = scalar_select %p1024, %s54, 1
        %s1026 = scalar_lea.vmem %s3, %s1025
        %p1027 = pneg %p156
        %p1028 = pneg %p153
        %p1029 = scmp.lt.s32.totalorder %s55, 1
        %s1030 = scalar_select %p1029, %s55, 1
        %s1031 = smul.addr %s1030, 4
        %s1032 = smul.addr %s1031, 4
        %s1033 = scalar_lea.vmem %s4, %s1032
        %p1034 = pneg %p182
        %p1035 = pneg %p179
        %p1036 = scmp.lt.s32.totalorder %s55, 1
        %s1037 = scalar_select %p1036, %s55, 1
        %s1038 = smul.addr %s1037, 4
        %s1039 = smul.addr %s1038, 4
        %s1040 = scalar_lea.vmem %s5, %s1039
        %p1041 = pneg %p208
        %p1042 = pneg %p205
        %p1043 = scmp.lt.s32.totalorder %s55, 1
        %s1044 = scalar_select %p1043, %s55, 1
        %s1045 = smul.addr %s1044, 4
        %s1046 = smul.addr %s1045, 4
        %s1047 = scalar_lea.vmem %s6, %s1046
        %p1048 = pneg %p234
        %p1049 = pneg %p231
        %p1050 = scmp.lt.s32.totalorder %s55, 1
        %s1051 = scalar_select %p1050, %s55, 1
        %s1052 = scalar_lea.vmem %s7, %s1051
        %p1053 = pneg %p260
        %p1054 = pneg %p257
        %p1055 = scmp.lt.s32.totalorder %s55, 1
        %s1056 = scalar_select %p1055, %s55, 1
        %s1057 = scalar_lea.vmem %s8, %s1056
        %p1058 = pneg %p286
        %p1059 = pneg %p283
        %s1060 = sand.u32 %s299, 1
        %s1061 = scalar_lea.sflag [#allocation4], %s1060
        %s1062 = sand.u32 %s299, 1
        %s1063 = scalar_lea.vmem [#allocation3], %s1062
        %p1064 = pneg %p312
        %p1065 = pneg %p309
        %p1066 = scmp.lt.s32.totalorder %s55, 1
        %s1067 = scalar_select %p1066, %s55, 1
        %s1068 = smul.addr %s1067, 4
        %s1069 = smul.addr %s1068, 4
        %s1070 = scalar_lea.vmem %s10, %s1069
        %p1071 = pneg %p338
        %p1072 = pneg %p335
        %p1073 = scmp.lt.s32.totalorder %s55, 1
        %s1074 = scalar_select %p1073, %s55, 1
        %s1075 = smul.addr %s1074, 4
        %s1076 = smul.addr %s1075, 4
        %s1077 = scalar_lea.vmem %s11, %s1076
        %p1078 = pneg %p364
        %p1079 = pneg %p361
        %s1080 = sand.u32 %s50, 1
        %s1081 = scalar_lea.sflag [#allocation7], %s1080
        %s1082 = sand.u32 %s377, 1
        %s1083 = smul.addr %s1082, 16
        %s1084 = scalar_lea.vmem [#allocation6], %s1083
        %p1085 = pneg %p390
        %p1086 = pneg %p387
        %p1087 = scmp.lt.s32.totalorder %s55, 1
        %s1088 = scalar_select %p1087, %s55, 1
        %s1089 = scalar_lea.vmem %s13, %s1088
        %p1090 = pneg %p416
        %p1091 = pneg %p413
        %p1092 = scmp.lt.s32.totalorder %s55, 1
        %s1093 = scalar_select %p1092, %s55, 1
        %s1094 = scalar_lea.vmem %s14, %s1093
        %p1095 = pneg %p442
        %p1096 = pneg %p439
        %s1097 = sand.u32 %s50, 1
        %s1098 = scalar_lea.sflag [#allocation7], %s1097
        %s1099 = sand.u32 %s455, 1
        %s1100 = scalar_lea.vmem [#allocation8], %s1099
        %p1101 = pneg %p468
        %p1102 = pneg %p465
        %s1103 = sand.u32 %s50, 1
        %s1104 = scalar_lea.sflag [#allocation10], %s1103
        %s1105 = sand.u32 %s481, 1
        %s1106 = smul.addr %s1105, 16
        %s1107 = scalar_lea.vmem [#allocation9], %s1106
        %p1108 = pneg %p494
        %p1109 = pneg %p491
        %s1110 = sand.u32 %s50, 1
        %s1111 = scalar_lea.sflag [#allocation10], %s1110
        %s1112 = sand.u32 %s507, 1
        %s1113 = scalar_lea.vmem [#allocation11], %s1112
        %p1114 = pneg %p520
        %p1115 = pneg %p517
        %p1116 = scmp.lt.s32.totalorder %s55, 1
        %s1117 = scalar_select %p1116, %s55, 1
        %s1118 = smul.addr %s1117, 16
        %s1119 = smul.addr %s1118, 4
        %s1120 = scalar_lea.vmem %s18, %s1119
        %p1121 = pneg %p546
        %p1122 = pneg %p543
        %s1123 = sand.u32 %s50, 1
        %s1124 = scalar_lea.sflag [#allocation13], %s1123
        %s1125 = sand.u32 %s559, 1
        %s1126 = scalar_lea.vmem [#allocation12], %s1125
        %p1127 = pneg %p572
        %p1128 = pneg %p569
        %p1129 = scmp.lt.s32.totalorder %s55, 1
        %s1130 = scalar_select %p1129, %s55, 1
        %s1131 = scalar_lea.vmem %s20, %s1130
        %p1132 = pneg %p598
        %p1133 = pneg %p595
        %s1134 = sand.u32 %s50, 1
        %s1135 = scalar_lea.sflag [#allocation13], %s1134
        %s1136 = sand.u32 %s611, 1
        %s1137 = scalar_lea.vmem [#allocation14], %s1136
        %p1138 = pneg %p624
        %p1139 = pneg %p621
        %p1140 = pneg %p645
        %p1141 = pneg %p642
        %p1142 = pneg %p666
        %p1143 = pneg %p663
        %p1144 = pneg %p692
        %p1145 = pneg %p689
        %s1146 = sand.u32 %s679, 1
        %s1147 = scalar_lea.sflag [#allocation5], %s1146
        %s1148 = sand.u32 %s679, 1
        %s1149 = smul.addr %s1148, 8
        %s1150 = scalar_lea.vmem [#allocation15], %s1149
        %p1151 = scmp.lt.s32.totalorder %s54, 1
        %s1152 = scalar_select %p1151, %s54, 1
        %s1153 = smul.addr %s1152, 8
        %s1154 = scalar_lea.vmem %s1, %s1153
        %p1155 = scmp.lt.s32.totalorder %s54, 1
        %s1156 = scalar_select %p1155, %s54, 1
        %s1157 = smul.addr %s1156, 8
        %s1158 = scalar_lea.vmem %s2, %s1157
        %p1159 = scmp.lt.s32.totalorder %s54, 1
        %s1160 = scalar_select %p1159, %s54, 1
        %s1161 = scalar_lea.vmem %s3, %s1160
        %p1162 = scmp.lt.s32.totalorder %s55, 1
        %s1163 = scalar_select %p1162, %s55, 1
        %s1164 = smul.addr %s1163, 4
        %s1165 = smul.addr %s1164, 4
        %s1166 = scalar_lea.vmem %s4, %s1165
        %p1167 = scmp.lt.s32.totalorder %s55, 1
        %s1168 = scalar_select %p1167, %s55, 1
        %s1169 = smul.addr %s1168, 4
        %s1170 = smul.addr %s1169, 4
        %s1171 = scalar_lea.vmem %s5, %s1170
        %p1172 = scmp.lt.s32.totalorder %s55, 1
        %s1173 = scalar_select %p1172, %s55, 1
        %s1174 = smul.addr %s1173, 4
        %s1175 = smul.addr %s1174, 4
        %s1176 = scalar_lea.vmem %s6, %s1175
        %p1177 = scmp.lt.s32.totalorder %s55, 1
        %s1178 = scalar_select %p1177, %s55, 1
        %s1179 = scalar_lea.vmem %s7, %s1178
        %p1180 = scmp.lt.s32.totalorder %s55, 1
        %s1181 = scalar_select %p1180, %s55, 1
        %s1182 = scalar_lea.vmem %s8, %s1181
        %p1183 = scmp.lt.s32.totalorder %s55, 1
        %s1184 = scalar_select %p1183, %s55, 1
        %s1185 = smul.addr %s1184, 4
        %s1186 = smul.addr %s1185, 4
        %s1187 = scalar_lea.vmem %s10, %s1186
        %p1188 = scmp.lt.s32.totalorder %s55, 1
        %s1189 = scalar_select %p1188, %s55, 1
        %s1190 = smul.addr %s1189, 4
        %s1191 = smul.addr %s1190, 4
        %s1192 = scalar_lea.vmem %s11, %s1191
        %p1193 = scmp.lt.s32.totalorder %s55, 1
        %s1194 = scalar_select %p1193, %s55, 1
        %s1195 = scalar_lea.vmem %s13, %s1194
        %p1196 = scmp.lt.s32.totalorder %s55, 1
        %s1197 = scalar_select %p1196, %s55, 1
        %s1198 = scalar_lea.vmem %s14, %s1197
        %p1199 = scmp.lt.s32.totalorder %s55, 1
        %s1200 = scalar_select %p1199, %s55, 1
        %s1201 = smul.addr %s1200, 16
        %s1202 = smul.addr %s1201, 4
        %s1203 = scalar_lea.vmem %s18, %s1202
        %p1204 = scmp.lt.s32.totalorder %s55, 1
        %s1205 = scalar_select %p1204, %s55, 1
        %s1206 = scalar_lea.vmem %s20, %s1205
        %p1208 = scmp.eq.s32.totalorder %s55, 0
        // Predicated region
        $region145: #{decoder_forward.1} parent=115 // pred_check
          %p1209 = pneg %p1208
        $region146: #{decoder_forward.1} parent=115 // pred_check_branch
          %1211 = sbr.rel (%p1209) target = $region148
        $region147: #{decoder_forward.1} parent=115 // pred_region
          %v1212 = vld [vmem:[%s0] sm:$0xff]
          %vm1213 = vcmask 261120
          %1214 = vst.msk [vmem:[#allocation2] sm:$0xff] %vm1213, %v1212
        $region148: #{decoder_forward.1} parent=115 // pred_fallthru
          _
        %v1215 = vld [vmem:[#allocation2] sm:$0xff]
        %v1216 = vld [vmem:[%s1158] sm:$0xff]
        %v1217 = vld [vmem:[%s1166] sm:$0xf]
        %v1218 = vld [vmem:[%s1166 + $0x4] sm:$0xf]
        %v1219 = vld [vmem:[%s1166 + $0x8] sm:$0xf]
        %v1220 = vld [vmem:[%s1166 + $0xc] sm:$0xf]
        %v1221 = vld [vmem:[%s1171] sm:$0xf]
        %v1222 = vld [vmem:[%s1171 + $0x4] sm:$0xf]
        %v1223 = vld [vmem:[%s1171 + $0x8] sm:$0xf]
        %v1224 = vld [vmem:[%s1171 + $0xc] sm:$0xf]
        %v1225 = vld [vmem:[%s1176] sm:$0xf]
        %v1226 = vld [vmem:[%s1176 + $0x4] sm:$0xf]
        %v1227 = vld [vmem:[%s1176 + $0x8] sm:$0xf]
        %v1228 = vld [vmem:[%s1176 + $0xc] sm:$0xf]
        %v1229 = vld [vmem:[%s1179] sm:$0x1]
        %v1230 = vpack.c.bf16 %v1215, %v1215
        %v1235 = vunpack.c.l.b16 %v1217
        %v1236 = vunpack.c.l.b16 %v1218
        %v1237 = vunpack.c.l.b16 %v1219
        %v1238 = vunpack.c.l.b16 %v1220
        %v1239 = vpack.c.b16 %v1236, %v1235
        %v1240 = vpack.c.b16 %v1238, %v1237
        %vm1243 = vcmask 261120
        %v1245 = vsel %vm1243, %v1230, 0
        %1247 = vmatprep.subr.bf16.mxu0 0
        %1248 = vmatpush1.bf16.msra.mxu0 %v1239
        %1249 = vmatprep.subr.bf16.mxu0 0
        %1250 = vmatpush1.bf16.msra.mxu0 %v1240
        %1251 = vmatprep.subr.bf16.mxu0 0
        %1252 = vmatpush1.bf16.msra.mxu0 0
        %1253 = vmatprep.subr.bf16.mxu0 0
        %1254 = vmatpush1.bf16.msra.mxu0 0
        %1255 = vmatprep.subr.bf16.mxu0 0
        %1256 = vmatpush1.bf16.msra.mxu0 0
        %1257 = vmatprep.subr.bf16.mxu0 0
        %1258 = vmatpush1.bf16.msra.mxu0 0
        %1259 = vmatprep.subr.bf16.mxu0 0
        %1260 = vmatpush1.bf16.msra.mxu0 0
        %1261 = vmatprep.subr.bf16.mxu0 0
        %1262 = vmatpush1.bf16.msra.mxu0 0
        %1263 = vmatprep.subr.bf16.mxu0 0
        %1264 = vmatpush1.bf16.msra.mxu0 0
        %1265 = vmatprep.subr.bf16.mxu0 0
        %1266 = vmatpush1.bf16.msra.mxu0 0
        %1267 = vmatprep.subr.bf16.mxu0 0
        %1268 = vmatpush1.bf16.msra.mxu0 0
        %1269 = vmatprep.subr.bf16.mxu0 0
        %1270 = vmatpush1.bf16.msra.mxu0 0
        %1271 = vmatprep.subr.bf16.mxu0 0
        %1272 = vmatpush1.bf16.msra.mxu0 0
        %1273 = vmatprep.subr.bf16.mxu0 0
        %1274 = vmatpush1.bf16.msra.mxu0 0
        %1275 = vmatprep.subr.bf16.mxu0 0
        %1276 = vmatpush1.bf16.msra.mxu0 0
        %1277 = vmatprep.subr.bf16.mxu0 0
        %1278 = vmatpush1.bf16.msra.mxu0 0
        %1279 = vmatprep.mubr.bf16.mxu0 0
        %1280 = vmatmul.mubr.bf16.gmra.mrb[0].mxu0 %v1245
        %v1281 = vpop.f32.mrb[0].mxu0
        %v1282 = vadd.f32 0.0, %v1281
        %v1283 = vpop.f32.mrb[0].mxu0
        %v1284 = vpop.f32.mrb[0].mxu0
        %v1285 = vpop.f32.mrb[0].mxu0
        %1286 = vdwg.mxu0
        %v1291 = vunpack.c.l.b16 %v1221
        %v1292 = vunpack.c.l.b16 %v1222
        %v1293 = vunpack.c.l.b16 %v1223
        %v1294 = vunpack.c.l.b16 %v1224
        %v1295 = vpack.c.b16 %v1292, %v1291
        %v1296 = vpack.c.b16 %v1294, %v1293
        %1299 = vmatprep.subr.bf16.mxu0 0
        %1300 = vmatpush1.bf16.msra.mxu0 %v1295
        %1301 = vmatprep.subr.bf16.mxu0 0
        %1302 = vmatpush1.bf16.msra.mxu0 %v1296
        %1303 = vmatprep.subr.bf16.mxu0 0
        %1304 = vmatpush1.bf16.msra.mxu0 0
        %1305 = vmatprep.subr.bf16.mxu0 0
        %1306 = vmatpush1.bf16.msra.mxu0 0
        %1307 = vmatprep.subr.bf16.mxu0 0
        %1308 = vmatpush1.bf16.msra.mxu0 0
        %1309 = vmatprep.subr.bf16.mxu0 0
        %1310 = vmatpush1.bf16.msra.mxu0 0
        %1311 = vmatprep.subr.bf16.mxu0 0
        %1312 = vmatpush1.bf16.msra.mxu0 0
        %1313 = vmatprep.subr.bf16.mxu0 0
        %1314 = vmatpush1.bf16.msra.mxu0 0
        %1315 = vmatprep.subr.bf16.mxu0 0
        %1316 = vmatpush1.bf16.msra.mxu0 0
        %1317 = vmatprep.subr.bf16.mxu0 0
        %1318 = vmatpush1.bf16.msra.mxu0 0
        %1319 = vmatprep.subr.bf16.mxu0 0
        %1320 = vmatpush1.bf16.msra.mxu0 0
        %1321 = vmatprep.subr.bf16.mxu0 0
        %1322 = vmatpush1.bf16.msra.mxu0 0
        %1323 = vmatprep.subr.bf16.mxu0 0
        %1324 = vmatpush1.bf16.msra.mxu0 0
        %1325 = vmatprep.subr.bf16.mxu0 0
        %1326 = vmatpush1.bf16.msra.mxu0 0
        %1327 = vmatprep.subr.bf16.mxu0 0
        %1328 = vmatpush1.bf16.msra.mxu0 0
        %1329 = vmatprep.subr.bf16.mxu0 0
        %1330 = vmatpush1.bf16.msra.mxu0 0
        %1331 = vmatprep.mubr.bf16.mxu0 0
        %1332 = vmatmul.mubr.bf16.gmra.mrb[0].mxu0 %v1245
        %v1333 = vpop.f32.mrb[0].mxu0
        %v1334 = vadd.f32 0.0, %v1333
        %v1335 = vpop.f32.mrb[0].mxu0
        %v1336 = vpop.f32.mrb[0].mxu0
        %v1337 = vpop.f32.mrb[0].mxu0
        %1338 = vdwg.mxu0
        %vm1339 = vcmp.eq.f32.partialorder %v1216, 0.0
        %v1340 = vpack.c.bf16 %v1282, %v1282
        %v1341 = vpack.c.bf16 %v1334, %v1334
        %vm1342 = vcmask 64512
        %v1344 = vsel %vm1342, %v1340, 0
        %v1347 = vsel %vm1342, %v1341, 0
        %1349 = vmatprep.subr.bf16.mxu0 0
        %1350 = vmatpush1.bf16.xpose.msra.mxu0 %v1347
        %1351 = vmatprep.subr.bf16.mxu0 0
        %1352 = vmatpush1.bf16.xpose.msra.mxu0 0
        %1353 = vmatprep.subr.bf16.mxu0 0
        %1354 = vmatpush1.bf16.xpose.msra.mxu0 0
        %1355 = vmatprep.subr.bf16.mxu0 0
        %1356 = vmatpush1.bf16.xpose.msra.mxu0 0
        %1357 = vmatprep.subr.bf16.mxu0 0
        %1358 = vmatpush1.bf16.xpose.msra.mxu0 0
        %1359 = vmatprep.subr.bf16.mxu0 0
        %1360 = vmatpush1.bf16.xpose.msra.mxu0 0
        %1361 = vmatprep.subr.bf16.mxu0 0
        %1362 = vmatpush1.bf16.xpose.msra.mxu0 0
        %1363 = vmatprep.subr.bf16.mxu0 0
        %1364 = vmatpush1.bf16.xpose.msra.mxu0 0
        %1365 = vmatprep.subr.bf16.mxu0 0
        %1366 = vmatpush1.bf16.xpose.msra.mxu0 0
        %1367 = vmatprep.subr.bf16.mxu0 0
        %1368 = vmatpush1.bf16.xpose.msra.mxu0 0
        %1369 = vmatprep.subr.bf16.mxu0 0
        %1370 = vmatpush1.bf16.xpose.msra.mxu0 0
        %1371 = vmatprep.subr.bf16.mxu0 0
        %1372 = vmatpush1.bf16.xpose.msra.mxu0 0
        %1373 = vmatprep.subr.bf16.mxu0 0
        %1374 = vmatpush1.bf16.xpose.msra.mxu0 0
        %1375 = vmatprep.subr.bf16.mxu0 0
        %1376 = vmatpush1.bf16.xpose.msra.mxu0 0
        %1377 = vmatprep.subr.bf16.mxu0 0
        %1378 = vmatpush1.bf16.xpose.msra.mxu0 0
        %1379 = vmatprep.subr.bf16.mxu0 0
        %1380 = vmatpush1.bf16.xpose.msra.mxu0 0
        %1381 = vmatprep.mubr.bf16.mxu0 0
        %1382 = vmatmul.mubr.bf16.gmra.mrb[0].mxu0 %v1344
        %v1383 = vpop.f32.mrb[0].mxu0
        %v1384 = vadd.f32 0.0, %v1383
        %v1385 = vpop.f32.mrb[0].mxu0
        %v1386 = vpop.f32.mrb[0].mxu0
        %v1387 = vpop.f32.mrb[0].mxu0
        %1388 = vdwg.mxu0
        %v1389 = vsel %vm1339, -1e+20, %v1384
        %v1390 = vmul.f32 %v1389, 0.17677669
        %v1391 = vsel %vm1342, %v1390, -inf
        %1392 = vmax.xlane.f32.xlu0 %v1391
        %v1393 = vpop.xlane.xlu0 %1392
        %v1394 = vsub.f32 %v1390, %v1393
        %v1395 = vmul.f32 %v1394, 1.442695
        %v1396 = vpow.pop %v1395
        %v1397 = vsel %vm1342, %v1396, 0.0
        %1398 = vadd.xlane.f32.xlu0 %v1397
        %v1399 = vpop.xlane.xlu0 %1398
        %v1400 = vrcp.pop %v1399
        %v1401 = vmul.f32 %v1396, %v1400
        %v1402 = vpack.c.bf16 %v1401, %v1401
        %1404 = vrot.lane.b32.xlu0 %v1341, 96
        %v1405 = vpop.permute.xlu0 %1404
        %v1407 = vsel %vm1342, %v1402, 0
        %vm1409 = vcmask 1043456
        %v1411 = vsel %vm1409, %v1405, 0
        %1413 = vmatprep.subr.bf16.mxu0 0
        %1414 = vmatpush1.bf16.msra.mxu0 %v1411
        %1415 = vmatprep.subr.bf16.mxu0 0
        %1416 = vmatpush1.bf16.msra.mxu0 0
        %1417 = vmatprep.subr.bf16.mxu0 0
        %1418 = vmatpush1.bf16.msra.mxu0 0
        %1419 = vmatprep.subr.bf16.mxu0 0
        %1420 = vmatpush1.bf16.msra.mxu0 0
        %1421 = vmatprep.subr.bf16.mxu0 0
        %1422 = vmatpush1.bf16.msra.mxu0 0
        %1423 = vmatprep.subr.bf16.mxu0 0
        %1424 = vmatpush1.bf16.msra.mxu0 0
        %1425 = vmatprep.subr.bf16.mxu0 0
        %1426 = vmatpush1.bf16.msra.mxu0 0
        %1427 = vmatprep.subr.bf16.mxu0 0
        %1428 = vmatpush1.bf16.msra.mxu0 0
        %1429 = vmatprep.subr.bf16.mxu0 0
        %1430 = vmatpush1.bf16.msra.mxu0 0
        %1431 = vmatprep.subr.bf16.mxu0 0
        %1432 = vmatpush1.bf16.msra.mxu0 0
        %1433 = vmatprep.subr.bf16.mxu0 0
        %1434 = vmatpush1.bf16.msra.mxu0 0
        %1435 = vmatprep.subr.bf16.mxu0 0
        %1436 = vmatpush1.bf16.msra.mxu0 0
        %1437 = vmatprep.subr.bf16.mxu0 0
        %1438 = vmatpush1.bf16.msra.mxu0 0
        %1439 = vmatprep.subr.bf16.mxu0 0
        %1440 = vmatpush1.bf16.msra.mxu0 0
        %1441 = vmatprep.subr.bf16.mxu0 0
        %1442 = vmatpush1.bf16.msra.mxu0 0
        %1443 = vmatprep.subr.bf16.mxu0 0
        %1444 = vmatpush1.bf16.msra.mxu0 0
        %1445 = vmatprep.mubr.bf16.mxu0 0
        %1446 = vmatmul.mubr.bf16.gmra.mrb[0].mxu0 %v1407
        %v1447 = vpop.f32.mrb[0].mxu0
        %v1448 = vadd.f32 0.0, %v1447
        %v1449 = vpop.f32.mrb[0].mxu0
        %v1450 = vpop.f32.mrb[0].mxu0
        %v1451 = vpop.f32.mrb[0].mxu0
        %1452 = vdwg.mxu0
        %1454 = vrot.lane.b32.xlu0 %v1340, 120
        %v1455 = vpop.permute.xlu0 %1454
        %1456 = vrot.lane.b32.xlu0 %v1341, 120
        %v1457 = vpop.permute.xlu0 %1456
        %v1459 = vsel %vm1342, %v1455, 0
        %v1462 = vsel %vm1342, %v1457, 0
        %1464 = vmatprep.subr.bf16.mxu0 0
        %1465 = vmatpush1.bf16.xpose.msra.mxu0 %v1462
        %1466 = vmatprep.subr.bf16.mxu0 0
        %1467 = vmatpush1.bf16.xpose.msra.mxu0 0
        %1468 = vmatprep.subr.bf16.mxu0 0
        %1469 = vmatpush1.bf16.xpose.msra.mxu0 0
        %1470 = vmatprep.subr.bf16.mxu0 0
        %1471 = vmatpush1.bf16.xpose.msra.mxu0 0
        %1472 = vmatprep.subr.bf16.mxu0 0
        %1473 = vmatpush1.bf16.xpose.msra.mxu0 0
        %1474 = vmatprep.subr.bf16.mxu0 0
        %1475 = vmatpush1.bf16.xpose.msra.mxu0 0
        %1476 = vmatprep.subr.bf16.mxu0 0
        %1477 = vmatpush1.bf16.xpose.msra.mxu0 0
        %1478 = vmatprep.subr.bf16.mxu0 0
        %1479 = vmatpush1.bf16.xpose.msra.mxu0 0
        %1480 = vmatprep.subr.bf16.mxu0 0
        %1481 = vmatpush1.bf16.xpose.msra.mxu0 0
        %1482 = vmatprep.subr.bf16.mxu0 0
        %1483 = vmatpush1.bf16.xpose.msra.mxu0 0
        %1484 = vmatprep.subr.bf16.mxu0 0
        %1485 = vmatpush1.bf16.xpose.msra.mxu0 0
        %1486 = vmatprep.subr.bf16.mxu0 0
        %1487 = vmatpush1.bf16.xpose.msra.mxu0 0
        %1488 = vmatprep.subr.bf16.mxu0 0
        %1489 = vmatpush1.bf16.xpose.msra.mxu0 0
        %1490 = vmatprep.subr.bf16.mxu0 0
        %1491 = vmatpush1.bf16.xpose.msra.mxu0 0
        %1492 = vmatprep.subr.bf16.mxu0 0
        %1493 = vmatpush1.bf16.xpose.msra.mxu0 0
        %1494 = vmatprep.subr.bf16.mxu0 0
        %1495 = vmatpush1.bf16.xpose.msra.mxu0 0
        %1496 = vmatprep.mubr.bf16.mxu0 0
        %1497 = vmatmul.mubr.bf16.gmra.mrb[0].mxu0 %v1459
        %v1498 = vpop.f32.mrb[0].mxu0
        %v1499 = vadd.f32 0.0, %v1498
        %v1500 = vpop.f32.mrb[0].mxu0
        %v1501 = vpop.f32.mrb[0].mxu0
        %v1502 = vpop.f32.mrb[0].mxu0
        %1503 = vdwg.mxu0
        %v1504 = vsel %vm1339, -1e+20, %v1499
        %v1505 = vmul.f32 %v1504, 0.17677669
        %v1506 = vsel %vm1342, %v1505, -inf
        %1507 = vmax.xlane.f32.xlu0 %v1506
        %v1508 = vpop.xlane.xlu0 %1507
        %v1509 = vsub.f32 %v1505, %v1508
        %v1510 = vmul.f32 %v1509, 1.442695
        %v1511 = vpow.pop %v1510
        %v1512 = vsel %vm1342, %v1511, 0.0
        %1513 = vadd.xlane.f32.xlu0 %v1512
        %v1514 = vpop.xlane.xlu0 %1513
        %v1515 = vrcp.pop %v1514
        %v1516 = vmul.f32 %v1511, %v1515
        %v1517 = vpack.c.bf16 %v1516, %v1516
        %1518 = vrot.lane.b32.xlu0 %v1341, 88
        %v1519 = vpop.permute.xlu0 %1518
        %v1521 = vsel %vm1342, %v1517, 0
        %v1524 = vsel %vm1409, %v1519, 0
        %1526 = vmatprep.subr.bf16.mxu0 0
        %1527 = vmatpush1.bf16.msra.mxu0 %v1524
        %1528 = vmatprep.subr.bf16.mxu0 0
        %1529 = vmatpush1.bf16.msra.mxu0 0
        %1530 = vmatprep.subr.bf16.mxu0 0
        %1531 = vmatpush1.bf16.msra.mxu0 0
        %1532 = vmatprep.subr.bf16.mxu0 0
        %1533 = vmatpush1.bf16.msra.mxu0 0
        %1534 = vmatprep.subr.bf16.mxu0 0
        %1535 = vmatpush1.bf16.msra.mxu0 0
        %1536 = vmatprep.subr.bf16.mxu0 0
        %1537 = vmatpush1.bf16.msra.mxu0 0
        %1538 = vmatprep.subr.bf16.mxu0 0
        %1539 = vmatpush1.bf16.msra.mxu0 0
        %1540 = vmatprep.subr.bf16.mxu0 0
        %1541 = vmatpush1.bf16.msra.mxu0 0
        %1542 = vmatprep.subr.bf16.mxu0 0
        %1543 = vmatpush1.bf16.msra.mxu0 0
        %1544 = vmatprep.subr.bf16.mxu0 0
        %1545 = vmatpush1.bf16.msra.mxu0 0
        %1546 = vmatprep.subr.bf16.mxu0 0
        %1547 = vmatpush1.bf16.msra.mxu0 0
        %1548 = vmatprep.subr.bf16.mxu0 0
        %1549 = vmatpush1.bf16.msra.mxu0 0
        %1550 = vmatprep.subr.bf16.mxu0 0
        %1551 = vmatpush1.bf16.msra.mxu0 0
        %1552 = vmatprep.subr.bf16.mxu0 0
        %1553 = vmatpush1.bf16.msra.mxu0 0
        %1554 = vmatprep.subr.bf16.mxu0 0
        %1555 = vmatpush1.bf16.msra.mxu0 0
        %1556 = vmatprep.subr.bf16.mxu0 0
        %1557 = vmatpush1.bf16.msra.mxu0 0
        %1558 = vmatprep.mubr.bf16.mxu0 0
        %1559 = vmatmul.mubr.bf16.gmra.mrb[0].mxu0 %v1521
        %v1560 = vpop.f32.mrb[0].mxu0
        %v1561 = vadd.f32 0.0, %v1560
        %v1562 = vpop.f32.mrb[0].mxu0
        %v1563 = vpop.f32.mrb[0].mxu0
        %v1564 = vpop.f32.mrb[0].mxu0
        %1565 = vdwg.mxu0
        %1566 = vrot.lane.b32.xlu0 %v1340, 112
        %v1567 = vpop.permute.xlu0 %1566
        %1568 = vrot.lane.b32.xlu0 %v1341, 112
        %v1569 = vpop.permute.xlu0 %1568
        %v1571 = vsel %vm1342, %v1567, 0
        %v1574 = vsel %vm1342, %v1569, 0
        %1576 = vmatprep.subr.bf16.mxu0 0
        %1577 = vmatpush1.bf16.xpose.msra.mxu0 %v1574
        %1578 = vmatprep.subr.bf16.mxu0 0
        %1579 = vmatpush1.bf16.xpose.msra.mxu0 0
        %1580 = vmatprep.subr.bf16.mxu0 0
        %1581 = vmatpush1.bf16.xpose.msra.mxu0 0
        %1582 = vmatprep.subr.bf16.mxu0 0
        %1583 = vmatpush1.bf16.xpose.msra.mxu0 0
        %1584 = vmatprep.subr.bf16.mxu0 0
        %1585 = vmatpush1.bf16.xpose.msra.mxu0 0
        %1586 = vmatprep.subr.bf16.mxu0 0
        %1587 = vmatpush1.bf16.xpose.msra.mxu0 0
        %1588 = vmatprep.subr.bf16.mxu0 0
        %1589 = vmatpush1.bf16.xpose.msra.mxu0 0
        %1590 = vmatprep.subr.bf16.mxu0 0
        %1591 = vmatpush1.bf16.xpose.msra.mxu0 0
        %1592 = vmatprep.subr.bf16.mxu0 0
        %1593 = vmatpush1.bf16.xpose.msra.mxu0 0
        %1594 = vmatprep.subr.bf16.mxu0 0
        %1595 = vmatpush1.bf16.xpose.msra.mxu0 0
        %1596 = vmatprep.subr.bf16.mxu0 0
        %1597 = vmatpush1.bf16.xpose.msra.mxu0 0
        %1598 = vmatprep.subr.bf16.mxu0 0
        %1599 = vmatpush1.bf16.xpose.msra.mxu0 0
        %1600 = vmatprep.subr.bf16.mxu0 0
        %1601 = vmatpush1.bf16.xpose.msra.mxu0 0
        %1602 = vmatprep.subr.bf16.mxu0 0
        %1603 = vmatpush1.bf16.xpose.msra.mxu0 0
        %1604 = vmatprep.subr.bf16.mxu0 0
        %1605 = vmatpush1.bf16.xpose.msra.mxu0 0
        %1606 = vmatprep.subr.bf16.mxu0 0
        %1607 = vmatpush1.bf16.xpose.msra.mxu0 0
        %1608 = vmatprep.mubr.bf16.mxu0 0
        %1609 = vmatmul.mubr.bf16.gmra.mrb[0].mxu0 %v1571
        %v1610 = vpop.f32.mrb[0].mxu0
        %v1611 = vadd.f32 0.0, %v1610
        %v1612 = vpop.f32.mrb[0].mxu0
        %v1613 = vpop.f32.mrb[0].mxu0
        %v1614 = vpop.f32.mrb[0].mxu0
        %1615 = vdwg.mxu0
        %v1616 = vsel %vm1339, -1e+20, %v1611
        %v1617 = vmul.f32 %v1616, 0.17677669
        %v1618 = vsel %vm1342, %v1617, -inf
        %1619 = vmax.xlane.f32.xlu0 %v1618
        %v1620 = vpop.xlane.xlu0 %1619
        %v1621 = vsub.f32 %v1617, %v1620
        %v1622 = vmul.f32 %v1621, 1.442695
        %v1623 = vpow.pop %v1622
        %v1624 = vsel %vm1342, %v1623, 0.0
        %1625 = vadd.xlane.f32.xlu0 %v1624
        %v1626 = vpop.xlane.xlu0 %1625
        %v1627 = vrcp.pop %v1626
        %v1628 = vmul.f32 %v1623, %v1627
        %v1629 = vpack.c.bf16 %v1628, %v1628
        %1630 = vrot.lane.b32.xlu0 %v1341, 80
        %v1631 = vpop.permute.xlu0 %1630
        %v1633 = vsel %vm1342, %v1629, 0
        %v1636 = vsel %vm1409, %v1631, 0
        %1638 = vmatprep.subr.bf16.mxu0 0
        %1639 = vmatpush1.bf16.msra.mxu0 %v1636
        %1640 = vmatprep.subr.bf16.mxu0 0
        %1641 = vmatpush1.bf16.msra.mxu0 0
        %1642 = vmatprep.subr.bf16.mxu0 0
        %1643 = vmatpush1.bf16.msra.mxu0 0
        %1644 = vmatprep.subr.bf16.mxu0 0
        %1645 = vmatpush1.bf16.msra.mxu0 0
        %1646 = vmatprep.subr.bf16.mxu0 0
        %1647 = vmatpush1.bf16.msra.mxu0 0
        %1648 = vmatprep.subr.bf16.mxu0 0
        %1649 = vmatpush1.bf16.msra.mxu0 0
        %1650 = vmatprep.subr.bf16.mxu0 0
        %1651 = vmatpush1.bf16.msra.mxu0 0
        %1652 = vmatprep.subr.bf16.mxu0 0
        %1653 = vmatpush1.bf16.msra.mxu0 0
        %1654 = vmatprep.subr.bf16.mxu0 0
        %1655 = vmatpush1.bf16.msra.mxu0 0
        %1656 = vmatprep.subr.bf16.mxu0 0
        %1657 = vmatpush1.bf16.msra.mxu0 0
        %1658 = vmatprep.subr.bf16.mxu0 0
        %1659 = vmatpush1.bf16.msra.mxu0 0
        %1660 = vmatprep.subr.bf16.mxu0 0
        %1661 = vmatpush1.bf16.msra.mxu0 0
        %1662 = vmatprep.subr.bf16.mxu0 0
        %1663 = vmatpush1.bf16.msra.mxu0 0
        %1664 = vmatprep.subr.bf16.mxu0 0
        %1665 = vmatpush1.bf16.msra.mxu0 0
        %1666 = vmatprep.subr.bf16.mxu0 0
        %1667 = vmatpush1.bf16.msra.mxu0 0
        %1668 = vmatprep.subr.bf16.mxu0 0
        %1669 = vmatpush1.bf16.msra.mxu0 0
        %1670 = vmatprep.mubr.bf16.mxu0 0
        %1671 = vmatmul.mubr.bf16.gmra.mrb[0].mxu0 %v1633
        %v1672 = vpop.f32.mrb[0].mxu0
        %v1673 = vadd.f32 0.0, %v1672
        %v1674 = vpop.f32.mrb[0].mxu0
        %v1675 = vpop.f32.mrb[0].mxu0
        %v1676 = vpop.f32.mrb[0].mxu0
        %1677 = vdwg.mxu0
        %1678 = vrot.lane.b32.xlu0 %v1340, 104
        %v1679 = vpop.permute.xlu0 %1678
        %1680 = vrot.lane.b32.xlu0 %v1341, 104
        %v1681 = vpop.permute.xlu0 %1680
        %v1683 = vsel %vm1342, %v1679, 0
        %v1686 = vsel %vm1342, %v1681, 0
        %1688 = vmatprep.subr.bf16.mxu0 0
        %1689 = vmatpush1.bf16.xpose.msra.mxu0 %v1686
        %1690 = vmatprep.subr.bf16.mxu0 0
        %1691 = vmatpush1.bf16.xpose.msra.mxu0 0
        %1692 = vmatprep.subr.bf16.mxu0 0
        %1693 = vmatpush1.bf16.xpose.msra.mxu0 0
        %1694 = vmatprep.subr.bf16.mxu0 0
        %1695 = vmatpush1.bf16.xpose.msra.mxu0 0
        %1696 = vmatprep.subr.bf16.mxu0 0
        %1697 = vmatpush1.bf16.xpose.msra.mxu0 0
        %1698 = vmatprep.subr.bf16.mxu0 0
        %1699 = vmatpush1.bf16.xpose.msra.mxu0 0
        %1700 = vmatprep.subr.bf16.mxu0 0
        %1701 = vmatpush1.bf16.xpose.msra.mxu0 0
        %1702 = vmatprep.subr.bf16.mxu0 0
        %1703 = vmatpush1.bf16.xpose.msra.mxu0 0
        %1704 = vmatprep.subr.bf16.mxu0 0
        %1705 = vmatpush1.bf16.xpose.msra.mxu0 0
        %1706 = vmatprep.subr.bf16.mxu0 0
        %1707 = vmatpush1.bf16.xpose.msra.mxu0 0
        %1708 = vmatprep.subr.bf16.mxu0 0
        %1709 = vmatpush1.bf16.xpose.msra.mxu0 0
        %1710 = vmatprep.subr.bf16.mxu0 0
        %1711 = vmatpush1.bf16.xpose.msra.mxu0 0
        %1712 = vmatprep.subr.bf16.mxu0 0
        %1713 = vmatpush1.bf16.xpose.msra.mxu0 0
        %1714 = vmatprep.subr.bf16.mxu0 0
        %1715 = vmatpush1.bf16.xpose.msra.mxu0 0
        %1716 = vmatprep.subr.bf16.mxu0 0
        %1717 = vmatpush1.bf16.xpose.msra.mxu0 0
        %1718 = vmatprep.subr.bf16.mxu0 0
        %1719 = vmatpush1.bf16.xpose.msra.mxu0 0
        %1720 = vmatprep.mubr.bf16.mxu0 0
        %1721 = vmatmul.mubr.bf16.gmra.mrb[0].mxu0 %v1683
        %v1722 = vpop.f32.mrb[0].mxu0
        %v1723 = vadd.f32 0.0, %v1722
        %v1724 = vpop.f32.mrb[0].mxu0
        %v1725 = vpop.f32.mrb[0].mxu0
        %v1726 = vpop.f32.mrb[0].mxu0
        %1727 = vdwg.mxu0
        %v1728 = vsel %vm1339, -1e+20, %v1723
        %v1729 = vmul.f32 %v1728, 0.17677669
        %v1730 = vsel %vm1342, %v1729, -inf
        %1731 = vmax.xlane.f32.xlu0 %v1730
        %v1732 = vpop.xlane.xlu0 %1731
        %v1733 = vsub.f32 %v1729, %v1732
        %v1734 = vmul.f32 %v1733, 1.442695
        %v1735 = vpow.pop %v1734
        %v1736 = vsel %vm1342, %v1735, 0.0
        %1737 = vadd.xlane.f32.xlu0 %v1736
        %v1738 = vpop.xlane.xlu0 %1737
        %v1739 = vrcp.pop %v1738
        %v1740 = vmul.f32 %v1735, %v1739
        %v1741 = vpack.c.bf16 %v1740, %v1740
        %1742 = vrot.lane.b32.xlu0 %v1341, 72
        %v1743 = vpop.permute.xlu0 %1742
        %v1745 = vsel %vm1342, %v1741, 0
        %v1748 = vsel %vm1409, %v1743, 0
        %1750 = vmatprep.subr.bf16.mxu0 0
        %1751 = vmatpush1.bf16.msra.mxu0 %v1748
        %1752 = vmatprep.subr.bf16.mxu0 0
        %1753 = vmatpush1.bf16.msra.mxu0 0
        %1754 = vmatprep.subr.bf16.mxu0 0
        %1755 = vmatpush1.bf16.msra.mxu0 0
        %1756 = vmatprep.subr.bf16.mxu0 0
        %1757 = vmatpush1.bf16.msra.mxu0 0
        %1758 = vmatprep.subr.bf16.mxu0 0
        %1759 = vmatpush1.bf16.msra.mxu0 0
        %1760 = vmatprep.subr.bf16.mxu0 0
        %1761 = vmatpush1.bf16.msra.mxu0 0
        %1762 = vmatprep.subr.bf16.mxu0 0
        %1763 = vmatpush1.bf16.msra.mxu0 0
        %1764 = vmatprep.subr.bf16.mxu0 0
        %1765 = vmatpush1.bf16.msra.mxu0 0
        %1766 = vmatprep.subr.bf16.mxu0 0
        %1767 = vmatpush1.bf16.msra.mxu0 0
        %1768 = vmatprep.subr.bf16.mxu0 0
        %1769 = vmatpush1.bf16.msra.mxu0 0
        %1770 = vmatprep.subr.bf16.mxu0 0
        %1771 = vmatpush1.bf16.msra.mxu0 0
        %1772 = vmatprep.subr.bf16.mxu0 0
        %1773 = vmatpush1.bf16.msra.mxu0 0
        %1774 = vmatprep.subr.bf16.mxu0 0
        %1775 = vmatpush1.bf16.msra.mxu0 0
        %1776 = vmatprep.subr.bf16.mxu0 0
        %1777 = vmatpush1.bf16.msra.mxu0 0
        %1778 = vmatprep.subr.bf16.mxu0 0
        %1779 = vmatpush1.bf16.msra.mxu0 0
        %1780 = vmatprep.subr.bf16.mxu0 0
        %1781 = vmatpush1.bf16.msra.mxu0 0
        %1782 = vmatprep.mubr.bf16.mxu0 0
        %1783 = vmatmul.mubr.bf16.gmra.mrb[0].mxu0 %v1745
        %v1784 = vpop.f32.mrb[0].mxu0
        %v1785 = vadd.f32 0.0, %v1784
        %v1786 = vpop.f32.mrb[0].mxu0
        %v1787 = vpop.f32.mrb[0].mxu0
        %v1788 = vpop.f32.mrb[0].mxu0
        %1789 = vdwg.mxu0
        %1791 = vrot.lane.b32.xlu0 %v1561, 8
        %v1792 = vpop.permute.xlu0 %1791
        %1795 = vrot.lane.b32.xlu0 %v1673, 16
        %v1796 = vpop.permute.xlu0 %1795
        %1799 = vrot.lane.b32.xlu0 %v1785, 24
        %v1800 = vpop.permute.xlu0 %1799
        %v1802 = vsel %vm1342, %v1448, %v1792
        %vm1803 = vcmask 130048
        %v1804 = vsel %vm1803, %v1802, %v1796
        %vm1805 = vcmask 195584
        %v1806 = vsel %vm1805, %v1804, %v1800
        %v1807 = vpack.c.bf16 %v1806, %v1806
        %v1809 = vlaneseq
        %v1810 = vshrl.u32 %v1809, 7
        %v1811 = vsub.s32 0, %v1810
        %v1812 = vrot.slane %v1229, %v1811
        %v1818 = vunpack.c.l.b16 %v1225
        %v1819 = vunpack.c.l.b16 %v1226
        %v1820 = vunpack.c.l.b16 %v1227
        %v1821 = vunpack.c.l.b16 %v1228
        %v1822 = vpack.c.b16 %v1819, %v1818
        %v1823 = vpack.c.b16 %v1821, %v1820
        %v1827 = vsel %vm1243, %v1807, 0
        %1829 = vmatprep.subr.bf16.mxu0 0
        %1830 = vmatpush1.bf16.msra.mxu0 %v1822
        %1831 = vmatprep.subr.bf16.mxu0 0
        %1832 = vmatpush1.bf16.msra.mxu0 %v1823
        %1833 = vmatprep.subr.bf16.mxu0 0
        %1834 = vmatpush1.bf16.msra.mxu0 0
        %1835 = vmatprep.subr.bf16.mxu0 0
        %1836 = vmatpush1.bf16.msra.mxu0 0
        %1837 = vmatprep.subr.bf16.mxu0 0
        %1838 = vmatpush1.bf16.msra.mxu0 0
        %1839 = vmatprep.subr.bf16.mxu0 0
        %1840 = vmatpush1.bf16.msra.mxu0 0
        %1841 = vmatprep.subr.bf16.mxu0 0
        %1842 = vmatpush1.bf16.msra.mxu0 0
        %1843 = vmatprep.subr.bf16.mxu0 0
        %1844 = vmatpush1.bf16.msra.mxu0 0
        %1845 = vmatprep.subr.bf16.mxu0 0
        %1846 = vmatpush1.bf16.msra.mxu0 0
        %1847 = vmatprep.subr.bf16.mxu0 0
        %1848 = vmatpush1.bf16.msra.mxu0 0
        %1849 = vmatprep.subr.bf16.mxu0 0
        %1850 = vmatpush1.bf16.msra.mxu0 0
        %1851 = vmatprep.subr.bf16.mxu0 0
        %1852 = vmatpush1.bf16.msra.mxu0 0
        %1853 = vmatprep.subr.bf16.mxu0 0
        %1854 = vmatpush1.bf16.msra.mxu0 0
        %1855 = vmatprep.subr.bf16.mxu0 0
        %1856 = vmatpush1.bf16.msra.mxu0 0
        %1857 = vmatprep.subr.bf16.mxu0 0
        %1858 = vmatpush1.bf16.msra.mxu0 0
        %1859 = vmatprep.subr.bf16.mxu0 0
        %1860 = vmatpush1.bf16.msra.mxu0 0
        %1861 = vmatprep.mubr.bf16.mxu0 0
        %1862 = vmatmul.mubr.bf16.gmra.mrb[0].mxu0 %v1827
        %v1863 = vpop.f32.mrb[0].mxu0
        %v1864 = vadd.f32 %v1812, %v1863
        %v1865 = vpop.f32.mrb[0].mxu0
        %v1866 = vpop.f32.mrb[0].mxu0
        %v1867 = vpop.f32.mrb[0].mxu0
        %1868 = vdwg.mxu0
        %v1869 = vadd.f32 %v1864, %v1215
        %v1870 = vld [vmem:[%s1182] sm:$0x1]
        %v1871 = vld [vmem:[%s955] sm:$0x1]
        %v1872 = vsel %vm1243, %v1869, 0.0
        %1873 = vadd.xlane.f32.xlu0 %v1872
        %v1874 = vpop.xlane.xlu0 %1873
        %v1875 = vrcp.pop 32.0
        %v1876 = vmul.f32 %v1874, %v1875
        %v1877 = vsub.f32 %v1869, %v1876
        %v1878 = vmul.f32 %v1877, %v1877
        %v1879 = vsel %vm1243, %v1878, 0.0
        %1880 = vadd.xlane.f32.xlu0 %v1879
        %v1881 = vpop.xlane.xlu0 %1880
        %v1882 = vmul.f32 %v1881, %v1875
        %v1883 = vadd.f32 %v1882, 1e-05
        %v1884 = vrsqrt.pop %v1883
        %v1885 = vmul.f32 %v1883, %v1884
        %vm1886 = vcmp.eq.f32.partialorder %v1883, inf
        %v1887 = vsel %vm1886, %v1883, %v1885
        %vm1888 = vcmp.eq.f32.partialorder %v1883, 0.0
        %v1889 = vand.u32 %v1883, 2147483648
        %v1890 = vsel %vm1888, %v1889, %v1887
        %v1891 = vrcp.pop %v1890
        %v1892 = vmul.f32 %v1877, %v1891
        %v1894 = vlaneseq
        %v1895 = vshrl.u32 %v1894, 7
        %v1896 = vsub.s32 0, %v1895
        %v1897 = vrot.slane %v1870, %v1896
        %v1899 = vmul.f32 %v1892, %v1897
        %v1901 = vlaneseq
        %v1902 = vshrl.u32 %v1901, 7
        %v1903 = vsub.s32 0, %v1902
        %v1904 = vrot.slane %v1871, %v1903
        %v1906 = vadd.f32 %v1899, %v1904
        %v1907 = vld [vmem:[%s1154] sm:$0xff]
        %v1908 = vld [vmem:[%s1161] sm:$0x1]
        %v1909 = vld [vmem:[%s1187] sm:$0xf]
        %v1910 = vld [vmem:[%s1187 + $0x4] sm:$0xf]
        %v1911 = vld [vmem:[%s1187 + $0x8] sm:$0xf]
        %v1912 = vld [vmem:[%s1187 + $0xc] sm:$0xf]
        %v1913 = vld [vmem:[%s1192] sm:$0xf]
        %v1914 = vld [vmem:[%s1192 + $0x4] sm:$0xf]
        %v1915 = vld [vmem:[%s1192 + $0x8] sm:$0xf]
        %v1916 = vld [vmem:[%s1192 + $0xc] sm:$0xf]
        %v1917 = vld [vmem:[%s964] sm:$0xf]
        %v1918 = vld [vmem:[%s964 + $0x4] sm:$0xf]
        %v1919 = vld [vmem:[%s964 + $0x8] sm:$0xf]
        %v1920 = vld [vmem:[%s964 + $0xc] sm:$0xf]
        %v1921 = vld [vmem:[%s1195] sm:$0x1]
        %v1922 = vpack.c.bf16 %v1906, %v1906
        %v1927 = vunpack.c.l.b16 %v1909
        %v1928 = vunpack.c.l.b16 %v1910
        %v1929 = vunpack.c.l.b16 %v1911
        %v1930 = vunpack.c.l.b16 %v1912
        %v1931 = vpack.c.b16 %v1928, %v1927
        %v1932 = vpack.c.b16 %v1930, %v1929
        %v1936 = vsel %vm1243, %v1922, 0
        %1938 = vmatprep.subr.bf16.mxu0 0
        %1939 = vmatpush1.bf16.msra.mxu0 %v1931
        %1940 = vmatprep.subr.bf16.mxu0 0
        %1941 = vmatpush1.bf16.msra.mxu0 %v1932
        %1942 = vmatprep.subr.bf16.mxu0 0
        %1943 = vmatpush1.bf16.msra.mxu0 0
        %1944 = vmatprep.subr.bf16.mxu0 0
        %1945 = vmatpush1.bf16.msra.mxu0 0
        %1946 = vmatprep.subr.bf16.mxu0 0
        %1947 = vmatpush1.bf16.msra.mxu0 0
        %1948 = vmatprep.subr.bf16.mxu0 0
        %1949 = vmatpush1.bf16.msra.mxu0 0
        %1950 = vmatprep.subr.bf16.mxu0 0
        %1951 = vmatpush1.bf16.msra.mxu0 0
        %1952 = vmatprep.subr.bf16.mxu0 0
        %1953 = vmatpush1.bf16.msra.mxu0 0
        %1954 = vmatprep.subr.bf16.mxu0 0
        %1955 = vmatpush1.bf16.msra.mxu0 0
        %1956 = vmatprep.subr.bf16.mxu0 0
        %1957 = vmatpush1.bf16.msra.mxu0 0
        %1958 = vmatprep.subr.bf16.mxu0 0
        %1959 = vmatpush1.bf16.msra.mxu0 0
        %1960 = vmatprep.subr.bf16.mxu0 0
        %1961 = vmatpush1.bf16.msra.mxu0 0
        %1962 = vmatprep.subr.bf16.mxu0 0
        %1963 = vmatpush1.bf16.msra.mxu0 0
        %1964 = vmatprep.subr.bf16.mxu0 0
        %1965 = vmatpush1.bf16.msra.mxu0 0
        %1966 = vmatprep.subr.bf16.mxu0 0
        %1967 = vmatpush1.bf16.msra.mxu0 0
        %1968 = vmatprep.subr.bf16.mxu0 0
        %1969 = vmatpush1.bf16.msra.mxu0 0
        %1970 = vmatprep.mubr.bf16.mxu0 0
        %1971 = vmatmul.mubr.bf16.gmra.mrb[0].mxu0 %v1936
        %v1972 = vpop.f32.mrb[0].mxu0
        %v1973 = vadd.f32 0.0, %v1972
        %v1974 = vpop.f32.mrb[0].mxu0
        %v1975 = vpop.f32.mrb[0].mxu0
        %v1976 = vpop.f32.mrb[0].mxu0
        %1977 = vdwg.mxu0
        %v1978 = vpack.c.bf16 %v1907, %v1907
        %v1983 = vunpack.c.l.b16 %v1913
        %v1984 = vunpack.c.l.b16 %v1914
        %v1985 = vunpack.c.l.b16 %v1915
        %v1986 = vunpack.c.l.b16 %v1916
        %v1987 = vpack.c.b16 %v1984, %v1983
        %v1988 = vpack.c.b16 %v1986, %v1985
        %v1992 = vsel %vm1243, %v1978, 0
        %1994 = vmatprep.subr.bf16.mxu0 0
        %1995 = vmatpush1.bf16.msra.mxu0 %v1987
        %1996 = vmatprep.subr.bf16.mxu0 0
        %1997 = vmatpush1.bf16.msra.mxu0 %v1988
        %1998 = vmatprep.subr.bf16.mxu0 0
        %1999 = vmatpush1.bf16.msra.mxu0 0
        %2000 = vmatprep.subr.bf16.mxu0 0
        %2001 = vmatpush1.bf16.msra.mxu0 0
        %2002 = vmatprep.subr.bf16.mxu0 0
        %2003 = vmatpush1.bf16.msra.mxu0 0
        %2004 = vmatprep.subr.bf16.mxu0 0
        %2005 = vmatpush1.bf16.msra.mxu0 0
        %2006 = vmatprep.subr.bf16.mxu0 0
        %2007 = vmatpush1.bf16.msra.mxu0 0
        %2008 = vmatprep.subr.bf16.mxu0 0
        %2009 = vmatpush1.bf16.msra.mxu0 0
        %2010 = vmatprep.subr.bf16.mxu0 0
        %2011 = vmatpush1.bf16.msra.mxu0 0
        %2012 = vmatprep.subr.bf16.mxu0 0
        %2013 = vmatpush1.bf16.msra.mxu0 0
        %2014 = vmatprep.subr.bf16.mxu0 0
        %2015 = vmatpush1.bf16.msra.mxu0 0
        %2016 = vmatprep.subr.bf16.mxu0 0
        %2017 = vmatpush1.bf16.msra.mxu0 0
        %2018 = vmatprep.subr.bf16.mxu0 0
        %2019 = vmatpush1.bf16.msra.mxu0 0
        %2020 = vmatprep.subr.bf16.mxu0 0
        %2021 = vmatpush1.bf16.msra.mxu0 0
        %2022 = vmatprep.subr.bf16.mxu0 0
        %2023 = vmatpush1.bf16.msra.mxu0 0
        %2024 = vmatprep.subr.bf16.mxu0 0
        %2025 = vmatpush1.bf16.msra.mxu0 0
        %2026 = vmatprep.mubr.bf16.mxu0 0
        %2027 = vmatmul.mubr.bf16.gmra.mrb[0].mxu0 %v1992
        %v2028 = vpop.f32.mrb[0].mxu0
        %v2029 = vadd.f32 0.0, %v2028
        %v2030 = vpop.f32.mrb[0].mxu0
        %v2031 = vpop.f32.mrb[0].mxu0
        %v2032 = vpop.f32.mrb[0].mxu0
        %2033 = vdwg.mxu0
        %vm2034 = vcmp.eq.f32.partialorder %v1908, 0.0
        %v2035 = vpack.c.bf16 %v1973, %v1973
        %v2036 = vpack.c.bf16 %v2029, %v2029
        %v2038 = vsel %vm1342, %v2035, 0
        %v2041 = vsel %vm1342, %v2036, 0
        %2043 = vmatprep.subr.bf16.mxu0 0
        %2044 = vmatpush1.bf16.xpose.msra.mxu0 %v2041
        %2045 = vmatprep.subr.bf16.mxu0 0
        %2046 = vmatpush1.bf16.xpose.msra.mxu0 0
        %2047 = vmatprep.subr.bf16.mxu0 0
        %2048 = vmatpush1.bf16.xpose.msra.mxu0 0
        %2049 = vmatprep.subr.bf16.mxu0 0
        %2050 = vmatpush1.bf16.xpose.msra.mxu0 0
        %2051 = vmatprep.subr.bf16.mxu0 0
        %2052 = vmatpush1.bf16.xpose.msra.mxu0 0
        %2053 = vmatprep.subr.bf16.mxu0 0
        %2054 = vmatpush1.bf16.xpose.msra.mxu0 0
        %2055 = vmatprep.subr.bf16.mxu0 0
        %2056 = vmatpush1.bf16.xpose.msra.mxu0 0
        %2057 = vmatprep.subr.bf16.mxu0 0
        %2058 = vmatpush1.bf16.xpose.msra.mxu0 0
        %2059 = vmatprep.subr.bf16.mxu0 0
        %2060 = vmatpush1.bf16.xpose.msra.mxu0 0
        %2061 = vmatprep.subr.bf16.mxu0 0
        %2062 = vmatpush1.bf16.xpose.msra.mxu0 0
        %2063 = vmatprep.subr.bf16.mxu0 0
        %2064 = vmatpush1.bf16.xpose.msra.mxu0 0
        %2065 = vmatprep.subr.bf16.mxu0 0
        %2066 = vmatpush1.bf16.xpose.msra.mxu0 0
        %2067 = vmatprep.subr.bf16.mxu0 0
        %2068 = vmatpush1.bf16.xpose.msra.mxu0 0
        %2069 = vmatprep.subr.bf16.mxu0 0
        %2070 = vmatpush1.bf16.xpose.msra.mxu0 0
        %2071 = vmatprep.subr.bf16.mxu0 0
        %2072 = vmatpush1.bf16.xpose.msra.mxu0 0
        %2073 = vmatprep.subr.bf16.mxu0 0
        %2074 = vmatpush1.bf16.xpose.msra.mxu0 0
        %2075 = vmatprep.mubr.bf16.mxu0 0
        %2076 = vmatmul.mubr.bf16.gmra.mrb[0].mxu0 %v2038
        %v2077 = vpop.f32.mrb[0].mxu0
        %v2078 = vadd.f32 0.0, %v2077
        %v2079 = vpop.f32.mrb[0].mxu0
        %v2080 = vpop.f32.mrb[0].mxu0
        %v2081 = vpop.f32.mrb[0].mxu0
        %2082 = vdwg.mxu0
        %v2083 = vsel %vm2034, 1, 0
        %v2084 = vlaneseq
        %v2085 = vshrl.u32 %v2084, 7
        %v2086 = vsub.s32 0, %v2085
        %v2087 = vrot.slane %v2083, %v2086
        %vm2088 = vcmp.eq.s32.totalorder %v2087, 1
        %v2089 = vsel %vm2088, -1e+20, %v2078
        %v2090 = vmul.f32 %v2089, 0.17677669
        %v2091 = vsel %vm1342, %v2090, -inf
        %2092 = vmax.xlane.f32.xlu0 %v2091
        %v2093 = vpop.xlane.xlu0 %2092
        %v2094 = vsub.f32 %v2090, %v2093
        %v2095 = vmul.f32 %v2094, 1.442695
        %v2096 = vpow.pop %v2095
        %v2097 = vsel %vm1342, %v2096, 0.0
        %2098 = vadd.xlane.f32.xlu0 %v2097
        %v2099 = vpop.xlane.xlu0 %2098
        %v2100 = vrcp.pop %v2099
        %v2101 = vmul.f32 %v2096, %v2100
        %v2102 = vpack.c.bf16 %v2101, %v2101
        %2104 = vrot.lane.b32.xlu0 %v2036, 96
        %v2105 = vpop.permute.xlu0 %2104
        %v2107 = vsel %vm1342, %v2102, 0
        %v2110 = vsel %vm1409, %v2105, 0
        %2112 = vmatprep.subr.bf16.mxu0 0
        %2113 = vmatpush1.bf16.msra.mxu0 %v2110
        %2114 = vmatprep.subr.bf16.mxu0 0
        %2115 = vmatpush1.bf16.msra.mxu0 0
        %2116 = vmatprep.subr.bf16.mxu0 0
        %2117 = vmatpush1.bf16.msra.mxu0 0
        %2118 = vmatprep.subr.bf16.mxu0 0
        %2119 = vmatpush1.bf16.msra.mxu0 0
        %2120 = vmatprep.subr.bf16.mxu0 0
        %2121 = vmatpush1.bf16.msra.mxu0 0
        %2122 = vmatprep.subr.bf16.mxu0 0
        %2123 = vmatpush1.bf16.msra.mxu0 0
        %2124 = vmatprep.subr.bf16.mxu0 0
        %2125 = vmatpush1.bf16.msra.mxu0 0
        %2126 = vmatprep.subr.bf16.mxu0 0
        %2127 = vmatpush1.bf16.msra.mxu0 0
        %2128 = vmatprep.subr.bf16.mxu0 0
        %2129 = vmatpush1.bf16.msra.mxu0 0
        %2130 = vmatprep.subr.bf16.mxu0 0
        %2131 = vmatpush1.bf16.msra.mxu0 0
        %2132 = vmatprep.subr.bf16.mxu0 0
        %2133 = vmatpush1.bf16.msra.mxu0 0
        %2134 = vmatprep.subr.bf16.mxu0 0
        %2135 = vmatpush1.bf16.msra.mxu0 0
        %2136 = vmatprep.subr.bf16.mxu0 0
        %2137 = vmatpush1.bf16.msra.mxu0 0
        %2138 = vmatprep.subr.bf16.mxu0 0
        %2139 = vmatpush1.bf16.msra.mxu0 0
        %2140 = vmatprep.subr.bf16.mxu0 0
        %2141 = vmatpush1.bf16.msra.mxu0 0
        %2142 = vmatprep.subr.bf16.mxu0 0
        %2143 = vmatpush1.bf16.msra.mxu0 0
        %2144 = vmatprep.mubr.bf16.mxu0 0
        %2145 = vmatmul.mubr.bf16.gmra.mrb[0].mxu0 %v2107
        %v2146 = vpop.f32.mrb[0].mxu0
        %v2147 = vadd.f32 0.0, %v2146
        %v2148 = vpop.f32.mrb[0].mxu0
        %v2149 = vpop.f32.mrb[0].mxu0
        %v2150 = vpop.f32.mrb[0].mxu0
        %2151 = vdwg.mxu0
        %2153 = vrot.lane.b32.xlu0 %v2035, 120
        %v2154 = vpop.permute.xlu0 %2153
        %2155 = vrot.lane.b32.xlu0 %v2036, 120
        %v2156 = vpop.permute.xlu0 %2155
        %v2158 = vsel %vm1342, %v2154, 0
        %v2161 = vsel %vm1342, %v2156, 0
        %2163 = vmatprep.subr.bf16.mxu0 0
        %2164 = vmatpush1.bf16.xpose.msra.mxu0 %v2161
        %2165 = vmatprep.subr.bf16.mxu0 0
        %2166 = vmatpush1.bf16.xpose.msra.mxu0 0
        %2167 = vmatprep.subr.bf16.mxu0 0
        %2168 = vmatpush1.bf16.xpose.msra.mxu0 0
        %2169 = vmatprep.subr.bf16.mxu0 0
        %2170 = vmatpush1.bf16.xpose.msra.mxu0 0
        %2171 = vmatprep.subr.bf16.mxu0 0
        %2172 = vmatpush1.bf16.xpose.msra.mxu0 0
        %2173 = vmatprep.subr.bf16.mxu0 0
        %2174 = vmatpush1.bf16.xpose.msra.mxu0 0
        %2175 = vmatprep.subr.bf16.mxu0 0
        %2176 = vmatpush1.bf16.xpose.msra.mxu0 0
        %2177 = vmatprep.subr.bf16.mxu0 0
        %2178 = vmatpush1.bf16.xpose.msra.mxu0 0
        %2179 = vmatprep.subr.bf16.mxu0 0
        %2180 = vmatpush1.bf16.xpose.msra.mxu0 0
        %2181 = vmatprep.subr.bf16.mxu0 0
        %2182 = vmatpush1.bf16.xpose.msra.mxu0 0
        %2183 = vmatprep.subr.bf16.mxu0 0
        %2184 = vmatpush1.bf16.xpose.msra.mxu0 0
        %2185 = vmatprep.subr.bf16.mxu0 0
        %2186 = vmatpush1.bf16.xpose.msra.mxu0 0
        %2187 = vmatprep.subr.bf16.mxu0 0
        %2188 = vmatpush1.bf16.xpose.msra.mxu0 0
        %2189 = vmatprep.subr.bf16.mxu0 0
        %2190 = vmatpush1.bf16.xpose.msra.mxu0 0
        %2191 = vmatprep.subr.bf16.mxu0 0
        %2192 = vmatpush1.bf16.xpose.msra.mxu0 0
        %2193 = vmatprep.subr.bf16.mxu0 0
        %2194 = vmatpush1.bf16.xpose.msra.mxu0 0
        %2195 = vmatprep.mubr.bf16.mxu0 0
        %2196 = vmatmul.mubr.bf16.gmra.mrb[0].mxu0 %v2158
        %v2197 = vpop.f32.mrb[0].mxu0
        %v2198 = vadd.f32 0.0, %v2197
        %v2199 = vpop.f32.mrb[0].mxu0
        %v2200 = vpop.f32.mrb[0].mxu0
        %v2201 = vpop.f32.mrb[0].mxu0
        %2202 = vdwg.mxu0
        %v2203 = vsel %vm2088, -1e+20, %v2198
        %v2204 = vmul.f32 %v2203, 0.17677669
        %v2205 = vsel %vm1342, %v2204, -inf
        %2206 = vmax.xlane.f32.xlu0 %v2205
        %v2207 = vpop.xlane.xlu0 %2206
        %v2208 = vsub.f32 %v2204, %v2207
        %v2209 = vmul.f32 %v2208, 1.442695
        %v2210 = vpow.pop %v2209
        %v2211 = vsel %vm1342, %v2210, 0.0
        %2212 = vadd.xlane.f32.xlu0 %v2211
        %v2213 = vpop.xlane.xlu0 %2212
        %v2214 = vrcp.pop %v2213
        %v2215 = vmul.f32 %v2210, %v2214
        %v2216 = vpack.c.bf16 %v2215, %v2215
        %2217 = vrot.lane.b32.xlu0 %v2036, 88
        %v2218 = vpop.permute.xlu0 %2217
        %v2220 = vsel %vm1342, %v2216, 0
        %v2223 = vsel %vm1409, %v2218, 0
        %2225 = vmatprep.subr.bf16.mxu0 0
        %2226 = vmatpush1.bf16.msra.mxu0 %v2223
        %2227 = vmatprep.subr.bf16.mxu0 0
        %2228 = vmatpush1.bf16.msra.mxu0 0
        %2229 = vmatprep.subr.bf16.mxu0 0
        %2230 = vmatpush1.bf16.msra.mxu0 0
        %2231 = vmatprep.subr.bf16.mxu0 0
        %2232 = vmatpush1.bf16.msra.mxu0 0
        %2233 = vmatprep.subr.bf16.mxu0 0
        %2234 = vmatpush1.bf16.msra.mxu0 0
        %2235 = vmatprep.subr.bf16.mxu0 0
        %2236 = vmatpush1.bf16.msra.mxu0 0
        %2237 = vmatprep.subr.bf16.mxu0 0
        %2238 = vmatpush1.bf16.msra.mxu0 0
        %2239 = vmatprep.subr.bf16.mxu0 0
        %2240 = vmatpush1.bf16.msra.mxu0 0
        %2241 = vmatprep.subr.bf16.mxu0 0
        %2242 = vmatpush1.bf16.msra.mxu0 0
        %2243 = vmatprep.subr.bf16.mxu0 0
        %2244 = vmatpush1.bf16.msra.mxu0 0
        %2245 = vmatprep.subr.bf16.mxu0 0
        %2246 = vmatpush1.bf16.msra.mxu0 0
        %2247 = vmatprep.subr.bf16.mxu0 0
        %2248 = vmatpush1.bf16.msra.mxu0 0
        %2249 = vmatprep.subr.bf16.mxu0 0
        %2250 = vmatpush1.bf16.msra.mxu0 0
        %2251 = vmatprep.subr.bf16.mxu0 0
        %2252 = vmatpush1.bf16.msra.mxu0 0
        %2253 = vmatprep.subr.bf16.mxu0 0
        %2254 = vmatpush1.bf16.msra.mxu0 0
        %2255 = vmatprep.subr.bf16.mxu0 0
        %2256 = vmatpush1.bf16.msra.mxu0 0
        %2257 = vmatprep.mubr.bf16.mxu0 0
        %2258 = vmatmul.mubr.bf16.gmra.mrb[0].mxu0 %v2220
        %v2259 = vpop.f32.mrb[0].mxu0
        %v2260 = vadd.f32 0.0, %v2259
        %v2261 = vpop.f32.mrb[0].mxu0
        %v2262 = vpop.f32.mrb[0].mxu0
        %v2263 = vpop.f32.mrb[0].mxu0
        %2264 = vdwg.mxu0
        %2265 = vrot.lane.b32.xlu0 %v2035, 112
        %v2266 = vpop.permute.xlu0 %2265
        %2267 = vrot.lane.b32.xlu0 %v2036, 112
        %v2268 = vpop.permute.xlu0 %2267
        %v2270 = vsel %vm1342, %v2266, 0
        %v2273 = vsel %vm1342, %v2268, 0
        %2275 = vmatprep.subr.bf16.mxu0 0
        %2276 = vmatpush1.bf16.xpose.msra.mxu0 %v2273
        %2277 = vmatprep.subr.bf16.mxu0 0
        %2278 = vmatpush1.bf16.xpose.msra.mxu0 0
        %2279 = vmatprep.subr.bf16.mxu0 0
        %2280 = vmatpush1.bf16.xpose.msra.mxu0 0
        %2281 = vmatprep.subr.bf16.mxu0 0
        %2282 = vmatpush1.bf16.xpose.msra.mxu0 0
        %2283 = vmatprep.subr.bf16.mxu0 0
        %2284 = vmatpush1.bf16.xpose.msra.mxu0 0
        %2285 = vmatprep.subr.bf16.mxu0 0
        %2286 = vmatpush1.bf16.xpose.msra.mxu0 0
        %2287 = vmatprep.subr.bf16.mxu0 0
        %2288 = vmatpush1.bf16.xpose.msra.mxu0 0
        %2289 = vmatprep.subr.bf16.mxu0 0
        %2290 = vmatpush1.bf16.xpose.msra.mxu0 0
        %2291 = vmatprep.subr.bf16.mxu0 0
        %2292 = vmatpush1.bf16.xpose.msra.mxu0 0
        %2293 = vmatprep.subr.bf16.mxu0 0
        %2294 = vmatpush1.bf16.xpose.msra.mxu0 0
        %2295 = vmatprep.subr.bf16.mxu0 0
        %2296 = vmatpush1.bf16.xpose.msra.mxu0 0
        %2297 = vmatprep.subr.bf16.mxu0 0
        %2298 = vmatpush1.bf16.xpose.msra.mxu0 0
        %2299 = vmatprep.subr.bf16.mxu0 0
        %2300 = vmatpush1.bf16.xpose.msra.mxu0 0
        %2301 = vmatprep.subr.bf16.mxu0 0
        %2302 = vmatpush1.bf16.xpose.msra.mxu0 0
        %2303 = vmatprep.subr.bf16.mxu0 0
        %2304 = vmatpush1.bf16.xpose.msra.mxu0 0
        %2305 = vmatprep.subr.bf16.mxu0 0
        %2306 = vmatpush1.bf16.xpose.msra.mxu0 0
        %2307 = vmatprep.mubr.bf16.mxu0 0
        %2308 = vmatmul.mubr.bf16.gmra.mrb[0].mxu0 %v2270
        %v2309 = vpop.f32.mrb[0].mxu0
        %v2310 = vadd.f32 0.0, %v2309
        %v2311 = vpop.f32.mrb[0].mxu0
        %v2312 = vpop.f32.mrb[0].mxu0
        %v2313 = vpop.f32.mrb[0].mxu0
        %2314 = vdwg.mxu0
        %v2315 = vsel %vm2088, -1e+20, %v2310
        %v2316 = vmul.f32 %v2315, 0.17677669
        %v2317 = vsel %vm1342, %v2316, -inf
        %2318 = vmax.xlane.f32.xlu0 %v2317
        %v2319 = vpop.xlane.xlu0 %2318
        %v2320 = vsub.f32 %v2316, %v2319
        %v2321 = vmul.f32 %v2320, 1.442695
        %v2322 = vpow.pop %v2321
        %v2323 = vsel %vm1342, %v2322, 0.0
        %2324 = vadd.xlane.f32.xlu0 %v2323
        %v2325 = vpop.xlane.xlu0 %2324
        %v2326 = vrcp.pop %v2325
        %v2327 = vmul.f32 %v2322, %v2326
        %v2328 = vpack.c.bf16 %v2327, %v2327
        %2329 = vrot.lane.b32.xlu0 %v2036, 80
        %v2330 = vpop.permute.xlu0 %2329
        %v2332 = vsel %vm1342, %v2328, 0
        %v2335 = vsel %vm1409, %v2330, 0
        %2337 = vmatprep.subr.bf16.mxu0 0
        %2338 = vmatpush1.bf16.msra.mxu0 %v2335
        %2339 = vmatprep.subr.bf16.mxu0 0
        %2340 = vmatpush1.bf16.msra.mxu0 0
        %2341 = vmatprep.subr.bf16.mxu0 0
        %2342 = vmatpush1.bf16.msra.mxu0 0
        %2343 = vmatprep.subr.bf16.mxu0 0
        %2344 = vmatpush1.bf16.msra.mxu0 0
        %2345 = vmatprep.subr.bf16.mxu0 0
        %2346 = vmatpush1.bf16.msra.mxu0 0
        %2347 = vmatprep.subr.bf16.mxu0 0
        %2348 = vmatpush1.bf16.msra.mxu0 0
        %2349 = vmatprep.subr.bf16.mxu0 0
        %2350 = vmatpush1.bf16.msra.mxu0 0
        %2351 = vmatprep.subr.bf16.mxu0 0
        %2352 = vmatpush1.bf16.msra.mxu0 0
        %2353 = vmatprep.subr.bf16.mxu0 0
        %2354 = vmatpush1.bf16.msra.mxu0 0
        %2355 = vmatprep.subr.bf16.mxu0 0
        %2356 = vmatpush1.bf16.msra.mxu0 0
        %2357 = vmatprep.subr.bf16.mxu0 0
        %2358 = vmatpush1.bf16.msra.mxu0 0
        %2359 = vmatprep.subr.bf16.mxu0 0
        %2360 = vmatpush1.bf16.msra.mxu0 0
        %2361 = vmatprep.subr.bf16.mxu0 0
        %2362 = vmatpush1.bf16.msra.mxu0 0
        %2363 = vmatprep.subr.bf16.mxu0 0
        %2364 = vmatpush1.bf16.msra.mxu0 0
        %2365 = vmatprep.subr.bf16.mxu0 0
        %2366 = vmatpush1.bf16.msra.mxu0 0
        %2367 = vmatprep.subr.bf16.mxu0 0
        %2368 = vmatpush1.bf16.msra.mxu0 0
        %2369 = vmatprep.mubr.bf16.mxu0 0
        %2370 = vmatmul.mubr.bf16.gmra.mrb[0].mxu0 %v2332
        %v2371 = vpop.f32.mrb[0].mxu0
        %v2372 = vadd.f32 0.0, %v2371
        %v2373 = vpop.f32.mrb[0].mxu0
        %v2374 = vpop.f32.mrb[0].mxu0
        %v2375 = vpop.f32.mrb[0].mxu0
        %2376 = vdwg.mxu0
        %2377 = vrot.lane.b32.xlu0 %v2035, 104
        %v2378 = vpop.permute.xlu0 %2377
        %2379 = vrot.lane.b32.xlu0 %v2036, 104
        %v2380 = vpop.permute.xlu0 %2379
        %v2382 = vsel %vm1342, %v2378, 0
        %v2385 = vsel %vm1342, %v2380, 0
        %2387 = vmatprep.subr.bf16.mxu0 0
        %2388 = vmatpush1.bf16.xpose.msra.mxu0 %v2385
        %2389 = vmatprep.subr.bf16.mxu0 0
        %2390 = vmatpush1.bf16.xpose.msra.mxu0 0
        %2391 = vmatprep.subr.bf16.mxu0 0
        %2392 = vmatpush1.bf16.xpose.msra.mxu0 0
        %2393 = vmatprep.subr.bf16.mxu0 0
        %2394 = vmatpush1.bf16.xpose.msra.mxu0 0
        %2395 = vmatprep.subr.bf16.mxu0 0
        %2396 = vmatpush1.bf16.xpose.msra.mxu0 0
        %2397 = vmatprep.subr.bf16.mxu0 0
        %2398 = vmatpush1.bf16.xpose.msra.mxu0 0
        %2399 = vmatprep.subr.bf16.mxu0 0
        %2400 = vmatpush1.bf16.xpose.msra.mxu0 0
        %2401 = vmatprep.subr.bf16.mxu0 0
        %2402 = vmatpush1.bf16.xpose.msra.mxu0 0
        %2403 = vmatprep.subr.bf16.mxu0 0
        %2404 = vmatpush1.bf16.xpose.msra.mxu0 0
        %2405 = vmatprep.subr.bf16.mxu0 0
        %2406 = vmatpush1.bf16.xpose.msra.mxu0 0
        %2407 = vmatprep.subr.bf16.mxu0 0
        %2408 = vmatpush1.bf16.xpose.msra.mxu0 0
        %2409 = vmatprep.subr.bf16.mxu0 0
        %2410 = vmatpush1.bf16.xpose.msra.mxu0 0
        %2411 = vmatprep.subr.bf16.mxu0 0
        %2412 = vmatpush1.bf16.xpose.msra.mxu0 0
        %2413 = vmatprep.subr.bf16.mxu0 0
        %2414 = vmatpush1.bf16.xpose.msra.mxu0 0
        %2415 = vmatprep.subr.bf16.mxu0 0
        %2416 = vmatpush1.bf16.xpose.msra.mxu0 0
        %2417 = vmatprep.subr.bf16.mxu0 0
        %2418 = vmatpush1.bf16.xpose.msra.mxu0 0
        %2419 = vmatprep.mubr.bf16.mxu0 0
        %2420 = vmatmul.mubr.bf16.gmra.mrb[0].mxu0 %v2382
        %v2421 = vpop.f32.mrb[0].mxu0
        %v2422 = vadd.f32 0.0, %v2421
        %v2423 = vpop.f32.mrb[0].mxu0
        %v2424 = vpop.f32.mrb[0].mxu0
        %v2425 = vpop.f32.mrb[0].mxu0
        %2426 = vdwg.mxu0
        %v2427 = vsel %vm2088, -1e+20, %v2422
        %v2428 = vmul.f32 %v2427, 0.17677669
        %v2429 = vsel %vm1342, %v2428, -inf
        %2430 = vmax.xlane.f32.xlu0 %v2429
        %v2431 = vpop.xlane.xlu0 %2430
        %v2432 = vsub.f32 %v2428, %v2431
        %v2433 = vmul.f32 %v2432, 1.442695
        %v2434 = vpow.pop %v2433
        %v2435 = vsel %vm1342, %v2434, 0.0
        %2436 = vadd.xlane.f32.xlu0 %v2435
        %v2437 = vpop.xlane.xlu0 %2436
        %v2438 = vrcp.pop %v2437
        %v2439 = vmul.f32 %v2434, %v2438
        %v2440 = vpack.c.bf16 %v2439, %v2439
        %2441 = vrot.lane.b32.xlu0 %v2036, 72
        %v2442 = vpop.permute.xlu0 %2441
        %v2444 = vsel %vm1342, %v2440, 0
        %v2447 = vsel %vm1409, %v2442, 0
        %2449 = vmatprep.subr.bf16.mxu0 0
        %2450 = vmatpush1.bf16.msra.mxu0 %v2447
        %2451 = vmatprep.subr.bf16.mxu0 0
        %2452 = vmatpush1.bf16.msra.mxu0 0
        %2453 = vmatprep.subr.bf16.mxu0 0
        %2454 = vmatpush1.bf16.msra.mxu0 0
        %2455 = vmatprep.subr.bf16.mxu0 0
        %2456 = vmatpush1.bf16.msra.mxu0 0
        %2457 = vmatprep.subr.bf16.mxu0 0
        %2458 = vmatpush1.bf16.msra.mxu0 0
        %2459 = vmatprep.subr.bf16.mxu0 0
        %2460 = vmatpush1.bf16.msra.mxu0 0
        %2461 = vmatprep.subr.bf16.mxu0 0
        %2462 = vmatpush1.bf16.msra.mxu0 0
        %2463 = vmatprep.subr.bf16.mxu0 0
        %2464 = vmatpush1.bf16.msra.mxu0 0
        %2465 = vmatprep.subr.bf16.mxu0 0
        %2466 = vmatpush1.bf16.msra.mxu0 0
        %2467 = vmatprep.subr.bf16.mxu0 0
        %2468 = vmatpush1.bf16.msra.mxu0 0
        %2469 = vmatprep.subr.bf16.mxu0 0
        %2470 = vmatpush1.bf16.msra.mxu0 0
        %2471 = vmatprep.subr.bf16.mxu0 0
        %2472 = vmatpush1.bf16.msra.mxu0 0
        %2473 = vmatprep.subr.bf16.mxu0 0
        %2474 = vmatpush1.bf16.msra.mxu0 0
        %2475 = vmatprep.subr.bf16.mxu0 0
        %2476 = vmatpush1.bf16.msra.mxu0 0
        %2477 = vmatprep.subr.bf16.mxu0 0
        %2478 = vmatpush1.bf16.msra.mxu0 0
        %2479 = vmatprep.subr.bf16.mxu0 0
        %2480 = vmatpush1.bf16.msra.mxu0 0
        %2481 = vmatprep.mubr.bf16.mxu0 0
        %2482 = vmatmul.mubr.bf16.gmra.mrb[0].mxu0 %v2444
        %v2483 = vpop.f32.mrb[0].mxu0
        %v2484 = vadd.f32 0.0, %v2483
        %v2485 = vpop.f32.mrb[0].mxu0
        %v2486 = vpop.f32.mrb[0].mxu0
        %v2487 = vpop.f32.mrb[0].mxu0
        %2488 = vdwg.mxu0
        %2490 = vrot.lane.b32.xlu0 %v2260, 8
        %v2491 = vpop.permute.xlu0 %2490
        %2494 = vrot.lane.b32.xlu0 %v2372, 16
        %v2495 = vpop.permute.xlu0 %2494
        %2498 = vrot.lane.b32.xlu0 %v2484, 24
        %v2499 = vpop.permute.xlu0 %2498
        %v2501 = vsel %vm1342, %v2147, %v2491
        %v2502 = vsel %vm1803, %v2501, %v2495
        %v2503 = vsel %vm1805, %v2502, %v2499
        %v2504 = vpack.c.bf16 %v2503, %v2503
        %v2506 = vlaneseq
        %v2507 = vshrl.u32 %v2506, 7
        %v2508 = vsub.s32 0, %v2507
        %v2509 = vrot.slane %v1921, %v2508
        %v2515 = vunpack.c.l.b16 %v1917
        %v2516 = vunpack.c.l.b16 %v1918
        %v2517 = vunpack.c.l.b16 %v1919
        %v2518 = vunpack.c.l.b16 %v1920
        %v2519 = vpack.c.b16 %v2516, %v2515
        %v2520 = vpack.c.b16 %v2518, %v2517
        %v2524 = vsel %vm1243, %v2504, 0
        %2526 = vmatprep.subr.bf16.mxu0 0
        %2527 = vmatpush1.bf16.msra.mxu0 %v2519
        %2528 = vmatprep.subr.bf16.mxu0 0
        %2529 = vmatpush1.bf16.msra.mxu0 %v2520
        %2530 = vmatprep.subr.bf16.mxu0 0
        %2531 = vmatpush1.bf16.msra.mxu0 0
        %2532 = vmatprep.subr.bf16.mxu0 0
        %2533 = vmatpush1.bf16.msra.mxu0 0
        %2534 = vmatprep.subr.bf16.mxu0 0
        %2535 = vmatpush1.bf16.msra.mxu0 0
        %2536 = vmatprep.subr.bf16.mxu0 0
        %2537 = vmatpush1.bf16.msra.mxu0 0
        %2538 = vmatprep.subr.bf16.mxu0 0
        %2539 = vmatpush1.bf16.msra.mxu0 0
        %2540 = vmatprep.subr.bf16.mxu0 0
        %2541 = vmatpush1.bf16.msra.mxu0 0
        %2542 = vmatprep.subr.bf16.mxu0 0
        %2543 = vmatpush1.bf16.msra.mxu0 0
        %2544 = vmatprep.subr.bf16.mxu0 0
        %2545 = vmatpush1.bf16.msra.mxu0 0
        %2546 = vmatprep.subr.bf16.mxu0 0
        %2547 = vmatpush1.bf16.msra.mxu0 0
        %2548 = vmatprep.subr.bf16.mxu0 0
        %2549 = vmatpush1.bf16.msra.mxu0 0
        %2550 = vmatprep.subr.bf16.mxu0 0
        %2551 = vmatpush1.bf16.msra.mxu0 0
        %2552 = vmatprep.subr.bf16.mxu0 0
        %2553 = vmatpush1.bf16.msra.mxu0 0
        %2554 = vmatprep.subr.bf16.mxu0 0
        %2555 = vmatpush1.bf16.msra.mxu0 0
        %2556 = vmatprep.subr.bf16.mxu0 0
        %2557 = vmatpush1.bf16.msra.mxu0 0
        %2558 = vmatprep.mubr.bf16.mxu0 0
        %2559 = vmatmul.mubr.bf16.gmra.mrb[0].mxu0 %v2524
        %v2560 = vpop.f32.mrb[0].mxu0
        %v2561 = vadd.f32 %v2509, %v2560
        %v2562 = vpop.f32.mrb[0].mxu0
        %v2563 = vpop.f32.mrb[0].mxu0
        %v2564 = vpop.f32.mrb[0].mxu0
        %2565 = vdwg.mxu0
        %v2566 = vadd.f32 %v2561, %v1906
        %v2567 = vld [vmem:[%s1198] sm:$0x1]
        %v2568 = vld [vmem:[%s972] sm:$0x1]
        %v2569 = vsel %vm1243, %v2566, 0.0
        %2570 = vadd.xlane.f32.xlu0 %v2569
        %v2571 = vpop.xlane.xlu0 %2570
        %v2572 = vmul.f32 %v2571, %v1875
        %v2573 = vsub.f32 %v2566, %v2572
        %v2574 = vmul.f32 %v2573, %v2573
        %v2575 = vsel %vm1243, %v2574, 0.0
        %2576 = vadd.xlane.f32.xlu0 %v2575
        %v2577 = vpop.xlane.xlu0 %2576
        %v2578 = vmul.f32 %v2577, %v1875
        %v2579 = vadd.f32 %v2578, 1e-05
        %v2580 = vrsqrt.pop %v2579
        %v2581 = vmul.f32 %v2579, %v2580
        %vm2582 = vcmp.eq.f32.partialorder %v2579, inf
        %v2583 = vsel %vm2582, %v2579, %v2581
        %vm2584 = vcmp.eq.f32.partialorder %v2579, 0.0
        %v2585 = vand.u32 %v2579, 2147483648
        %v2586 = vsel %vm2584, %v2585, %v2583
        %v2587 = vrcp.pop %v2586
        %v2588 = vmul.f32 %v2573, %v2587
        %v2590 = vlaneseq
        %v2591 = vshrl.u32 %v2590, 7
        %v2592 = vsub.s32 0, %v2591
        %v2593 = vrot.slane %v2567, %v2592
        %v2595 = vmul.f32 %v2588, %v2593
        %v2597 = vlaneseq
        %v2598 = vshrl.u32 %v2597, 7
        %v2599 = vsub.s32 0, %v2598
        %v2600 = vrot.slane %v2568, %v2599
        %v2602 = vadd.f32 %v2595, %v2600
        %v2603 = vld [vmem:[%s981] sm:$0xf]
        %v2604 = vld [vmem:[%s981 + $0x4] sm:$0xf]
        %v2605 = vld [vmem:[%s981 + $0x8] sm:$0xf]
        %v2606 = vld [vmem:[%s981 + $0xc] sm:$0xf]
        %v2607 = vpack.c.bf16 %v2602, %v2602
        %v2608 = vld [vmem:[%s989] sm:$0x1]
        %v2610 = vlaneseq
        %v2611 = vshrl.u32 %v2610, 7
        %v2612 = vsub.s32 0, %v2611
        %v2613 = vrot.slane %v2608, %v2612
        %v2619 = vunpack.c.l.b16 %v2603
        %v2620 = vunpack.c.l.b16 %v2604
        %v2621 = vunpack.c.l.b16 %v2605
        %v2622 = vunpack.c.l.b16 %v2606
        %v2623 = vpack.c.b16 %v2620, %v2619
        %v2624 = vpack.c.b16 %v2622, %v2621
        %v2628 = vsel %vm1243, %v2607, 0
        %2630 = vmatprep.subr.bf16.mxu0 0
        %2631 = vmatpush1.bf16.msra.mxu0 %v2623
        %2632 = vmatprep.subr.bf16.mxu0 0
        %2633 = vmatpush1.bf16.msra.mxu0 %v2624
        %2634 = vmatprep.subr.bf16.mxu0 0
        %2635 = vmatpush1.bf16.msra.mxu0 0
        %2636 = vmatprep.subr.bf16.mxu0 0
        %2637 = vmatpush1.bf16.msra.mxu0 0
        %2638 = vmatprep.subr.bf16.mxu0 0
        %2639 = vmatpush1.bf16.msra.mxu0 0
        %2640 = vmatprep.subr.bf16.mxu0 0
        %2641 = vmatpush1.bf16.msra.mxu0 0
        %2642 = vmatprep.subr.bf16.mxu0 0
        %2643 = vmatpush1.bf16.msra.mxu0 0
        %2644 = vmatprep.subr.bf16.mxu0 0
        %2645 = vmatpush1.bf16.msra.mxu0 0
        %2646 = vmatprep.subr.bf16.mxu0 0
        %2647 = vmatpush1.bf16.msra.mxu0 0
        %2648 = vmatprep.subr.bf16.mxu0 0
        %2649 = vmatpush1.bf16.msra.mxu0 0
        %2650 = vmatprep.subr.bf16.mxu0 0
        %2651 = vmatpush1.bf16.msra.mxu0 0
        %2652 = vmatprep.subr.bf16.mxu0 0
        %2653 = vmatpush1.bf16.msra.mxu0 0
        %2654 = vmatprep.subr.bf16.mxu0 0
        %2655 = vmatpush1.bf16.msra.mxu0 0
        %2656 = vmatprep.subr.bf16.mxu0 0
        %2657 = vmatpush1.bf16.msra.mxu0 0
        %2658 = vmatprep.subr.bf16.mxu0 0
        %2659 = vmatpush1.bf16.msra.mxu0 0
        %2660 = vmatprep.subr.bf16.mxu0 0
        %2661 = vmatpush1.bf16.msra.mxu0 0
        %2662 = vmatprep.mubr.bf16.mxu0 0
        %2663 = vmatmul.mubr.bf16.gmra.mrb[0].mxu0 %v2628
        %v2664 = vpop.f32.mrb[0].mxu0
        %v2665 = vadd.f32 %v2613, %v2664
        %v2666 = vpop.f32.mrb[0].mxu0
        %v2667 = vpop.f32.mrb[0].mxu0
        %v2668 = vpop.f32.mrb[0].mxu0
        %2669 = vdwg.mxu0
        %v2670 = vmax.f32 %v2665, 0.0
        %v2671 = vld [vmem:[%s1203] sm:$0xf]
        %v2672 = vld [vmem:[%s1203 + $0x4] sm:$0xf]
        %v2673 = vld [vmem:[%s1203 + $0x8] sm:$0xf]
        %v2674 = vld [vmem:[%s1203 + $0xc] sm:$0xf]
        %v2675 = vld [vmem:[%s1203 + $0x10] sm:$0xf]
        %v2676 = vld [vmem:[%s1203 + $0x14] sm:$0xf]
        %v2677 = vld [vmem:[%s1203 + $0x18] sm:$0xf]
        %v2678 = vld [vmem:[%s1203 + $0x1c] sm:$0xf]
        %v2679 = vld [vmem:[%s1203 + $0x20] sm:$0xf]
        %v2680 = vld [vmem:[%s1203 + $0x24] sm:$0xf]
        %v2681 = vld [vmem:[%s1203 + $0x28] sm:$0xf]
        %v2682 = vld [vmem:[%s1203 + $0x2c] sm:$0xf]
        %v2683 = vld [vmem:[%s1203 + $0x30] sm:$0xf]
        %v2684 = vld [vmem:[%s1203 + $0x34] sm:$0xf]
        %v2685 = vld [vmem:[%s1203 + $0x38] sm:$0xf]
        %v2686 = vld [vmem:[%s1203 + $0x3c] sm:$0xf]
        %v2687 = vpack.c.bf16 %v2670, %v2670
        %v2688 = vld [vmem:[%s997] sm:$0x1]
        %v2690 = vlaneseq
        %v2691 = vshrl.u32 %v2690, 7
        %v2692 = vsub.s32 0, %v2691
        %v2693 = vrot.slane %v2688, %v2692
        %v2711 = vunpack.c.l.b16 %v2671
        %v2712 = vunpack.c.l.b16 %v2672
        %v2713 = vunpack.c.l.b16 %v2673
        %v2714 = vunpack.c.l.b16 %v2674
        %v2715 = vunpack.c.l.b16 %v2675
        %v2716 = vunpack.c.l.b16 %v2676
        %v2717 = vunpack.c.l.b16 %v2677
        %v2718 = vunpack.c.l.b16 %v2678
        %v2719 = vunpack.c.l.b16 %v2679
        %v2720 = vunpack.c.l.b16 %v2680
        %v2721 = vunpack.c.l.b16 %v2681
        %v2722 = vunpack.c.l.b16 %v2682
        %v2723 = vunpack.c.l.b16 %v2683
        %v2724 = vunpack.c.l.b16 %v2684
        %v2725 = vunpack.c.l.b16 %v2685
        %v2726 = vunpack.c.l.b16 %v2686
        %v2727 = vpack.c.b16 %v2712, %v2711
        %v2728 = vpack.c.b16 %v2714, %v2713
        %v2729 = vpack.c.b16 %v2716, %v2715
        %v2730 = vpack.c.b16 %v2718, %v2717
        %v2731 = vpack.c.b16 %v2720, %v2719
        %v2732 = vpack.c.b16 %v2722, %v2721
        %v2733 = vpack.c.b16 %v2724, %v2723
        %v2734 = vpack.c.b16 %v2726, %v2725
        %2743 = vmatprep.subr.bf16.mxu0 0
        %2744 = vmatpush1.bf16.msra.mxu0 %v2727
        %2745 = vmatprep.subr.bf16.mxu0 0
        %2746 = vmatpush1.bf16.msra.mxu0 %v2728
        %2747 = vmatprep.subr.bf16.mxu0 0
        %2748 = vmatpush1.bf16.msra.mxu0 %v2729
        %2749 = vmatprep.subr.bf16.mxu0 0
        %2750 = vmatpush1.bf16.msra.mxu0 %v2730
        %2751 = vmatprep.subr.bf16.mxu0 0
        %2752 = vmatpush1.bf16.msra.mxu0 %v2731
        %2753 = vmatprep.subr.bf16.mxu0 0
        %2754 = vmatpush1.bf16.msra.mxu0 %v2732
        %2755 = vmatprep.subr.bf16.mxu0 0
        %2756 = vmatpush1.bf16.msra.mxu0 %v2733
        %2757 = vmatprep.subr.bf16.mxu0 0
        %2758 = vmatpush1.bf16.msra.mxu0 %v2734
        %2759 = vmatprep.subr.bf16.mxu0 0
        %2760 = vmatpush1.bf16.msra.mxu0 0
        %2761 = vmatprep.subr.bf16.mxu0 0
        %2762 = vmatpush1.bf16.msra.mxu0 0
        %2763 = vmatprep.subr.bf16.mxu0 0
        %2764 = vmatpush1.bf16.msra.mxu0 0
        %2765 = vmatprep.subr.bf16.mxu0 0
        %2766 = vmatpush1.bf16.msra.mxu0 0
        %2767 = vmatprep.subr.bf16.mxu0 0
        %2768 = vmatpush1.bf16.msra.mxu0 0
        %2769 = vmatprep.subr.bf16.mxu0 0
        %2770 = vmatpush1.bf16.msra.mxu0 0
        %2771 = vmatprep.subr.bf16.mxu0 0
        %2772 = vmatpush1.bf16.msra.mxu0 0
        %2773 = vmatprep.subr.bf16.mxu0 0
        %2774 = vmatpush1.bf16.msra.mxu0 0
        %2775 = vmatprep.mubr.bf16.mxu0 0
        %2776 = vmatmul.mubr.bf16.gmra.mrb[0].mxu0 %v2687
        %v2777 = vpop.f32.mrb[0].mxu0
        %v2778 = vadd.f32 %v2693, %v2777
        %v2779 = vpop.f32.mrb[0].mxu0
        %v2780 = vpop.f32.mrb[0].mxu0
        %v2781 = vpop.f32.mrb[0].mxu0
        %2782 = vdwg.mxu0
        %v2783 = vadd.f32 %v2778, %v2602
        %v2784 = vld [vmem:[%s1206] sm:$0x1]
        %v2785 = vld [vmem:[%s1005] sm:$0x1]
        %v2786 = vsel %vm1243, %v2783, 0.0
        %2787 = vadd.xlane.f32.xlu0 %v2786
        %v2788 = vpop.xlane.xlu0 %2787
        %v2789 = vmul.f32 %v2788, %v1875
        %v2790 = vsub.f32 %v2783, %v2789
        %v2791 = vmul.f32 %v2790, %v2790
        %v2792 = vsel %vm1243, %v2791, 0.0
        %2793 = vadd.xlane.f32.xlu0 %v2792
        %v2794 = vpop.xlane.xlu0 %2793
        %v2795 = vmul.f32 %v2794, %v1875
        %v2796 = vadd.f32 %v2795, 1e-05
        %v2797 = vrsqrt.pop %v2796
        %v2798 = vmul.f32 %v2796, %v2797
        %vm2799 = vcmp.eq.f32.partialorder %v2796, inf
        %v2800 = vsel %vm2799, %v2796, %v2798
        %vm2801 = vcmp.eq.f32.partialorder %v2796, 0.0
        %v2802 = vand.u32 %v2796, 2147483648
        %v2803 = vsel %vm2801, %v2802, %v2800
        %v2804 = vrcp.pop %v2803
        %v2805 = vmul.f32 %v2790, %v2804
        %v2807 = vlaneseq
        %v2808 = vshrl.u32 %v2807, 7
        %v2809 = vsub.s32 0, %v2808
        %v2810 = vrot.slane %v2784, %v2809
        %v2812 = vmul.f32 %v2805, %v2810
        %v2814 = vlaneseq
        %v2815 = vshrl.u32 %v2814, 7
        %v2816 = vsub.s32 0, %v2815
        %v2817 = vrot.slane %v2785, %v2816
        %v2819 = vadd.f32 %v2812, %v2817
        %2820 = vst.msk [vmem:[#allocation2] sm:$0xff] %vm1243, %v2819
        %p2821 = scmp.eq.s32.totalorder %s55, 1
        // Predicated region
        $region149: #{decoder_forward.1} parent=115 // pred_check
          %p2822 = pneg %p2821
        $region150: #{decoder_forward.1} parent=115 // pred_check_branch
          %2824 = sbr.rel (%p2822) target = $region152
        $region151: #{decoder_forward.1} parent=115 // pred_region
          %v2825 = vld [vmem:[%s22] sm:$0xf]
          %v2826 = vld [vmem:[%s22 + $0x4] sm:$0xf]
          %v2827 = vld [vmem:[%s22 + $0x8] sm:$0xf]
          %v2828 = vld [vmem:[%s22 + $0xc] sm:$0xf]
          %v2829 = vpack.c.bf16 %v2819, %v2819
          %v2830 = vld [vmem:[%s23] sm:$0x1]
          %v2832 = vlaneseq
          %v2833 = vshrl.u32 %v2832, 7
          %v2834 = vsub.s32 0, %v2833
          %v2835 = vrot.slane %v2830, %v2834
          %v2841 = vunpack.c.l.b16 %v2825
          %v2842 = vunpack.c.l.b16 %v2826
          %v2843 = vunpack.c.l.b16 %v2827
          %v2844 = vunpack.c.l.b16 %v2828
          %v2845 = vpack.c.b16 %v2842, %v2841
          %v2846 = vpack.c.b16 %v2844, %v2843
          %v2850 = vsel %vm1243, %v2829, 0
          %2852 = vmatprep.subr.bf16.mxu0 0
          %2853 = vmatpush1.bf16.msra.mxu0 %v2845
          %2854 = vmatprep.subr.bf16.mxu0 0
          %2855 = vmatpush1.bf16.msra.mxu0 %v2846
          %2856 = vmatprep.subr.bf16.mxu0 0
          %2857 = vmatpush1.bf16.msra.mxu0 0
          %2858 = vmatprep.subr.bf16.mxu0 0
          %2859 = vmatpush1.bf16.msra.mxu0 0
          %2860 = vmatprep.subr.bf16.mxu0 0
          %2861 = vmatpush1.bf16.msra.mxu0 0
          %2862 = vmatprep.subr.bf16.mxu0 0
          %2863 = vmatpush1.bf16.msra.mxu0 0
          %2864 = vmatprep.subr.bf16.mxu0 0
          %2865 = vmatpush1.bf16.msra.mxu0 0
          %2866 = vmatprep.subr.bf16.mxu0 0
          %2867 = vmatpush1.bf16.msra.mxu0 0
          %2868 = vmatprep.subr.bf16.mxu0 0
          %2869 = vmatpush1.bf16.msra.mxu0 0
          %2870 = vmatprep.subr.bf16.mxu0 0
          %2871 = vmatpush1.bf16.msra.mxu0 0
          %2872 = vmatprep.subr.bf16.mxu0 0
          %2873 = vmatpush1.bf16.msra.mxu0 0
          %2874 = vmatprep.subr.bf16.mxu0 0
          %2875 = vmatpush1.bf16.msra.mxu0 0
          %2876 = vmatprep.subr.bf16.mxu0 0
          %2877 = vmatpush1.bf16.msra.mxu0 0
          %2878 = vmatprep.subr.bf16.mxu0 0
          %2879 = vmatpush1.bf16.msra.mxu0 0
          %2880 = vmatprep.subr.bf16.mxu0 0
          %2881 = vmatpush1.bf16.msra.mxu0 0
          %2882 = vmatprep.subr.bf16.mxu0 0
          %2883 = vmatpush1.bf16.msra.mxu0 0
          %2884 = vmatprep.mubr.bf16.mxu0 0
          %2885 = vmatmul.mubr.bf16.gmra.mrb[0].mxu0 %v2850
          %v2886 = vpop.f32.mrb[0].mxu0
          %v2887 = vadd.f32 %v2835, %v2886
          %v2888 = vpop.f32.mrb[0].mxu0
          %v2889 = vpop.f32.mrb[0].mxu0
          %v2890 = vpop.f32.mrb[0].mxu0
          %2891 = vdwg.mxu0
          %2892 = vst.msk [vmem:[%s1150] sm:$0xff] %vm1803, %v2887
        $region152: #{decoder_forward.1} parent=115 // pred_fallthru
          _
        %s2893 = sand.u32 %s679, 1
        %s2894 = scalar_lea.sflag [#allocation5], %s2893
        %s2895 = sand.u32 %s679, 1
        %s2896 = smul.addr %s2895, 8
        %s2897 = scalar_lea.vmem [#allocation15], %s2896
        // Predicated region
        $region153: #{decoder_forward.1} parent=115 // pred_check
          %p2898 = pneg %p689
        $region154: #{decoder_forward.1} parent=115 // pred_check_branch
          %2900 = sbr.rel (%p2898) target = $region156
        $region155: #{decoder_forward.1} parent=115 // pred_region
          %s2902 = ssub.s32 128, 128
          %2903 = vsyncadd %s2894, %s2902
          %s2904 = smul.addr %s54, 128
          %s2905 = scalar_lea.hbm %s24, %s2904
          %s2907 = sshll.u32 %s2897, 4
          %s2908 = int_to_ptr.vmem [resolvable:$true] %s2907
          %2910 = dma.vmem_to_hbm [thread:$0]  %s2908, 128, %s2905, %s2894
        $region156: #{decoder_forward.1} parent=115 // pred_fallthru
          _
      $region116: #{decoder_forward.1} parent=5 // pred_fallthru
        _
      %p2911 = scmp.le.s32.totalorder 2, %s45
      // Predicated region
      $region157: #{decoder_forward.1} parent=5 // pred_check
        %p2912 = pneg %p2911
      $region158: #{decoder_forward.1} parent=5 // pred_check_branch
        %2914 = sbr.rel (%p2912) target = $region160
      $region159: #{decoder_forward.1} parent=5 // pred_region
        %s2915 = ssub.s32 %s45, 2
        // Predicated region
        $region161: #{decoder_forward.1} parent=159 // pred_check
          %p2916 = pneg %p695
        $region162: #{decoder_forward.1} parent=159 // pred_check_branch
          %2918 = sbr.rel (%p2916) target = $region164
        $region163: #{decoder_forward.1} parent=159 // pred_region
          %s2919 = sand.u32 %s680, 1
          %s2920 = scalar_lea.sflag [#allocation5], %s2919
          %s2921 = sand.u32 %s680, 1
          %s2922 = smul.addr %s2921, 8
          %s2923 = scalar_lea.vmem [#allocation15], %s2922
          %2924 = dma.done %s2920, 128
        $region164: #{decoder_forward.1} parent=159 // pred_fallthru
          _
      $region160: #{decoder_forward.1} parent=5 // pred_fallthru
        _
    $region6: #{decoder_forward.1} parent=1 // loop_footer
      %s49 = sadd.s32 1, %s45
    $region7: #{decoder_forward.1} parent=1 // loop_footer_branch
      %44 = sbr.rel target = $region3
    $region8: #{decoder_forward.1} parent=1 // loop_exit
      _
    %2925 = vsyncpa [#allocation4], 1
    %s2926 = scalar_lea.sflag [#allocation4], 1
    %2927 = vsyncpa %s2926, 1
    %2928 = vsyncpa [#allocation7], 1
    %s2929 = scalar_lea.sflag [#allocation7], 1
    %2930 = vsyncpa %s2929, 1
    %2931 = vsyncpa [#allocation10], 1
    %s2932 = scalar_lea.sflag [#allocation10], 1
    %2933 = vsyncpa %s2932, 1
    %2934 = vsyncpa [#allocation13], 1
    %s2935 = scalar_lea.sflag [#allocation13], 1
    %2936 = vsyncpa %s2935, 1
    %2937 = vsyncpa [#allocation5], 1
    %s2938 = scalar_lea.sflag [#allocation5], 1
    %2939 = vsyncpa %s2938, 1

</llo_original>
